<compile_context>
chip_gen: v7x
topology: tpu7x:2x2x1
jax: 0.10.0
libtpu: 0.0.40
codegen_flags: <defaults>
</compile_context>

<pallas_src>
import functools

import jax
import jax.numpy as jnp
from jax import lax
from jax.experimental import pallas as pl
from jax.experimental.pallas import tpu as pltpu


def _round_up(x, m):
    return ((x + m - 1) // m) * m


# -------------------- Pallas kernels --------------------

def conv_stats_kernel(xc_ref, xn_ref, w_ref, y_ref, st_ref, xcat_ref, acc_ref,
                      *, offsets, width, ow, q_valid, tile_q):
    """Implicit-GEMM conv tile + masked per-channel sum / sum-of-squares partials."""
    tq = tile_q
    # Stage current block and the next block (halo) of the flattened image into one
    # contiguous VMEM buffer so every kernel-tap read is a plain static slice.
    xcat_ref[0:tq, :] = xc_ref[0]
    xcat_ref[tq:2 * tq, :] = xn_ref[0]

    acc_ref[...] = jnp.zeros_like(acc_ref)
    for k, d in enumerate(offsets):              # static unroll over KH*KW taps
        acc_ref[...] += jnp.dot(xcat_ref[d:d + tq, :], w_ref[k],
                                preferred_element_type=jnp.float32)
    y = acc_ref[...]
    y_ref[0] = y.astype(y_ref.dtype)             # bf16 intermediate to HBM

    # Training-mode BN statistics: mask out wrap-around columns (ow >= OW) and the
    # padded rows, then emit per-tile partial sums (row 0) / sum-of-squares (row 1).
    t = pl.program_id(1)
    q = t * tq + lax.broadcasted_iota(jnp.int32, (tq, 1), 0)
    valid = jnp.logical_and(q < q_valid, (q % width) < ow)
    ym = jnp.where(valid, y, 0.0)
    s = jnp.sum(ym, axis=0, keepdims=True)           # (1, Cp)
    sq = jnp.sum(ym * ym, axis=0, keepdims=True)     # (1, Cp)
    rows = lax.broadcasted_iota(jnp.int32, (8, s.shape[1]), 0)
    st_ref[0, 0] = jnp.where(rows == 0, s, 0.0) + jnp.where(rows == 1, sq, 0.0)


def bn_relu_kernel(y_ref, scale_ref, shift_ref, o_ref):
    """Fused BatchNorm (precomputed scale/shift) + ReLU."""
    y = y_ref[...].astype(jnp.float32)
    o_ref[...] = jnp.maximum(y * scale_ref[...] + shift_ref[...], 0.0)


# -------------------- wrapper --------------------

def conv_norm_act(x_nchw, weight, gamma, beta, *, stride=1, dilation=1,
                  padding="valid", eps=1e-5, tile_q=1024):
    assert stride == 1, "TODO(synk): only the module-default stride=1 is implemented"
    N, Cin, H, W = map(int, x_nchw.shape)
    Cout, Cin_w, KH, KW = map(int, weight.shape)
    assert Cin == Cin_w, "groups != 1 not supported"

    x = jnp.transpose(x_nchw, (0, 2, 3, 1)).astype(jnp.float32)      # NHWC
    if padding == "same":
        # TODO(synk): PyTorch pads asymmetrically for even kernels / stride>1.
        pad = (stride - 1 + dilation * (KH - 1)) // 2
        x = jnp.pad(x, ((0, 0), (pad, pad), (pad, pad), (0, 0)))
    H, W = int(x.shape[1]), int(x.shape[2])
    OH = (H - dilation * (KH - 1) - 1) // stride + 1
    OW = (W - dilation * (KW - 1) - 1) // stride + 1

    cin_p = _round_up(Cin, 128)      # lane-dense contraction dim
    cp = _round_up(Cout, 128)        # lane-dense output-channel dim
    Q = OH * W                       # "virtual" output rows per image (full width)
    M = N * OH * OW                  # true number of output pixels (for BN stats)

    # Flattened-spatial shift offsets: output row q reads input rows q + d_k.
    offsets = [kh * dilation * W + kw * dilation
               for kh in range(KH) for kw in range(KW)]
    max_d = max(offsets)

    tq = min(tile_q, _round_up(Q, 8))
    tq = max(tq, _round_up(max_d + 1, 8))      # halo must fit inside the next block
    num_tiles = -(-Q // tq)
    hw_pad = (num_tiles + 1) * tq              # room for the +1 halo block

    x_flat = x.reshape(N, H * W, Cin)
    x_flat = jnp.pad(x_flat, ((0, 0), (0, hw_pad - H * W), (0, cin_p - Cin)))
    x_flat = x_flat.astype(jnp.bfloat16)       # bf16 MXU inputs, f32 accumulate

    # PyTorch weight (Cout, Cin, KH, KW) -> (KH*KW, Cin_p, Cp), zero padded, bf16.
    w_mat = jnp.transpose(weight.astype(jnp.float32), (2, 3, 1, 0))
    w_mat = w_mat.reshape(KH * KW, Cin, Cout)
    w_mat = jnp.pad(w_mat, ((0, 0), (0, cin_p - Cin), (0, cp - Cout)))
    w_mat = w_mat.astype(jnp.bfloat16)

    kern = functools.partial(conv_stats_kernel, offsets=offsets, width=W,
                             ow=OW, q_valid=Q, tile_q=tq)
    y, st = pl.pallas_call(
        kern,
        out_shape=(jax.ShapeDtypeStruct((N, num_tiles * tq, cp), jnp.bfloat16),
                   jax.ShapeDtypeStruct((N, num_tiles, 8, cp), jnp.float32)),
        grid=(N, num_tiles),
        in_specs=[pl.BlockSpec((1, tq, cin_p), lambda n, t: (n, t, 0)),
                  pl.BlockSpec((1, tq, cin_p), lambda n, t: (n, t + 1, 0)),  # halo
                  pl.BlockSpec((KH * KW, cin_p, cp), lambda n, t: (0, 0, 0))],
        out_specs=(pl.BlockSpec((1, tq, cp), lambda n, t: (n, t, 0)),
                   pl.BlockSpec((1, 1, 8, cp), lambda n, t: (n, t, 0, 0))),
        scratch_shapes=[pltpu.VMEM((2 * tq, cin_p), jnp.bfloat16),
                        pltpu.VMEM((tq, cp), jnp.float32)],
        compiler_params=pltpu.CompilerParams(
            dimension_semantics=("parallel", "parallel"),
            vmem_limit_bytes=32 * 1024 * 1024),
    )(x_flat, x_flat, w_mat)

    # Reduce per-tile partials -> training-mode (biased) BN statistics over N*OH*OW.
    csum = jnp.sum(st[:, :, 0, :], axis=(0, 1))
    csq = jnp.sum(st[:, :, 1, :], axis=(0, 1))
    mean = csum / M
    # TODO(synk): E[y^2]-mean^2 is cancellation-prone for very large M; a two-pass /
    #   Welford accumulation would be safer in that regime.
    var = jnp.maximum(csq / M - mean * mean, 0.0)
    inv = lax.rsqrt(var + eps)
    gamma_p = jnp.pad(gamma.astype(jnp.float32), (0, cp - Cout))
    beta_p = jnp.pad(beta.astype(jnp.float32), (0, cp - Cout))
    scale = (gamma_p * inv).reshape(1, cp)
    shift = (beta_p - mean * gamma_p * inv).reshape(1, cp)

    rows = N * num_tiles * tq
    out = pl.pallas_call(
        bn_relu_kernel,
        out_shape=jax.ShapeDtypeStruct((rows, cp), jnp.float32),
        grid=(rows // tq,),
        in_specs=[pl.BlockSpec((tq, cp), lambda i: (i, 0)),
                  pl.BlockSpec((1, cp), lambda i: (0, 0)),
                  pl.BlockSpec((1, cp), lambda i: (0, 0))],
        out_specs=pl.BlockSpec((tq, cp), lambda i: (i, 0)),
        compiler_params=pltpu.CompilerParams(
            dimension_semantics=("parallel",),
            vmem_limit_bytes=32 * 1024 * 1024),
    )(y.reshape(rows, cp), scale, shift)

    out = out.reshape(N, num_tiles * tq, cp)[:, :Q, :Cout]
    out = out.reshape(N, OH, W, Cout)[:, :, :OW, :]
    # TODO(synk): drop this transpose if the consumer accepts NHWC (TPU-native layout).
    return jnp.transpose(out, (0, 3, 1, 2))


# -------------------- pure-JAX reference (for self-check) --------------------

def reference(x, weight, gamma, beta, eps=1e-5):
    y = lax.conv_general_dilated(
        x.astype(jnp.float32), weight.astype(jnp.float32),
        window_strides=(1, 1), padding="VALID",
        dimension_numbers=("NCHW", "OIHW", "NCHW"))
    mean = y.mean(axis=(0, 2, 3), keepdims=True)
    var = y.var(axis=(0, 2, 3), keepdims=True)  # biased, as in BN training forward
    xn = (y - mean) * lax.rsqrt(var + eps)
    out = xn * gamma.reshape(1, -1, 1, 1) + beta.reshape(1, -1, 1, 1)
    return jnp.maximum(out, 0.0)


if __name__ == "__main__":
    key = jax.random.PRNGKey(0)
    k_x, k_w, k_g, k_b = jax.random.split(key, 4)

    N, Cin, H, W = 2, 4, 16, 16
    Cout, KH, KW = 8, 3, 3

    x = jax.random.normal(k_x, (N, Cin, H, W), dtype=jnp.float32)
    weight = 0.1 * jax.random.normal(k_w, (Cout, Cin, KH, KW), dtype=jnp.float32)
    gamma = 1.0 + 0.1 * jax.random.normal(k_g, (Cout,), dtype=jnp.float32)
    beta = 0.1 * jax.random.normal(k_b, (Cout,), dtype=jnp.float32)

    out = jax.block_until_ready(conv_norm_act(x, weight, gamma, beta))
    ref = jax.block_until_ready(reference(x, weight, gamma, beta))

    assert out.shape == ref.shape == (N, Cout, H - KH + 1, W - KW + 1), out.shape
    assert jnp.allclose(out, ref, rtol=2e-2, atol=2e-2), \
        float(jnp.max(jnp.abs(out - ref)))

    print("KERNEL_OK")
</pallas_src>

<mosaic_0001>
module attributes {stable_mosaic.version = 11 : i64} {
  func.func @conv_stats_kernel(%arg0: i32, %arg1: i32, %arg2: memref<1x224x128xbf16, #tpu.memory_space<vmem>>, %arg3: memref<1x224x128xbf16, #tpu.memory_space<vmem>>, %arg4: memref<9x128x128xbf16, #tpu.memory_space<vmem>>, %arg5: memref<1x224x128xbf16, #tpu.memory_space<vmem>>, %arg6: memref<1x1x8x128xf32, #tpu.memory_space<vmem>>, %arg7: memref<448x128xbf16, #tpu.memory_space<vmem>>, %arg8: memref<224x128xf32, #tpu.memory_space<vmem>>) attributes {dimension_semantics = [#tpu.dimension_semantics<parallel>, #tpu.dimension_semantics<parallel>], iteration_bounds = array<i64: 2, 1>, scalar_prefetch = 0 : i64, scratch_operands = 2 : i64, tpu.core_type = #tpu.core_type<tc>, window_params = [{transform_indices = @transform_0, window_bounds = array<i64: 1, 224, 128>}, {transform_indices = @transform_1, window_bounds = array<i64: 1, 224, 128>}, {pipeline_mode = #tpu.pipeline_mode<synchronous>, transform_indices = @transform_2, window_bounds = array<i64: 9, 128, 128>}, {transform_indices = @transform_3, window_bounds = array<i64: 1, 224, 128>}, {transform_indices = @transform_4, window_bounds = array<i64: 1, 1, 8, 128>}]} {
    %c0 = arith.constant 0 : index
    %c0_0 = arith.constant 0 : index
    %c0_1 = arith.constant 0 : index
    %0 = vector.load %arg2[%c0, %c0_0, %c0_1] : memref<1x224x128xbf16, #tpu.memory_space<vmem>>, vector<1x224x128xbf16>
    %1 = vector.shape_cast %0 : vector<1x224x128xbf16> to vector<224x128xbf16>
    %c0_2 = arith.constant 0 : index
    %c0_3 = arith.constant 0 : index
    %2 = vector.load %arg7[%c0_2, %c0_3] : memref<448x128xbf16, #tpu.memory_space<vmem>>, vector<224x128xbf16>
    tpu.vector_store %arg7[%c0_2, %c0_3], %1 {strides = array<i32>} : memref<448x128xbf16, #tpu.memory_space<vmem>>, vector<224x128xbf16>,
    %c0_4 = arith.constant 0 : index
    %c0_5 = arith.constant 0 : index
    %c0_6 = arith.constant 0 : index
    %3 = vector.load %arg3[%c0_4, %c0_5, %c0_6] : memref<1x224x128xbf16, #tpu.memory_space<vmem>>, vector<1x224x128xbf16>
    %4 = vector.shape_cast %3 : vector<1x224x128xbf16> to vector<224x128xbf16>
    %c224 = arith.constant 224 : index
    %c0_7 = arith.constant 0 : index
    %5 = vector.load %arg7[%c224, %c0_7] : memref<448x128xbf16, #tpu.memory_space<vmem>>, vector<224x128xbf16>
    tpu.vector_store %arg7[%c224, %c0_7], %4 {strides = array<i32>} : memref<448x128xbf16, #tpu.memory_space<vmem>>, vector<224x128xbf16>,
    %cst = arith.constant 0.000000e+00 : f32
    %6 = vector.broadcast %cst : f32 to vector<224x128xf32>
    %c0_8 = arith.constant 0 : index
    %c0_9 = arith.constant 0 : index
    %7 = vector.load %arg8[%c0_8, %c0_9] : memref<224x128xf32, #tpu.memory_space<vmem>>, vector<224x128xf32>
    tpu.vector_store %arg8[%c0_8, %c0_9], %6 {strides = array<i32>} : memref<224x128xf32, #tpu.memory_space<vmem>>, vector<224x128xf32>,
    %c0_10 = arith.constant 0 : index
    %c0_11 = arith.constant 0 : index
    %8 = vector.load %arg8[%c0_10, %c0_11] : memref<224x128xf32, #tpu.memory_space<vmem>>, vector<224x128xf32>
    %c0_12 = arith.constant 0 : index
    %c0_13 = arith.constant 0 : index
    %9 = vector.load %arg7[%c0_12, %c0_13] : memref<448x128xbf16, #tpu.memory_space<vmem>>, vector<224x128xbf16>
    %c0_14 = arith.constant 0 : index
    %c0_15 = arith.constant 0 : index
    %c0_16 = arith.constant 0 : index
    %10 = vector.load %arg4[%c0_14, %c0_15, %c0_16] : memref<9x128x128xbf16, #tpu.memory_space<vmem>>, vector<1x128x128xbf16>
    %11 = vector.shape_cast %10 : vector<1x128x128xbf16> to vector<128x128xbf16>
    %cst_17 = arith.constant dense<0.000000e+00> : vector<224x128xf32>
    %12 = tpu.matmul %9, %11, %cst_17 {dimension_numbers = #tpu.dot_dimension_numbers<[1], [0], [0], [1], [0, 0, 1, 1], [], []>} : vector<224x128xbf16>, vector<128x128xbf16>, vector<224x128xf32> -> vector<224x128xf32>
    %13 = arith.addf %8, %12 : vector<224x128xf32>
    %c0_18 = arith.constant 0 : index
    %c0_19 = arith.constant 0 : index
    %14 = vector.load %arg8[%c0_18, %c0_19] : memref<224x128xf32, #tpu.memory_space<vmem>>, vector<224x128xf32>
    tpu.vector_store %arg8[%c0_18, %c0_19], %13 {strides = array<i32>} : memref<224x128xf32, #tpu.memory_space<vmem>>, vector<224x128xf32>,
    %c0_20 = arith.constant 0 : index
    %c0_21 = arith.constant 0 : index
    %15 = vector.load %arg8[%c0_20, %c0_21] : memref<224x128xf32, #tpu.memory_space<vmem>>, vector<224x128xf32>
    %c1 = arith.constant 1 : index
    %c0_22 = arith.constant 0 : index
    %16 = vector.load %arg7[%c1, %c0_22] : memref<448x128xbf16, #tpu.memory_space<vmem>>, vector<224x128xbf16>
    %c1_23 = arith.constant 1 : index
    %c0_24 = arith.constant 0 : index
    %c0_25 = arith.constant 0 : index
    %17 = vector.load %arg4[%c1_23, %c0_24, %c0_25] : memref<9x128x128xbf16, #tpu.memory_space<vmem>>, vector<1x128x128xbf16>
    %18 = vector.shape_cast %17 : vector<1x128x128xbf16> to vector<128x128xbf16>
    %cst_26 = arith.constant dense<0.000000e+00> : vector<224x128xf32>
    %19 = tpu.matmul %16, %18, %cst_26 {dimension_numbers = #tpu.dot_dimension_numbers<[1], [0], [0], [1], [0, 0, 1, 1], [], []>} : vector<224x128xbf16>, vector<128x128xbf16>, vector<224x128xf32> -> vector<224x128xf32>
    %20 = arith.addf %15, %19 : vector<224x128xf32>
    %c0_27 = arith.constant 0 : index
    %c0_28 = arith.constant 0 : index
    %21 = vector.load %arg8[%c0_27, %c0_28] : memref<224x128xf32, #tpu.memory_space<vmem>>, vector<224x128xf32>
    tpu.vector_store %arg8[%c0_27, %c0_28], %20 {strides = array<i32>} : memref<224x128xf32, #tpu.memory_space<vmem>>, vector<224x128xf32>,
    %c0_29 = arith.constant 0 : index
    %c0_30 = arith.constant 0 : index
    %22 = vector.load %arg8[%c0_29, %c0_30] : memref<224x128xf32, #tpu.memory_space<vmem>>, vector<224x128xf32>
    %c2 = arith.constant 2 : index
    %c0_31 = arith.constant 0 : index
    %23 = vector.load %arg7[%c2, %c0_31] : memref<448x128xbf16, #tpu.memory_space<vmem>>, vector<224x128xbf16>
    %c2_32 = arith.constant 2 : index
    %c0_33 = arith.constant 0 : index
    %c0_34 = arith.constant 0 : index
    %24 = vector.load %arg4[%c2_32, %c0_33, %c0_34] : memref<9x128x128xbf16, #tpu.memory_space<vmem>>, vector<1x128x128xbf16>
    %25 = vector.shape_cast %24 : vector<1x128x128xbf16> to vector<128x128xbf16>
    %cst_35 = arith.constant dense<0.000000e+00> : vector<224x128xf32>
    %26 = tpu.matmul %23, %25, %cst_35 {dimension_numbers = #tpu.dot_dimension_numbers<[1], [0], [0], [1], [0, 0, 1, 1], [], []>} : vector<224x128xbf16>, vector<128x128xbf16>, vector<224x128xf32> -> vector<224x128xf32>
    %27 = arith.addf %22, %26 : vector<224x128xf32>
    %c0_36 = arith.constant 0 : index
    %c0_37 = arith.constant 0 : index
    %28 = vector.load %arg8[%c0_36, %c0_37] : memref<224x128xf32, #tpu.memory_space<vmem>>, vector<224x128xf32>
    tpu.vector_store %arg8[%c0_36, %c0_37], %27 {strides = array<i32>} : memref<224x128xf32, #tpu.memory_space<vmem>>, vector<224x128xf32>,
    %c0_38 = arith.constant 0 : index
    %c0_39 = arith.constant 0 : index
    %29 = vector.load %arg8[%c0_38, %c0_39] : memref<224x128xf32, #tpu.memory_space<vmem>>, vector<224x128xf32>
    %c16 = arith.constant 16 : index
    %c0_40 = arith.constant 0 : index
    %30 = vector.load %arg7[%c16, %c0_40] : memref<448x128xbf16, #tpu.memory_space<vmem>>, vector<224x128xbf16>
    %c3 = arith.constant 3 : index
    %c0_41 = arith.constant 0 : index
    %c0_42 = arith.constant 0 : index
    %31 = vector.load %arg4[%c3, %c0_41, %c0_42] : memref<9x128x128xbf16, #tpu.memory_space<vmem>>, vector<1x128x128xbf16>
    %32 = vector.shape_cast %31 : vector<1x128x128xbf16> to vector<128x128xbf16>
    %cst_43 = arith.constant dense<0.000000e+00> : vector<224x128xf32>
    %33 = tpu.matmul %30, %32, %cst_43 {dimension_numbers = #tpu.dot_dimension_numbers<[1], [0], [0], [1], [0, 0, 1, 1], [], []>} : vector<224x128xbf16>, vector<128x128xbf16>, vector<224x128xf32> -> vector<224x128xf32>
    %34 = arith.addf %29, %33 : vector<224x128xf32>
    %c0_44 = arith.constant 0 : index
    %c0_45 = arith.constant 0 : index
    %35 = vector.load %arg8[%c0_44, %c0_45] : memref<224x128xf32, #tpu.memory_space<vmem>>, vector<224x128xf32>
    tpu.vector_store %arg8[%c0_44, %c0_45], %34 {strides = array<i32>} : memref<224x128xf32, #tpu.memory_space<vmem>>, vector<224x128xf32>,
    %c0_46 = arith.constant 0 : index
    %c0_47 = arith.constant 0 : index
    %36 = vector.load %arg8[%c0_46, %c0_47] : memref<224x128xf32, #tpu.memory_space<vmem>>, vector<224x128xf32>
    %c17 = arith.constant 17 : index
    %c0_48 = arith.constant 0 : index
    %37 = vector.load %arg7[%c17, %c0_48] : memref<448x128xbf16, #tpu.memory_space<vmem>>, vector<224x128xbf16>
    %c4 = arith.constant 4 : index
    %c0_49 = arith.constant 0 : index
    %c0_50 = arith.constant 0 : index
    %38 = vector.load %arg4[%c4, %c0_49, %c0_50] : memref<9x128x128xbf16, #tpu.memory_space<vmem>>, vector<1x128x128xbf16>
    %39 = vector.shape_cast %38 : vector<1x128x128xbf16> to vector<128x128xbf16>
    %cst_51 = arith.constant dense<0.000000e+00> : vector<224x128xf32>
    %40 = tpu.matmul %37, %39, %cst_51 {dimension_numbers = #tpu.dot_dimension_numbers<[1], [0], [0], [1], [0, 0, 1, 1], [], []>} : vector<224x128xbf16>, vector<128x128xbf16>, vector<224x128xf32> -> vector<224x128xf32>
    %41 = arith.addf %36, %40 : vector<224x128xf32>
    %c0_52 = arith.constant 0 : index
    %c0_53 = arith.constant 0 : index
    %42 = vector.load %arg8[%c0_52, %c0_53] : memref<224x128xf32, #tpu.memory_space<vmem>>, vector<224x128xf32>
    tpu.vector_store %arg8[%c0_52, %c0_53], %41 {strides = array<i32>} : memref<224x128xf32, #tpu.memory_space<vmem>>, vector<224x128xf32>,
    %c0_54 = arith.constant 0 : index
    %c0_55 = arith.constant 0 : index
    %43 = vector.load %arg8[%c0_54, %c0_55] : memref<224x128xf32, #tpu.memory_space<vmem>>, vector<224x128xf32>
    %c18 = arith.constant 18 : index
    %c0_56 = arith.constant 0 : index
    %44 = vector.load %arg7[%c18, %c0_56] : memref<448x128xbf16, #tpu.memory_space<vmem>>, vector<224x128xbf16>
    %c5 = arith.constant 5 : index
    %c0_57 = arith.constant 0 : index
    %c0_58 = arith.constant 0 : index
    %45 = vector.load %arg4[%c5, %c0_57, %c0_58] : memref<9x128x128xbf16, #tpu.memory_space<vmem>>, vector<1x128x128xbf16>
    %46 = vector.shape_cast %45 : vector<1x128x128xbf16> to vector<128x128xbf16>
    %cst_59 = arith.constant dense<0.000000e+00> : vector<224x128xf32>
    %47 = tpu.matmul %44, %46, %cst_59 {dimension_numbers = #tpu.dot_dimension_numbers<[1], [0], [0], [1], [0, 0, 1, 1], [], []>} : vector<224x128xbf16>, vector<128x128xbf16>, vector<224x128xf32> -> vector<224x128xf32>
    %48 = arith.addf %43, %47 : vector<224x128xf32>
    %c0_60 = arith.constant 0 : index
    %c0_61 = arith.constant 0 : index
    %49 = vector.load %arg8[%c0_60, %c0_61] : memref<224x128xf32, #tpu.memory_space<vmem>>, vector<224x128xf32>
    tpu.vector_store %arg8[%c0_60, %c0_61], %48 {strides = array<i32>} : memref<224x128xf32, #tpu.memory_space<vmem>>, vector<224x128xf32>,
    %c0_62 = arith.constant 0 : index
    %c0_63 = arith.constant 0 : index
    %50 = vector.load %arg8[%c0_62, %c0_63] : memref<224x128xf32, #tpu.memory_space<vmem>>, vector<224x128xf32>
    %c32 = arith.constant 32 : index
    %c0_64 = arith.constant 0 : index
    %51 = vector.load %arg7[%c32, %c0_64] : memref<448x128xbf16, #tpu.memory_space<vmem>>, vector<224x128xbf16>
    %c6 = arith.constant 6 : index
    %c0_65 = arith.constant 0 : index
    %c0_66 = arith.constant 0 : index
    %52 = vector.load %arg4[%c6, %c0_65, %c0_66] : memref<9x128x128xbf16, #tpu.memory_space<vmem>>, vector<1x128x128xbf16>
    %53 = vector.shape_cast %52 : vector<1x128x128xbf16> to vector<128x128xbf16>
    %cst_67 = arith.constant dense<0.000000e+00> : vector<224x128xf32>
    %54 = tpu.matmul %51, %53, %cst_67 {dimension_numbers = #tpu.dot_dimension_numbers<[1], [0], [0], [1], [0, 0, 1, 1], [], []>} : vector<224x128xbf16>, vector<128x128xbf16>, vector<224x128xf32> -> vector<224x128xf32>
    %55 = arith.addf %50, %54 : vector<224x128xf32>
    %c0_68 = arith.constant 0 : index
    %c0_69 = arith.constant 0 : index
    %56 = vector.load %arg8[%c0_68, %c0_69] : memref<224x128xf32, #tpu.memory_space<vmem>>, vector<224x128xf32>
    tpu.vector_store %arg8[%c0_68, %c0_69], %55 {strides = array<i32>} : memref<224x128xf32, #tpu.memory_space<vmem>>, vector<224x128xf32>,
    %c0_70 = arith.constant 0 : index
    %c0_71 = arith.constant 0 : index
    %57 = vector.load %arg8[%c0_70, %c0_71] : memref<224x128xf32, #tpu.memory_space<vmem>>, vector<224x128xf32>
    %c33 = arith.constant 33 : index
    %c0_72 = arith.constant 0 : index
    %58 = vector.load %arg7[%c33, %c0_72] : memref<448x128xbf16, #tpu.memory_space<vmem>>, vector<224x128xbf16>
    %c7 = arith.constant 7 : index
    %c0_73 = arith.constant 0 : index
    %c0_74 = arith.constant 0 : index
    %59 = vector.load %arg4[%c7, %c0_73, %c0_74] : memref<9x128x128xbf16, #tpu.memory_space<vmem>>, vector<1x128x128xbf16>
    %60 = vector.shape_cast %59 : vector<1x128x128xbf16> to vector<128x128xbf16>
    %cst_75 = arith.constant dense<0.000000e+00> : vector<224x128xf32>
    %61 = tpu.matmul %58, %60, %cst_75 {dimension_numbers = #tpu.dot_dimension_numbers<[1], [0], [0], [1], [0, 0, 1, 1], [], []>} : vector<224x128xbf16>, vector<128x128xbf16>, vector<224x128xf32> -> vector<224x128xf32>
    %62 = arith.addf %57, %61 : vector<224x128xf32>
    %c0_76 = arith.constant 0 : index
    %c0_77 = arith.constant 0 : index
    %63 = vector.load %arg8[%c0_76, %c0_77] : memref<224x128xf32, #tpu.memory_space<vmem>>, vector<224x128xf32>
    tpu.vector_store %arg8[%c0_76, %c0_77], %62 {strides = array<i32>} : memref<224x128xf32, #tpu.memory_space<vmem>>, vector<224x128xf32>,
    %c0_78 = arith.constant 0 : index
    %c0_79 = arith.constant 0 : index
    %64 = vector.load %arg8[%c0_78, %c0_79] : memref<224x128xf32, #tpu.memory_space<vmem>>, vector<224x128xf32>
    %c34 = arith.constant 34 : index
    %c0_80 = arith.constant 0 : index
    %65 = vector.load %arg7[%c34, %c0_80] : memref<448x128xbf16, #tpu.memory_space<vmem>>, vector<224x128xbf16>
    %c8 = arith.constant 8 : index
    %c0_81 = arith.constant 0 : index
    %c0_82 = arith.constant 0 : index
    %66 = vector.load %arg4[%c8, %c0_81, %c0_82] : memref<9x128x128xbf16, #tpu.memory_space<vmem>>, vector<1x128x128xbf16>
    %67 = vector.shape_cast %66 : vector<1x128x128xbf16> to vector<128x128xbf16>
    %cst_83 = arith.constant dense<0.000000e+00> : vector<224x128xf32>
    %68 = tpu.matmul %65, %67, %cst_83 {dimension_numbers = #tpu.dot_dimension_numbers<[1], [0], [0], [1], [0, 0, 1, 1], [], []>} : vector<224x128xbf16>, vector<128x128xbf16>, vector<224x128xf32> -> vector<224x128xf32>
    %69 = arith.addf %64, %68 : vector<224x128xf32>
    %c0_84 = arith.constant 0 : index
    %c0_85 = arith.constant 0 : index
    %70 = vector.load %arg8[%c0_84, %c0_85] : memref<224x128xf32, #tpu.memory_space<vmem>>, vector<224x128xf32>
    tpu.vector_store %arg8[%c0_84, %c0_85], %69 {strides = array<i32>} : memref<224x128xf32, #tpu.memory_space<vmem>>, vector<224x128xf32>,
    %c0_86 = arith.constant 0 : index
    %c0_87 = arith.constant 0 : index
    %71 = vector.load %arg8[%c0_86, %c0_87] : memref<224x128xf32, #tpu.memory_space<vmem>>, vector<224x128xf32>
    %72 = arith.truncf %71 : vector<224x128xf32> to vector<224x128xbf16>
    %c0_88 = arith.constant 0 : index
    %c0_89 = arith.constant 0 : index
    %c0_90 = arith.constant 0 : index
    %73 = vector.load %arg5[%c0_88, %c0_89, %c0_90] : memref<1x224x128xbf16, #tpu.memory_space<vmem>>, vector<1x224x128xbf16>
    %74 = vector.shape_cast %73 : vector<1x224x128xbf16> to vector<224x128xbf16>
    %75 = vector.shape_cast %72 : vector<224x128xbf16> to vector<1x224x128xbf16>
    tpu.vector_store %arg5[%c0_88, %c0_89, %c0_90], %75 {strides = array<i32>} : memref<1x224x128xbf16, #tpu.memory_space<vmem>>, vector<1x224x128xbf16>,
    %c224_i32 = arith.constant 224 : i32
    %76 = arith.muli %arg1, %c224_i32 : i32
    %77 = tpu.iota {dimensions = array<i32: 0>} : vector<224x1xi32>
    %78 = vector.broadcast %76 : i32 to vector<224x1xi32>
    %79 = arith.addi %78, %77 : vector<224x1xi32>
    %c224_i32_91 = arith.constant 224 : i32
    %80 = vector.broadcast %c224_i32_91 : i32 to vector<224x1xi32>
    %81 = arith.cmpi slt, %79, %80 : vector<224x1xi32>
    %c16_i32 = arith.constant 16 : i32
    %c0_i32 = arith.constant 0 : i32
    %82 = arith.cmpi eq, %c16_i32, %c0_i32 : i32
    %c1_i32 = arith.constant 1 : i32
    %83 = arith.select %82, %c1_i32, %c16_i32 : i32
    %84 = vector.broadcast %83 : i32 to vector<224x1xi32>
    %85 = arith.remsi %79, %84 : vector<224x1xi32>
    %c0_i32_92 = arith.constant 0 : i32
    %86 = vector.broadcast %c0_i32_92 : i32 to vector<224x1xi32>
    %87 = arith.cmpi ne, %85, %86 : vector<224x1xi32>
    %c0_i32_93 = arith.constant 0 : i32
    %88 = vector.broadcast %c0_i32_93 : i32 to vector<224x1xi32>
    %89 = arith.cmpi slt, %85, %88 : vector<224x1xi32>
    %c0_i32_94 = arith.constant 0 : i32
    %90 = arith.cmpi slt, %83, %c0_i32_94 : i32
    %91 = vector.broadcast %90 : i1 to vector<224x1xi1>
    %92 = vector.broadcast %91 : vector<224x1xi1> to vector<224x1xi1>
    %93 = arith.xori %89, %92 : vector<224x1xi1>
    %94 = arith.andi %93, %87 : vector<224x1xi1>
    %95 = vector.broadcast %83 : i32 to vector<224x1xi32>
    %96 = arith.addi %85, %95 : vector<224x1xi32>
    %97 = arith.select %94, %96, %85 : vector<224x1xi1>, vector<224x1xi32>
    %c14_i32 = arith.constant 14 : i32
    %98 = vector.broadcast %c14_i32 : i32 to vector<224x1xi32>
    %99 = arith.cmpi slt, %97, %98 : vector<224x1xi32>
    %100 = arith.andi %81, %99 : vector<224x1xi1>
    %cst_95 = arith.constant 0.000000e+00 : f32
    %101 = vector.shape_cast %100 : vector<224x1xi1> to vector<224x1xi1>
    %102 = vector.broadcast %101 : vector<224x1xi1> to vector<224x128xi1>
    %103 = vector.broadcast %cst_95 : f32 to vector<224x128xf32>
    %104 = arith.select %102, %71, %103 : vector<224x128xi1>, vector<224x128xf32>
    %cst_96 = arith.constant dense<0.000000e+00> : vector<128xf32>
    %105 = vector.multi_reduction <add>, %104, %cst_96 [0] : vector<224x128xf32> to vector<128xf32>
    %106 = vector.shape_cast %105 : vector<128xf32> to vector<1x128xf32>
    %107 = arith.mulf %104, %104 : vector<224x128xf32>
    %cst_97 = arith.constant dense<0.000000e+00> : vector<128xf32>
    %108 = vector.multi_reduction <add>, %107, %cst_97 [0] : vector<224x128xf32> to vector<128xf32>
    %109 = vector.shape_cast %108 : vector<128xf32> to vector<1x128xf32>
    %110 = tpu.iota {dimensions = array<i32: 0>} : vector<8x128xi32>
    %c0_i32_98 = arith.constant 0 : i32
    %111 = vector.broadcast %c0_i32_98 : i32 to vector<8x128xi32>
    %112 = arith.cmpi eq, %110, %111 : vector<8x128xi32>
    %cst_99 = arith.constant 0.000000e+00 : f32
    %113 = vector.shape_cast %106 : vector<1x128xf32> to vector<1x128xf32>
    %114 = vector.broadcast %113 : vector<1x128xf32> to vector<8x128xf32>
    %115 = vector.broadcast %cst_99 : f32 to vector<8x128xf32>
    %116 = arith.select %112, %114, %115 : vector<8x128xi1>, vector<8x128xf32>
    %c1_i32_100 = arith.constant 1 : i32
    %117 = vector.broadcast %c1_i32_100 : i32 to vector<8x128xi32>
    %118 = arith.cmpi eq, %110, %117 : vector<8x128xi32>
    %cst_101 = arith.constant 0.000000e+00 : f32
    %119 = vector.shape_cast %109 : vector<1x128xf32> to vector<1x128xf32>
    %120 = vector.broadcast %119 : vector<1x128xf32> to vector<8x128xf32>
    %121 = vector.broadcast %cst_101 : f32 to vector<8x128xf32>
    %122 = arith.select %118, %120, %121 : vector<8x128xi1>, vector<8x128xf32>
    %123 = arith.addf %116, %122 : vector<8x128xf32>
    %c0_102 = arith.constant 0 : index
    %c0_103 = arith.constant 0 : index
    %c0_104 = arith.constant 0 : index
    %c0_105 = arith.constant 0 : index
    %124 = vector.load %arg6[%c0_102, %c0_103, %c0_104, %c0_105] : memref<1x1x8x128xf32, #tpu.memory_space<vmem>>, vector<1x1x8x128xf32>
    %125 = vector.shape_cast %124 : vector<1x1x8x128xf32> to vector<8x128xf32>
    %126 = vector.shape_cast %123 : vector<8x128xf32> to vector<1x1x8x128xf32>
    tpu.vector_store %arg6[%c0_102, %c0_103, %c0_104, %c0_105], %126 {strides = array<i32>} : memref<1x1x8x128xf32, #tpu.memory_space<vmem>>, vector<1x1x8x128xf32>,
    return
  }
  func.func @transform_0(%arg0: i32, %arg1: i32) -> (i32, i32, i32) {
    %c0_i32 = arith.constant 0 : i32
    %c0_i32_0 = arith.constant 0 : i32
    return %arg0, %arg1, %c0_i32 : i32, i32, i32
  }
  func.func @transform_1(%arg0: i32, %arg1: i32) -> (i32, i32, i32) {
    %c1_i32 = arith.constant 1 : i32
    %0 = arith.addi %arg1, %c1_i32 : i32
    %c0_i32 = arith.constant 0 : i32
    %c0_i32_0 = arith.constant 0 : i32
    return %arg0, %0, %c0_i32 : i32, i32, i32
  }
  func.func @transform_2(%arg0: i32, %arg1: i32) -> (i32, i32, i32) {
    %c0_i32 = arith.constant 0 : i32
    %c0_i32_0 = arith.constant 0 : i32
    %c0_i32_1 = arith.constant 0 : i32
    %c0_i32_2 = arith.constant 0 : i32
    return %c0_i32, %c0_i32_0, %c0_i32_1 : i32, i32, i32
  }
  func.func @transform_3(%arg0: i32, %arg1: i32) -> (i32, i32, i32) {
    %c0_i32 = arith.constant 0 : i32
    %c0_i32_0 = arith.constant 0 : i32
    return %arg0, %arg1, %c0_i32 : i32, i32, i32
  }
  func.func @transform_4(%arg0: i32, %arg1: i32) -> (i32, i32, i32, i32) {
    %c0_i32 = arith.constant 0 : i32
    %c0_i32_0 = arith.constant 0 : i32
    %c0_i32_1 = arith.constant 0 : i32
    return %arg0, %arg1, %c0_i32, %c0_i32_0 : i32, i32, i32, i32
  }
}

</mosaic_0001>

<llo_original>
// kernel: tpu_custom_call.1
$region0: #{tpu_custom_call.1}
  #allocation0 [shape = 'u32[]', space=smem, size = 0x4, offset = 0x4, fixed_abs, tag = 'smem constant byte address 0x4 - core index']
  #allocation1 [shape = 'u32[144,128]{1,0:T(1,128)}', space=vmem, size = 0x12000, scoped, tag = 'internal scratch']
  #allocation2 [shape = 'bf16[448,128]{1,0:T(16,128)(2,1)}', space=vmem, size = 0x1c000, scoped, tag = 'scratch operand']
  #allocation3 [shape = 'f32[224,128]{1,0:T(8,128)}', space=vmem, size = 0x1c000, scoped, tag = 'scratch operand']
  %s0 = inlined_call_operand.hbm [shape: bf16[2,448,128], index: 0, kind: input, shape index: {}]
  %s1 = inlined_call_operand.hbm [shape: bf16[2,448,128], index: 1, kind: input, shape index: {}]
  %s2 = inlined_call_operand.hbm [shape: bf16[9,128,128], index: 2, kind: input, shape index: {}]
  %s3 = inlined_call_operand.hbm [shape: bf16[2,224,128], index: 3, kind: output, shape index: {0}]
  %s4 = inlined_call_operand.hbm [shape: f32[2,1,8,128], index: 4, kind: output, shape index: {1}]
  %5 = xla_tuple %s3, %s4
  %s6 = sld [smem:[#allocation0]]
  $region65: #{tpu_custom_call.1} parent=0
    _
  %s8 = ssub.s32 1, %s6
  %s9 = scalar_select 0, %s8, %s6
  $region1: #{tpu_custom_call.1} parent=0
    #allocation4 [shape = 'u8[114688]{0}', space=vmem, size = 0x1c000, scoped, tag = 'input window, operand 0']
    #allocation5 [shape = 's32[2]{0}', space=sflag, size = 0x8, scoped, tag = 'scoped memory for tpu_custom_call.1']
    #allocation6 [shape = 's32[2]{0}', space=sflag, size = 0x8, scoped, tag = 'scoped memory for tpu_custom_call.1']
    #allocation7 [shape = 'u8[114688]{0}', space=vmem, size = 0x1c000, scoped, tag = 'input window, operand 1']
    #allocation8 [shape = 's32[2]{0}', space=sflag, size = 0x8, scoped, tag = 'scoped memory for tpu_custom_call.1']
    #allocation9 [shape = 'u8[294912]{0}', space=vmem, size = 0x48000, scoped, tag = 'input window, operand 2, single buffered']
    #allocation10 [shape = 'u8[114688]{0}', space=vmem, size = 0x1c000, scoped, tag = 'output window, operand 0']
    #allocation11 [shape = 'u8[8192]{0}', space=vmem, size = 0x2000, scoped, tag = 'output window, operand 1']
    #allocation12 [shape = 's32[2]{0}', space=sflag, size = 0x8, scoped, tag = 'scoped memory for tpu_custom_call.1']
    %10 = vsyncpa [#allocation5], 0
    %s11 = scalar_lea.sflag [#allocation5], 1
    %12 = vsyncpa %s11, 0
    %13 = vsyncpa [#allocation8], 0
    %s14 = scalar_lea.sflag [#allocation8], 1
    %15 = vsyncpa %s14, 0
    %16 = vsyncpa [#allocation6], 0
    %s17 = scalar_lea.sflag [#allocation6], 1
    %18 = vsyncpa %s17, 0
    %19 = vsyncpa [#allocation12], 0
    %s20 = scalar_lea.sflag [#allocation12], 1
    %21 = vsyncpa %s20, 0
    loop: start=0, step=1, limit=4
    $region2: #{tpu_custom_call.1} parent=1 // loop_pre_header
      _
    $region3: #{tpu_custom_call.1} parent=1 // loop_header
      %s23 = sphi 0, %s27
      %p24 = scmp.ge.s32.totalorder %s23, 4
      %s30 = sphi 0, %s42
      %s31 = sphi 0, %s38
      %s32 = sphi 0, %s30
      %s33 = sphi 0, %s31
      %s34 = sphi 0, %s32
      %s35 = sphi 0, %s33
      %s47 = sphi 0, %s49
      %s50 = sphi 0, %s47
      %s51 = sphi 0, %s50
      %s67 = sphi 0, %s51
      %s77 = sphi 0, %s79
      %s80 = sphi 0, %s77
      %s81 = sphi 0, %s80
      %s97 = sphi 0, %s81
      %s101 = sphi 0, %s101
      %s103 = sphi 0, %s101
      %s104 = sphi 0, %s103
      %s118 = sphi 0, %s104
      %s126 = sphi 0, %s128
      %s129 = sphi 0, %s126
      %s130 = sphi 0, %s129
      %s146 = sphi 0, %s130
      %s154 = sphi 0, %s156
      %s157 = sphi 0, %s154
      %s158 = sphi 0, %s157
      %s174 = sphi 0, %s158
    $region4: #{tpu_custom_call.1} parent=1 // loop_header_branch
      %26 = sbr.rel (%p24) target = $region8
    $region5: #{tpu_custom_call.1} parent=1 // loop_body
      %s28 = ssub.s32 %s23, 1
      %s29 = ssub.s32 %s23, 2
      %s36 = sadd.s32 1, %s31
      %p37 = scmp.ge.s32.totalorder %s36, 1
      %s38 = scalar_select %p37, 0, %s36
      %s39 = sadd.s32 1, %s30
      %s40 = scalar_select %p37, %s39, %s30
      %p41 = scmp.ge.s32.totalorder %s40, 2
      %s42 = scalar_select %p41, 0, %s40
      %s43 = ssub.s32 %s30, %s42
      %s44 = ssub.s32 %s31, %s38
      %s45 = sor.u32 %s43, %s44
      %p46 = scmp.eq.s32.totalorder %s45, 0
      %s48 = sadd.s32 %s47, 1
      %s49 = scalar_select %p46, %s47, %s48
      %p52 = pneg %p46
      %p53 = scmp.eq.s32.totalorder %s23, 1
      %p54 = por %p52, %p53
      %p55 = scmp.ne.s32.totalorder %s47, %s50
      %p56 = scmp.eq.s32.totalorder %s23, 0
      %p57 = por %p55, %p56
      %p58 = scmp.ne.s32.totalorder %s47, %s50
      %p59 = scmp.eq.s32.totalorder %s28, 1
      %p60 = por %p58, %p59
      %p61 = scmp.ne.s32.totalorder %s50, %s51
      %p62 = scmp.eq.s32.totalorder %s28, 0
      %p63 = por %p61, %p62
      %p64 = scmp.ne.s32.totalorder %s50, %s51
      %p65 = scmp.eq.s32.totalorder %s29, 1
      %p66 = por %p64, %p65
      %p68 = scmp.ne.s32.totalorder %s51, %s67
      %p69 = scmp.eq.s32.totalorder %s29, 0
      %p70 = por %p68, %p69
      %s71 = sadd.s32 %s31, 1
      %s72 = sadd.s32 %s38, 1
      %s73 = ssub.s32 %s30, %s42
      %s74 = ssub.s32 %s71, %s72
      %s75 = sor.u32 %s73, %s74
      %p76 = scmp.eq.s32.totalorder %s75, 0
      %s78 = sadd.s32 %s77, 1
      %s79 = scalar_select %p76, %s77, %s78
      %p82 = pneg %p76
      %p83 = scmp.eq.s32.totalorder %s23, 1
      %p84 = por %p82, %p83
      %p85 = scmp.ne.s32.totalorder %s77, %s80
      %p86 = scmp.eq.s32.totalorder %s23, 0
      %p87 = por %p85, %p86
      %p88 = scmp.ne.s32.totalorder %s77, %s80
      %p89 = scmp.eq.s32.totalorder %s28, 1
      %p90 = por %p88, %p89
      %p91 = scmp.ne.s32.totalorder %s80, %s81
      %p92 = scmp.eq.s32.totalorder %s28, 0
      %p93 = por %p91, %p92
      %p94 = scmp.ne.s32.totalorder %s80, %s81
      %p95 = scmp.eq.s32.totalorder %s29, 1
      %p96 = por %p94, %p95
      %p98 = scmp.ne.s32.totalorder %s81, %s97
      %p99 = scmp.eq.s32.totalorder %s29, 0
      %p100 = por %p98, %p99
      %s102 = sadd.s32 %s101, 1
      %p105 = scmp.eq.s32.totalorder %s23, 1
      %p106 = scmp.ne.s32.totalorder %s101, %s103
      %p107 = scmp.eq.s32.totalorder %s23, 0
      %p108 = por %p106, %p107
      %p109 = scmp.ne.s32.totalorder %s101, %s103
      %p110 = scmp.eq.s32.totalorder %s28, 1
      %p111 = por %p109, %p110
      %p112 = scmp.ne.s32.totalorder %s103, %s104
      %p113 = scmp.eq.s32.totalorder %s28, 0
      %p114 = por %p112, %p113
      %p115 = scmp.ne.s32.totalorder %s103, %s104
      %p116 = scmp.eq.s32.totalorder %s29, 1
      %p117 = por %p115, %p116
      %p119 = scmp.ne.s32.totalorder %s104, %s118
      %p120 = scmp.eq.s32.totalorder %s29, 0
      %p121 = por %p119, %p120
      %s122 = ssub.s32 %s30, %s42
      %s123 = ssub.s32 %s31, %s38
      %s124 = sor.u32 %s122, %s123
      %p125 = scmp.eq.s32.totalorder %s124, 0
      %s127 = sadd.s32 %s126, 1
      %s128 = scalar_select %p125, %s126, %s127
      %p131 = pneg %p125
      %p132 = scmp.eq.s32.totalorder %s23, 1
      %p133 = por %p131, %p132
      %p134 = scmp.ne.s32.totalorder %s126, %s129
      %p135 = scmp.eq.s32.totalorder %s23, 0
      %p136 = por %p134, %p135
      %p137 = scmp.ne.s32.totalorder %s126, %s129
      %p138 = scmp.eq.s32.totalorder %s28, 1
      %p139 = por %p137, %p138
      %p140 = scmp.ne.s32.totalorder %s129, %s130
      %p141 = scmp.eq.s32.totalorder %s28, 0
      %p142 = por %p140, %p141
      %p143 = scmp.ne.s32.totalorder %s129, %s130
      %p144 = scmp.eq.s32.totalorder %s29, 1
      %p145 = por %p143, %p144
      %p147 = scmp.ne.s32.totalorder %s130, %s146
      %p148 = scmp.eq.s32.totalorder %s29, 0
      %p149 = por %p147, %p148
      %s150 = ssub.s32 %s30, %s42
      %s151 = ssub.s32 %s31, %s38
      %s152 = sor.u32 %s150, %s151
      %p153 = scmp.eq.s32.totalorder %s152, 0
      %s155 = sadd.s32 %s154, 1
      %s156 = scalar_select %p153, %s154, %s155
      %p159 = pneg %p153
      %p160 = scmp.eq.s32.totalorder %s23, 1
      %p161 = por %p159, %p160
      %p162 = scmp.ne.s32.totalorder %s154, %s157
      %p163 = scmp.eq.s32.totalorder %s23, 0
      %p164 = por %p162, %p163
      %p165 = scmp.ne.s32.totalorder %s154, %s157
      %p166 = scmp.eq.s32.totalorder %s28, 1
      %p167 = por %p165, %p166
      %p168 = scmp.ne.s32.totalorder %s157, %s158
      %p169 = scmp.eq.s32.totalorder %s28, 0
      %p170 = por %p168, %p169
      %p171 = scmp.ne.s32.totalorder %s157, %s158
      %p172 = scmp.eq.s32.totalorder %s29, 1
      %p173 = por %p171, %p172
      %p175 = scmp.ne.s32.totalorder %s158, %s174
      %p176 = scmp.eq.s32.totalorder %s29, 0
      %p177 = por %p175, %p176
      %p178 = scmp.le.s32.totalorder 1, %s23
      %p179 = scmp.lt.s32.totalorder %s23, 3
      %p180 = pnand %p178, %p179
      %p181 = pneg %p180
      // Predicated region
      $region9: #{tpu_custom_call.1} parent=5 // pred_check
        _
      $region10: #{tpu_custom_call.1} parent=5 // pred_check_branch
        %183 = sbr.rel (%p180) target = $region12
      $region11: #{tpu_custom_call.1} parent=5 // pred_region
        %s184 = ssub.s32 %s23, 1
        // Predicated region
        $region13: #{tpu_custom_call.1} parent=11 // pred_check
          %p185 = pneg %p114
        $region14: #{tpu_custom_call.1} parent=11 // pred_check_branch
          %187 = sbr.rel (%p185) target = $region16
        $region15: #{tpu_custom_call.1} parent=11 // pred_region
          %s189 = ssub.s32 9216, 9216
          %190 = vsyncadd [#allocation8], %s189
          %s191 = sshll.u32 [#allocation9], 4
          %s192 = int_to_ptr.vmem [resolvable:$true] %s191
          %197 = dma.hbm_to_vmem [thread:$0]  %s2, 9216, %s192, [#allocation8], 64, 64, 4
        $region16: #{tpu_custom_call.1} parent=11 // pred_fallthru
          _
      $region12: #{tpu_custom_call.1} parent=5 // pred_fallthru
        _
      %p198 = scmp.lt.s32.totalorder %s23, 2
      // Predicated region
      $region17: #{tpu_custom_call.1} parent=5 // pred_check
        %p199 = pneg %p198
      $region18: #{tpu_custom_call.1} parent=5 // pred_check_branch
        %201 = sbr.rel (%p199) target = $region20
      $region19: #{tpu_custom_call.1} parent=5 // pred_region
        // Predicated region
        $region21: #{tpu_custom_call.1} parent=19 // pred_check
          %p202 = pneg %p57
        $region22: #{tpu_custom_call.1} parent=19 // pred_check_branch
          %204 = sbr.rel (%p202) target = $region24
        $region23: #{tpu_custom_call.1} parent=19 // pred_region
          %s205 = sand.u32 %s47, 1
          %s206 = scalar_lea.sflag [#allocation5], %s205
          %s207 = sand.u32 %s47, 1
          %s208 = smul.addr %s207, 112
          %s209 = scalar_lea.vmem [#allocation4], %s208
          %s210 = smul.u32 28, %s31
          %s212 = ssub.s32 1792, 1792
          %213 = vsyncadd %s206, %s212
          %s214 = smul.addr %s30, 56
          %s215 = sadd.s32 %s210, %s214
          %s216 = smul.addr %s215, 64
          %s217 = scalar_lea.hbm %s0, %s216
          %s218 = sshll.u32 %s209, 4
          %s219 = int_to_ptr.vmem [resolvable:$true] %s218
          %224 = dma.hbm_to_vmem [thread:$0]  %s217, 1792, %s219, %s206, 64, 64, 4
        $region24: #{tpu_custom_call.1} parent=19 // pred_fallthru
          _
        // Predicated region
        $region25: #{tpu_custom_call.1} parent=19 // pred_check
          %p225 = pneg %p87
        $region26: #{tpu_custom_call.1} parent=19 // pred_check_branch
          %227 = sbr.rel (%p225) target = $region28
        $region27: #{tpu_custom_call.1} parent=19 // pred_region
          %s228 = sand.u32 %s23, 1
          %s229 = scalar_lea.sflag [#allocation8], %s228
          %s230 = sand.u32 %s77, 1
          %s231 = smul.addr %s230, 112
          %s232 = scalar_lea.vmem [#allocation7], %s231
          %s233 = sadd.s32 %s31, 1
          %s234 = smul.u32 28, %s233
          %s236 = ssub.s32 1792, 1792
          %237 = vsyncadd %s229, %s236
          %s238 = smul.addr %s30, 56
          %s239 = sadd.s32 %s234, %s238
          %s240 = smul.addr %s239, 64
          %s241 = scalar_lea.hbm %s1, %s240
          %s242 = sshll.u32 %s232, 4
          %s243 = int_to_ptr.vmem [resolvable:$true] %s242
          %248 = dma.hbm_to_vmem [thread:$0]  %s241, 1792, %s243, %s229, 64, 64, 4
        $region28: #{tpu_custom_call.1} parent=19 // pred_fallthru
          _
      $region20: #{tpu_custom_call.1} parent=5 // pred_fallthru
        _
      %p249 = scmp.le.s32.totalorder 1, %s23
      %p250 = scmp.lt.s32.totalorder %s23, 3
      %p251 = pnand %p249, %p250
      %p252 = pneg %p251
      // Predicated region
      $region29: #{tpu_custom_call.1} parent=5 // pred_check
        _
      $region30: #{tpu_custom_call.1} parent=5 // pred_check_branch
        %254 = sbr.rel (%p251) target = $region32
      $region31: #{tpu_custom_call.1} parent=5 // pred_region
        %s255 = ssub.s32 %s23, 1
        %s256 = sand.u32 %s50, 1
        %s257 = scalar_lea.sflag [#allocation5], %s256
        %s258 = sand.u32 %s50, 1
        %s259 = smul.addr %s258, 112
        %s260 = scalar_lea.vmem [#allocation4], %s259
        // Predicated region
        $region33: #{tpu_custom_call.1} parent=31 // pred_check
          %p261 = pneg %p63
        $region34: #{tpu_custom_call.1} parent=31 // pred_check_branch
          %263 = sbr.rel (%p261) target = $region36
        $region35: #{tpu_custom_call.1} parent=31 // pred_region
          %264 = dma.done %s257, 1792
        $region36: #{tpu_custom_call.1} parent=31 // pred_fallthru
          _
        %s265 = sand.u32 %s28, 1
        %s266 = scalar_lea.sflag [#allocation8], %s265
        %s267 = sand.u32 %s80, 1
        %s268 = smul.addr %s267, 112
        %s269 = scalar_lea.vmem [#allocation7], %s268
        // Predicated region
        $region37: #{tpu_custom_call.1} parent=31 // pred_check
          %p270 = pneg %p93
        $region38: #{tpu_custom_call.1} parent=31 // pred_check_branch
          %272 = sbr.rel (%p270) target = $region40
        $region39: #{tpu_custom_call.1} parent=31 // pred_region
          %273 = dma.done %s266, 1792
        $region40: #{tpu_custom_call.1} parent=31 // pred_fallthru
          _
        // Predicated region
        $region41: #{tpu_custom_call.1} parent=31 // pred_check
          %p274 = pneg %p114
        $region42: #{tpu_custom_call.1} parent=31 // pred_check_branch
          %276 = sbr.rel (%p274) target = $region44
        $region43: #{tpu_custom_call.1} parent=31 // pred_region
          %277 = dma.done [#allocation8], 9216
        $region44: #{tpu_custom_call.1} parent=31 // pred_fallthru
          _
        %s278 = sand.u32 %s50, 1
        %s279 = scalar_lea.sflag [#allocation5], %s278
        %s280 = sand.u32 %s50, 1
        %s281 = smul.addr %s280, 112
        %s282 = scalar_lea.vmem [#allocation4], %s281
        %p283 = pneg %p63
        %p284 = pneg %p60
        %s285 = sand.u32 %s28, 1
        %s286 = scalar_lea.sflag [#allocation8], %s285
        %s287 = sand.u32 %s80, 1
        %s288 = smul.addr %s287, 112
        %s289 = scalar_lea.vmem [#allocation7], %s288
        %p290 = pneg %p93
        %p291 = pneg %p90
        %p292 = pneg %p114
        %p293 = pneg %p111
        %p294 = pneg %p142
        %p295 = pneg %p139
        %s296 = sand.u32 %s129, 1
        %s297 = scalar_lea.sflag [#allocation6], %s296
        %s298 = sand.u32 %s129, 1
        %s299 = smul.addr %s298, 112
        %s300 = scalar_lea.vmem [#allocation10], %s299
        %p301 = pneg %p170
        %p302 = pneg %p167
        %s303 = sand.u32 %s157, 1
        %s304 = scalar_lea.sflag [#allocation12], %s303
        %s305 = sand.u32 %s157, 1
        %s306 = smul.addr %s305, 8
        %s307 = scalar_lea.vmem [#allocation11], %s306
        %s308 = smul.u32 28, %s33
        %s309 = sadd.s32 %s33, 1
        %s310 = smul.u32 28, %s309
        %s311 = smul.u32 28, %s33
        %v313 = vld [vmem:[%s260] sm:$0xf]
        %v314 = vld [vmem:[%s260 + $0x4] sm:$0xf]
        %v315 = vld [vmem:[%s260 + $0x8] sm:$0xf]
        %v316 = vld [vmem:[%s260 + $0xc] sm:$0xf]
        %v317 = vld [vmem:[%s260 + $0x10] sm:$0xf]
        %v318 = vld [vmem:[%s260 + $0x14] sm:$0xf]
        %v319 = vld [vmem:[%s260 + $0x18] sm:$0xf]
        %v320 = vld [vmem:[%s260 + $0x1c] sm:$0xf]
        %v321 = vld [vmem:[%s260 + $0x20] sm:$0xf]
        %v322 = vld [vmem:[%s260 + $0x24] sm:$0xf]
        %v323 = vld [vmem:[%s260 + $0x28] sm:$0xf]
        %v324 = vld [vmem:[%s260 + $0x2c] sm:$0xf]
        %v325 = vld [vmem:[%s260 + $0x30] sm:$0xf]
        %v326 = vld [vmem:[%s260 + $0x34] sm:$0xf]
        %v327 = vld [vmem:[%s260 + $0x38] sm:$0xf]
        %v328 = vld [vmem:[%s260 + $0x3c] sm:$0xf]
        %v329 = vld [vmem:[%s260 + $0x40] sm:$0xf]
        %v330 = vld [vmem:[%s260 + $0x44] sm:$0xf]
        %v331 = vld [vmem:[%s260 + $0x48] sm:$0xf]
        %v332 = vld [vmem:[%s260 + $0x4c] sm:$0xf]
        %v333 = vld [vmem:[%s260 + $0x50] sm:$0xf]
        %v334 = vld [vmem:[%s260 + $0x54] sm:$0xf]
        %v335 = vld [vmem:[%s260 + $0x58] sm:$0xf]
        %v336 = vld [vmem:[%s260 + $0x5c] sm:$0xf]
        %v337 = vld [vmem:[%s260 + $0x60] sm:$0xf]
        %v338 = vld [vmem:[%s260 + $0x64] sm:$0xf]
        %v339 = vld [vmem:[%s260 + $0x68] sm:$0xf]
        %v340 = vld [vmem:[%s260 + $0x6c] sm:$0xf]
        %v369 = vunpack.c.l.b16 %v313
        %v370 = vunpack.c.l.b16 %v314
        %v371 = vunpack.c.l.b16 %v315
        %v372 = vunpack.c.l.b16 %v316
        %v373 = vunpack.c.l.b16 %v317
        %v374 = vunpack.c.l.b16 %v318
        %v375 = vunpack.c.l.b16 %v319
        %v376 = vunpack.c.l.b16 %v320
        %v377 = vunpack.c.l.b16 %v321
        %v378 = vunpack.c.l.b16 %v322
        %v379 = vunpack.c.l.b16 %v323
        %v380 = vunpack.c.l.b16 %v324
        %v381 = vunpack.c.l.b16 %v325
        %v382 = vunpack.c.l.b16 %v326
        %v383 = vunpack.c.l.b16 %v327
        %v384 = vunpack.c.l.b16 %v328
        %v385 = vunpack.c.l.b16 %v329
        %v386 = vunpack.c.l.b16 %v330
        %v387 = vunpack.c.l.b16 %v331
        %v388 = vunpack.c.l.b16 %v332
        %v389 = vunpack.c.l.b16 %v333
        %v390 = vunpack.c.l.b16 %v334
        %v391 = vunpack.c.l.b16 %v335
        %v392 = vunpack.c.l.b16 %v336
        %v393 = vunpack.c.l.b16 %v337
        %v394 = vunpack.c.l.b16 %v338
        %v395 = vunpack.c.l.b16 %v339
        %v396 = vunpack.c.l.b16 %v340
        %v397 = vpack.c.b16 %v370, %v369
        %v398 = vpack.c.b16 %v372, %v371
        %v399 = vpack.c.b16 %v374, %v373
        %v400 = vpack.c.b16 %v376, %v375
        %v401 = vpack.c.b16 %v378, %v377
        %v402 = vpack.c.b16 %v380, %v379
        %v403 = vpack.c.b16 %v382, %v381
        %v404 = vpack.c.b16 %v384, %v383
        %v405 = vpack.c.b16 %v386, %v385
        %v406 = vpack.c.b16 %v388, %v387
        %v407 = vpack.c.b16 %v390, %v389
        %v408 = vpack.c.b16 %v392, %v391
        %v409 = vpack.c.b16 %v394, %v393
        %v410 = vpack.c.b16 %v396, %v395
        %425 = vst [vmem:[#allocation2] sm:$0xff] %v397
        %426 = vst [vmem:[#allocation2 + $0x8] sm:$0xff] %v398
        %427 = vst [vmem:[#allocation2 + $0x10] sm:$0xff] %v399
        %428 = vst [vmem:[#allocation2 + $0x18] sm:$0xff] %v400
        %429 = vst [vmem:[#allocation2 + $0x20] sm:$0xff] %v401
        %430 = vst [vmem:[#allocation2 + $0x28] sm:$0xff] %v402
        %431 = vst [vmem:[#allocation2 + $0x30] sm:$0xff] %v403
        %432 = vst [vmem:[#allocation2 + $0x38] sm:$0xff] %v404
        %433 = vst [vmem:[#allocation2 + $0x40] sm:$0xff] %v405
        %434 = vst [vmem:[#allocation2 + $0x48] sm:$0xff] %v406
        %435 = vst [vmem:[#allocation2 + $0x50] sm:$0xff] %v407
        %436 = vst [vmem:[#allocation2 + $0x58] sm:$0xff] %v408
        %437 = vst [vmem:[#allocation2 + $0x60] sm:$0xff] %v409
        %438 = vst [vmem:[#allocation2 + $0x68] sm:$0xff] %v410
        %v439 = vld [vmem:[%s269] sm:$0xf]
        %v440 = vld [vmem:[%s269 + $0x4] sm:$0xf]
        %v441 = vld [vmem:[%s269 + $0x8] sm:$0xf]
        %v442 = vld [vmem:[%s269 + $0xc] sm:$0xf]
        %v443 = vld [vmem:[%s269 + $0x10] sm:$0xf]
        %v444 = vld [vmem:[%s269 + $0x14] sm:$0xf]
        %v445 = vld [vmem:[%s269 + $0x18] sm:$0xf]
        %v446 = vld [vmem:[%s269 + $0x1c] sm:$0xf]
        %v447 = vld [vmem:[%s269 + $0x20] sm:$0xf]
        %v448 = vld [vmem:[%s269 + $0x24] sm:$0xf]
        %v449 = vld [vmem:[%s269 + $0x28] sm:$0xf]
        %v450 = vld [vmem:[%s269 + $0x2c] sm:$0xf]
        %v451 = vld [vmem:[%s269 + $0x30] sm:$0xf]
        %v452 = vld [vmem:[%s269 + $0x34] sm:$0xf]
        %v453 = vld [vmem:[%s269 + $0x38] sm:$0xf]
        %v454 = vld [vmem:[%s269 + $0x3c] sm:$0xf]
        %v455 = vld [vmem:[%s269 + $0x40] sm:$0xf]
        %v456 = vld [vmem:[%s269 + $0x44] sm:$0xf]
        %v457 = vld [vmem:[%s269 + $0x48] sm:$0xf]
        %v458 = vld [vmem:[%s269 + $0x4c] sm:$0xf]
        %v459 = vld [vmem:[%s269 + $0x50] sm:$0xf]
        %v460 = vld [vmem:[%s269 + $0x54] sm:$0xf]
        %v461 = vld [vmem:[%s269 + $0x58] sm:$0xf]
        %v462 = vld [vmem:[%s269 + $0x5c] sm:$0xf]
        %v463 = vld [vmem:[%s269 + $0x60] sm:$0xf]
        %v464 = vld [vmem:[%s269 + $0x64] sm:$0xf]
        %v465 = vld [vmem:[%s269 + $0x68] sm:$0xf]
        %v466 = vld [vmem:[%s269 + $0x6c] sm:$0xf]
        %v495 = vunpack.c.l.b16 %v439
        %v496 = vunpack.c.l.b16 %v440
        %v497 = vunpack.c.l.b16 %v441
        %v498 = vunpack.c.l.b16 %v442
        %v499 = vunpack.c.l.b16 %v443
        %v500 = vunpack.c.l.b16 %v444
        %v501 = vunpack.c.l.b16 %v445
        %v502 = vunpack.c.l.b16 %v446
        %v503 = vunpack.c.l.b16 %v447
        %v504 = vunpack.c.l.b16 %v448
        %v505 = vunpack.c.l.b16 %v449
        %v506 = vunpack.c.l.b16 %v450
        %v507 = vunpack.c.l.b16 %v451
        %v508 = vunpack.c.l.b16 %v452
        %v509 = vunpack.c.l.b16 %v453
        %v510 = vunpack.c.l.b16 %v454
        %v511 = vunpack.c.l.b16 %v455
        %v512 = vunpack.c.l.b16 %v456
        %v513 = vunpack.c.l.b16 %v457
        %v514 = vunpack.c.l.b16 %v458
        %v515 = vunpack.c.l.b16 %v459
        %v516 = vunpack.c.l.b16 %v460
        %v517 = vunpack.c.l.b16 %v461
        %v518 = vunpack.c.l.b16 %v462
        %v519 = vunpack.c.l.b16 %v463
        %v520 = vunpack.c.l.b16 %v464
        %v521 = vunpack.c.l.b16 %v465
        %v522 = vunpack.c.l.b16 %v466
        %v523 = vpack.c.b16 %v496, %v495
        %v524 = vpack.c.b16 %v498, %v497
        %v525 = vpack.c.b16 %v500, %v499
        %v526 = vpack.c.b16 %v502, %v501
        %v527 = vpack.c.b16 %v504, %v503
        %v528 = vpack.c.b16 %v506, %v505
        %v529 = vpack.c.b16 %v508, %v507
        %v530 = vpack.c.b16 %v510, %v509
        %v531 = vpack.c.b16 %v512, %v511
        %v532 = vpack.c.b16 %v514, %v513
        %v533 = vpack.c.b16 %v516, %v515
        %v534 = vpack.c.b16 %v518, %v517
        %v535 = vpack.c.b16 %v520, %v519
        %v536 = vpack.c.b16 %v522, %v521
        %551 = vst [vmem:[#allocation2 + $0x70] sm:$0xff] %v523
        %552 = vst [vmem:[#allocation2 + $0x78] sm:$0xff] %v524
        %553 = vst [vmem:[#allocation2 + $0x80] sm:$0xff] %v525
        %554 = vst [vmem:[#allocation2 + $0x88] sm:$0xff] %v526
        %555 = vst [vmem:[#allocation2 + $0x90] sm:$0xff] %v527
        %556 = vst [vmem:[#allocation2 + $0x98] sm:$0xff] %v528
        %557 = vst [vmem:[#allocation2 + $0xa0] sm:$0xff] %v529
        %558 = vst [vmem:[#allocation2 + $0xa8] sm:$0xff] %v530
        %559 = vst [vmem:[#allocation2 + $0xb0] sm:$0xff] %v531
        %560 = vst [vmem:[#allocation2 + $0xb8] sm:$0xff] %v532
        %561 = vst [vmem:[#allocation2 + $0xc0] sm:$0xff] %v533
        %562 = vst [vmem:[#allocation2 + $0xc8] sm:$0xff] %v534
        %563 = vst [vmem:[#allocation2 + $0xd0] sm:$0xff] %v535
        %564 = vst [vmem:[#allocation2 + $0xd8] sm:$0xff] %v536
        %565 = vst [vmem:[#allocation3] sm:$0xff] 0.0
        %566 = vst [vmem:[#allocation3 + $0x8] sm:$0xff] 0.0
        %567 = vst [vmem:[#allocation3 + $0x10] sm:$0xff] 0.0
        %568 = vst [vmem:[#allocation3 + $0x18] sm:$0xff] 0.0
        %569 = vst [vmem:[#allocation3 + $0x20] sm:$0xff] 0.0
        %570 = vst [vmem:[#allocation3 + $0x28] sm:$0xff] 0.0
        %571 = vst [vmem:[#allocation3 + $0x30] sm:$0xff] 0.0
        %572 = vst [vmem:[#allocation3 + $0x38] sm:$0xff] 0.0
        %573 = vst [vmem:[#allocation3 + $0x40] sm:$0xff] 0.0
        %574 = vst [vmem:[#allocation3 + $0x48] sm:$0xff] 0.0
        %575 = vst [vmem:[#allocation3 + $0x50] sm:$0xff] 0.0
        %576 = vst [vmem:[#allocation3 + $0x58] sm:$0xff] 0.0
        %577 = vst [vmem:[#allocation3 + $0x60] sm:$0xff] 0.0
        %578 = vst [vmem:[#allocation3 + $0x68] sm:$0xff] 0.0
        %579 = vst [vmem:[#allocation3 + $0x70] sm:$0xff] 0.0
        %580 = vst [vmem:[#allocation3 + $0x78] sm:$0xff] 0.0
        %581 = vst [vmem:[#allocation3 + $0x80] sm:$0xff] 0.0
        %582 = vst [vmem:[#allocation3 + $0x88] sm:$0xff] 0.0
        %583 = vst [vmem:[#allocation3 + $0x90] sm:$0xff] 0.0
        %584 = vst [vmem:[#allocation3 + $0x98] sm:$0xff] 0.0
        %585 = vst [vmem:[#allocation3 + $0xa0] sm:$0xff] 0.0
        %586 = vst [vmem:[#allocation3 + $0xa8] sm:$0xff] 0.0
        %587 = vst [vmem:[#allocation3 + $0xb0] sm:$0xff] 0.0
        %588 = vst [vmem:[#allocation3 + $0xb8] sm:$0xff] 0.0
        %589 = vst [vmem:[#allocation3 + $0xc0] sm:$0xff] 0.0
        %590 = vst [vmem:[#allocation3 + $0xc8] sm:$0xff] 0.0
        %591 = vst [vmem:[#allocation3 + $0xd0] sm:$0xff] 0.0
        %592 = vst [vmem:[#allocation3 + $0xd8] sm:$0xff] 0.0
        %v593 = vld [vmem:[#allocation3] sm:$0xff]
        %v594 = vld [vmem:[#allocation3 + $0x8] sm:$0xff]
        %v595 = vld [vmem:[#allocation3 + $0x10] sm:$0xff]
        %v596 = vld [vmem:[#allocation3 + $0x18] sm:$0xff]
        %v597 = vld [vmem:[#allocation3 + $0x20] sm:$0xff]
        %v598 = vld [vmem:[#allocation3 + $0x28] sm:$0xff]
        %v599 = vld [vmem:[#allocation3 + $0x30] sm:$0xff]
        %v600 = vld [vmem:[#allocation3 + $0x38] sm:$0xff]
        %v601 = vld [vmem:[#allocation3 + $0x40] sm:$0xff]
        %v602 = vld [vmem:[#allocation3 + $0x48] sm:$0xff]
        %v603 = vld [vmem:[#allocation3 + $0x50] sm:$0xff]
        %v604 = vld [vmem:[#allocation3 + $0x58] sm:$0xff]
        %v605 = vld [vmem:[#allocation3 + $0x60] sm:$0xff]
        %v606 = vld [vmem:[#allocation3 + $0x68] sm:$0xff]
        %v607 = vld [vmem:[#allocation3 + $0x70] sm:$0xff]
        %v608 = vld [vmem:[#allocation3 + $0x78] sm:$0xff]
        %v609 = vld [vmem:[#allocation3 + $0x80] sm:$0xff]
        %v610 = vld [vmem:[#allocation3 + $0x88] sm:$0xff]
        %v611 = vld [vmem:[#allocation3 + $0x90] sm:$0xff]
        %v612 = vld [vmem:[#allocation3 + $0x98] sm:$0xff]
        %v613 = vld [vmem:[#allocation3 + $0xa0] sm:$0xff]
        %v614 = vld [vmem:[#allocation3 + $0xa8] sm:$0xff]
        %v615 = vld [vmem:[#allocation3 + $0xb0] sm:$0xff]
        %v616 = vld [vmem:[#allocation3 + $0xb8] sm:$0xff]
        %v617 = vld [vmem:[#allocation3 + $0xc0] sm:$0xff]
        %v618 = vld [vmem:[#allocation3 + $0xc8] sm:$0xff]
        %v619 = vld [vmem:[#allocation3 + $0xd0] sm:$0xff]
        %v620 = vld [vmem:[#allocation3 + $0xd8] sm:$0xff]
        %v621 = vld [vmem:[#allocation2] sm:$0xff]
        %v622 = vld [vmem:[#allocation2 + $0x8] sm:$0xff]
        %v623 = vld [vmem:[#allocation2 + $0x10] sm:$0xff]
        %v624 = vld [vmem:[#allocation2 + $0x18] sm:$0xff]
        %v625 = vld [vmem:[#allocation2 + $0x20] sm:$0xff]
        %v626 = vld [vmem:[#allocation2 + $0x28] sm:$0xff]
        %v627 = vld [vmem:[#allocation2 + $0x30] sm:$0xff]
        %v628 = vld [vmem:[#allocation2 + $0x38] sm:$0xff]
        %v629 = vld [vmem:[#allocation2 + $0x40] sm:$0xff]
        %v630 = vld [vmem:[#allocation2 + $0x48] sm:$0xff]
        %v631 = vld [vmem:[#allocation2 + $0x50] sm:$0xff]
        %v632 = vld [vmem:[#allocation2 + $0x58] sm:$0xff]
        %v633 = vld [vmem:[#allocation2 + $0x60] sm:$0xff]
        %v634 = vld [vmem:[#allocation2 + $0x68] sm:$0xff]
        %v635 = vld [vmem:[#allocation9] sm:$0xf]
        %v636 = vld [vmem:[#allocation9 + $0x4] sm:$0xf]
        %v637 = vld [vmem:[#allocation9 + $0x8] sm:$0xf]
        %v638 = vld [vmem:[#allocation9 + $0xc] sm:$0xf]
        %v639 = vld [vmem:[#allocation9 + $0x10] sm:$0xf]
        %v640 = vld [vmem:[#allocation9 + $0x14] sm:$0xf]
        %v641 = vld [vmem:[#allocation9 + $0x18] sm:$0xf]
        %v642 = vld [vmem:[#allocation9 + $0x1c] sm:$0xf]
        %v643 = vld [vmem:[#allocation9 + $0x20] sm:$0xf]
        %v644 = vld [vmem:[#allocation9 + $0x24] sm:$0xf]
        %v645 = vld [vmem:[#allocation9 + $0x28] sm:$0xf]
        %v646 = vld [vmem:[#allocation9 + $0x2c] sm:$0xf]
        %v647 = vld [vmem:[#allocation9 + $0x30] sm:$0xf]
        %v648 = vld [vmem:[#allocation9 + $0x34] sm:$0xf]
        %v649 = vld [vmem:[#allocation9 + $0x38] sm:$0xf]
        %v650 = vld [vmem:[#allocation9 + $0x3c] sm:$0xf]
        %v667 = vunpack.c.l.b16 %v635
        %v668 = vunpack.c.l.b16 %v636
        %v669 = vunpack.c.l.b16 %v637
        %v670 = vunpack.c.l.b16 %v638
        %v671 = vunpack.c.l.b16 %v639
        %v672 = vunpack.c.l.b16 %v640
        %v673 = vunpack.c.l.b16 %v641
        %v674 = vunpack.c.l.b16 %v642
        %v675 = vunpack.c.l.b16 %v643
        %v676 = vunpack.c.l.b16 %v644
        %v677 = vunpack.c.l.b16 %v645
        %v678 = vunpack.c.l.b16 %v646
        %v679 = vunpack.c.l.b16 %v647
        %v680 = vunpack.c.l.b16 %v648
        %v681 = vunpack.c.l.b16 %v649
        %v682 = vunpack.c.l.b16 %v650
        %v683 = vpack.c.b16 %v668, %v667
        %v684 = vpack.c.b16 %v670, %v669
        %v685 = vpack.c.b16 %v672, %v671
        %v686 = vpack.c.b16 %v674, %v673
        %v687 = vpack.c.b16 %v676, %v675
        %v688 = vpack.c.b16 %v678, %v677
        %v689 = vpack.c.b16 %v680, %v679
        %v690 = vpack.c.b16 %v682, %v681
        %699 = vmatprep.subr.bf16.mxu0 0
        %700 = vmatpush1.bf16.msra.mxu0 %v683
        %701 = vmatprep.subr.bf16.mxu0 0
        %702 = vmatpush1.bf16.msra.mxu0 %v684
        %703 = vmatprep.subr.bf16.mxu0 0
        %704 = vmatpush1.bf16.msra.mxu0 %v685
        %705 = vmatprep.subr.bf16.mxu0 0
        %706 = vmatpush1.bf16.msra.mxu0 %v686
        %707 = vmatprep.subr.bf16.mxu0 0
        %708 = vmatpush1.bf16.msra.mxu0 %v687
        %709 = vmatprep.subr.bf16.mxu0 0
        %710 = vmatpush1.bf16.msra.mxu0 %v688
        %711 = vmatprep.subr.bf16.mxu0 0
        %712 = vmatpush1.bf16.msra.mxu0 %v689
        %713 = vmatprep.subr.bf16.mxu0 0
        %714 = vmatpush1.bf16.msra.mxu0 %v690
        %715 = vmatprep.subr.bf16.mxu0 0
        %716 = vmatpush1.bf16.msra.mxu0 0
        %717 = vmatprep.subr.bf16.mxu0 0
        %718 = vmatpush1.bf16.msra.mxu0 0
        %719 = vmatprep.subr.bf16.mxu0 0
        %720 = vmatpush1.bf16.msra.mxu0 0
        %721 = vmatprep.subr.bf16.mxu0 0
        %722 = vmatpush1.bf16.msra.mxu0 0
        %723 = vmatprep.subr.bf16.mxu0 0
        %724 = vmatpush1.bf16.msra.mxu0 0
        %725 = vmatprep.subr.bf16.mxu0 0
        %726 = vmatpush1.bf16.msra.mxu0 0
        %727 = vmatprep.subr.bf16.mxu0 0
        %728 = vmatpush1.bf16.msra.mxu0 0
        %729 = vmatprep.subr.bf16.mxu0 0
        %730 = vmatpush1.bf16.msra.mxu0 0
        %731 = vmatprep.mubr.bf16.mxu0 0
        %732 = vmatmul.mubr.bf16.gmra.mrb[0].mxu0 %v621
        %v733 = vpop.f32.mrb[0].mxu0
        %v734 = vadd.f32 0.0, %v733
        %v735 = vpop.f32.mrb[0].mxu0
        %v736 = vpop.f32.mrb[0].mxu0
        %v737 = vadd.f32 0.0, %v736
        %v738 = vpop.f32.mrb[0].mxu0
        %739 = vmatprep.mubr.bf16.mxu0 0
        %740 = vmatmul.mubr.bf16.gmra.mrb[0].mxu0 %v622
        %v741 = vpop.f32.mrb[0].mxu0
        %v742 = vadd.f32 0.0, %v741
        %v743 = vpop.f32.mrb[0].mxu0
        %v744 = vpop.f32.mrb[0].mxu0
        %v745 = vadd.f32 0.0, %v744
        %v746 = vpop.f32.mrb[0].mxu0
        %747 = vmatprep.mubr.bf16.mxu0 0
        %748 = vmatmul.mubr.bf16.gmra.mrb[0].mxu0 %v623
        %v749 = vpop.f32.mrb[0].mxu0
        %v750 = vadd.f32 0.0, %v749
        %v751 = vpop.f32.mrb[0].mxu0
        %v752 = vpop.f32.mrb[0].mxu0
        %v753 = vadd.f32 0.0, %v752
        %v754 = vpop.f32.mrb[0].mxu0
        %755 = vmatprep.mubr.bf16.mxu0 0
        %756 = vmatmul.mubr.bf16.gmra.mrb[0].mxu0 %v624
        %v757 = vpop.f32.mrb[0].mxu0
        %v758 = vadd.f32 0.0, %v757
        %v759 = vpop.f32.mrb[0].mxu0
        %v760 = vpop.f32.mrb[0].mxu0
        %v761 = vadd.f32 0.0, %v760
        %v762 = vpop.f32.mrb[0].mxu0
        %763 = vmatprep.mubr.bf16.mxu0 0
        %764 = vmatmul.mubr.bf16.gmra.mrb[0].mxu0 %v625
        %v765 = vpop.f32.mrb[0].mxu0
        %v766 = vadd.f32 0.0, %v765
        %v767 = vpop.f32.mrb[0].mxu0
        %v768 = vpop.f32.mrb[0].mxu0
        %v769 = vadd.f32 0.0, %v768
        %v770 = vpop.f32.mrb[0].mxu0
        %771 = vmatprep.mubr.bf16.mxu0 0
        %772 = vmatmul.mubr.bf16.gmra.mrb[0].mxu0 %v626
        %v773 = vpop.f32.mrb[0].mxu0
        %v774 = vadd.f32 0.0, %v773
        %v775 = vpop.f32.mrb[0].mxu0
        %v776 = vpop.f32.mrb[0].mxu0
        %v777 = vadd.f32 0.0, %v776
        %v778 = vpop.f32.mrb[0].mxu0
        %779 = vmatprep.mubr.bf16.mxu0 0
        %780 = vmatmul.mubr.bf16.gmra.mrb[0].mxu0 %v627
        %v781 = vpop.f32.mrb[0].mxu0
        %v782 = vadd.f32 0.0, %v781
        %v783 = vpop.f32.mrb[0].mxu0
        %v784 = vpop.f32.mrb[0].mxu0
        %v785 = vadd.f32 0.0, %v784
        %v786 = vpop.f32.mrb[0].mxu0
        %787 = vmatprep.mubr.bf16.mxu0 0
        %788 = vmatmul.mubr.bf16.gmra.mrb[0].mxu0 %v628
        %v789 = vpop.f32.mrb[0].mxu0
        %v790 = vadd.f32 0.0, %v789
        %v791 = vpop.f32.mrb[0].mxu0
        %v792 = vpop.f32.mrb[0].mxu0
        %v793 = vadd.f32 0.0, %v792
        %v794 = vpop.f32.mrb[0].mxu0
        %795 = vmatprep.mubr.bf16.mxu0 0
        %796 = vmatmul.mubr.bf16.gmra.mrb[0].mxu0 %v629
        %v797 = vpop.f32.mrb[0].mxu0
        %v798 = vadd.f32 0.0, %v797
        %v799 = vpop.f32.mrb[0].mxu0
        %v800 = vpop.f32.mrb[0].mxu0
        %v801 = vadd.f32 0.0, %v800
        %v802 = vpop.f32.mrb[0].mxu0
        %803 = vmatprep.mubr.bf16.mxu0 0
        %804 = vmatmul.mubr.bf16.gmra.mrb[0].mxu0 %v630
        %v805 = vpop.f32.mrb[0].mxu0
        %v806 = vadd.f32 0.0, %v805
        %v807 = vpop.f32.mrb[0].mxu0
        %v808 = vpop.f32.mrb[0].mxu0
        %v809 = vadd.f32 0.0, %v808
        %v810 = vpop.f32.mrb[0].mxu0
        %811 = vmatprep.mubr.bf16.mxu0 0
        %812 = vmatmul.mubr.bf16.gmra.mrb[0].mxu0 %v631
        %v813 = vpop.f32.mrb[0].mxu0
        %v814 = vadd.f32 0.0, %v813
        %v815 = vpop.f32.mrb[0].mxu0
        %v816 = vpop.f32.mrb[0].mxu0
        %v817 = vadd.f32 0.0, %v816
        %v818 = vpop.f32.mrb[0].mxu0
        %819 = vmatprep.mubr.bf16.mxu0 0
        %820 = vmatmul.mubr.bf16.gmra.mrb[0].mxu0 %v632
        %v821 = vpop.f32.mrb[0].mxu0
        %v822 = vadd.f32 0.0, %v821
        %v823 = vpop.f32.mrb[0].mxu0
        %v824 = vpop.f32.mrb[0].mxu0
        %v825 = vadd.f32 0.0, %v824
        %v826 = vpop.f32.mrb[0].mxu0
        %827 = vmatprep.mubr.bf16.mxu0 0
        %828 = vmatmul.mubr.bf16.gmra.mrb[0].mxu0 %v633
        %v829 = vpop.f32.mrb[0].mxu0
        %v830 = vadd.f32 0.0, %v829
        %v831 = vpop.f32.mrb[0].mxu0
        %v832 = vpop.f32.mrb[0].mxu0
        %v833 = vadd.f32 0.0, %v832
        %v834 = vpop.f32.mrb[0].mxu0
        %835 = vmatprep.mubr.bf16.mxu0 0
        %836 = vmatmul.mubr.bf16.gmra.mrb[0].mxu0 %v634
        %v837 = vpop.f32.mrb[0].mxu0
        %v838 = vadd.f32 0.0, %v837
        %v839 = vpop.f32.mrb[0].mxu0
        %v840 = vpop.f32.mrb[0].mxu0
        %v841 = vadd.f32 0.0, %v840
        %v842 = vpop.f32.mrb[0].mxu0
        %843 = vdwg.mxu0
        %v844 = vadd.f32 %v593, %v734
        %v845 = vadd.f32 %v594, %v737
        %v846 = vadd.f32 %v595, %v742
        %v847 = vadd.f32 %v596, %v745
        %v848 = vadd.f32 %v597, %v750
        %v849 = vadd.f32 %v598, %v753
        %v850 = vadd.f32 %v599, %v758
        %v851 = vadd.f32 %v600, %v761
        %v852 = vadd.f32 %v601, %v766
        %v853 = vadd.f32 %v602, %v769
        %v854 = vadd.f32 %v603, %v774
        %v855 = vadd.f32 %v604, %v777
        %v856 = vadd.f32 %v605, %v782
        %v857 = vadd.f32 %v606, %v785
        %v858 = vadd.f32 %v607, %v790
        %v859 = vadd.f32 %v608, %v793
        %v860 = vadd.f32 %v609, %v798
        %v861 = vadd.f32 %v610, %v801
        %v862 = vadd.f32 %v611, %v806
        %v863 = vadd.f32 %v612, %v809
        %v864 = vadd.f32 %v613, %v814
        %v865 = vadd.f32 %v614, %v817
        %v866 = vadd.f32 %v615, %v822
        %v867 = vadd.f32 %v616, %v825
        %v868 = vadd.f32 %v617, %v830
        %v869 = vadd.f32 %v618, %v833
        %v870 = vadd.f32 %v619, %v838
        %v871 = vadd.f32 %v620, %v841
        %872 = vst [vmem:[#allocation3] sm:$0xff] %v844
        %873 = vst [vmem:[#allocation3 + $0x8] sm:$0xff] %v845
        %874 = vst [vmem:[#allocation3 + $0x10] sm:$0xff] %v846
        %875 = vst [vmem:[#allocation3 + $0x18] sm:$0xff] %v847
        %876 = vst [vmem:[#allocation3 + $0x20] sm:$0xff] %v848
        %877 = vst [vmem:[#allocation3 + $0x28] sm:$0xff] %v849
        %878 = vst [vmem:[#allocation3 + $0x30] sm:$0xff] %v850
        %879 = vst [vmem:[#allocation3 + $0x38] sm:$0xff] %v851
        %880 = vst [vmem:[#allocation3 + $0x40] sm:$0xff] %v852
        %881 = vst [vmem:[#allocation3 + $0x48] sm:$0xff] %v853
        %882 = vst [vmem:[#allocation3 + $0x50] sm:$0xff] %v854
        %883 = vst [vmem:[#allocation3 + $0x58] sm:$0xff] %v855
        %884 = vst [vmem:[#allocation3 + $0x60] sm:$0xff] %v856
        %885 = vst [vmem:[#allocation3 + $0x68] sm:$0xff] %v857
        %886 = vst [vmem:[#allocation3 + $0x70] sm:$0xff] %v858
        %887 = vst [vmem:[#allocation3 + $0x78] sm:$0xff] %v859
        %888 = vst [vmem:[#allocation3 + $0x80] sm:$0xff] %v860
        %889 = vst [vmem:[#allocation3 + $0x88] sm:$0xff] %v861
        %890 = vst [vmem:[#allocation3 + $0x90] sm:$0xff] %v862
        %891 = vst [vmem:[#allocation3 + $0x98] sm:$0xff] %v863
        %892 = vst [vmem:[#allocation3 + $0xa0] sm:$0xff] %v864
        %893 = vst [vmem:[#allocation3 + $0xa8] sm:$0xff] %v865
        %894 = vst [vmem:[#allocation3 + $0xb0] sm:$0xff] %v866
        %895 = vst [vmem:[#allocation3 + $0xb8] sm:$0xff] %v867
        %896 = vst [vmem:[#allocation3 + $0xc0] sm:$0xff] %v868
        %897 = vst [vmem:[#allocation3 + $0xc8] sm:$0xff] %v869
        %898 = vst [vmem:[#allocation3 + $0xd0] sm:$0xff] %v870
        %899 = vst [vmem:[#allocation3 + $0xd8] sm:$0xff] %v871
        %v900 = vld [vmem:[#allocation3] sm:$0xff]
        %v901 = vld [vmem:[#allocation3 + $0x8] sm:$0xff]
        %v902 = vld [vmem:[#allocation3 + $0x10] sm:$0xff]
        %v903 = vld [vmem:[#allocation3 + $0x18] sm:$0xff]
        %v904 = vld [vmem:[#allocation3 + $0x20] sm:$0xff]
        %v905 = vld [vmem:[#allocation3 + $0x28] sm:$0xff]
        %v906 = vld [vmem:[#allocation3 + $0x30] sm:$0xff]
        %v907 = vld [vmem:[#allocation3 + $0x38] sm:$0xff]
        %v908 = vld [vmem:[#allocation3 + $0x40] sm:$0xff]
        %v909 = vld [vmem:[#allocation3 + $0x48] sm:$0xff]
        %v910 = vld [vmem:[#allocation3 + $0x50] sm:$0xff]
        %v911 = vld [vmem:[#allocation3 + $0x58] sm:$0xff]
        %v912 = vld [vmem:[#allocation3 + $0x60] sm:$0xff]
        %v913 = vld [vmem:[#allocation3 + $0x68] sm:$0xff]
        %v914 = vld [vmem:[#allocation3 + $0x70] sm:$0xff]
        %v915 = vld [vmem:[#allocation3 + $0x78] sm:$0xff]
        %v916 = vld [vmem:[#allocation3 + $0x80] sm:$0xff]
        %v917 = vld [vmem:[#allocation3 + $0x88] sm:$0xff]
        %v918 = vld [vmem:[#allocation3 + $0x90] sm:$0xff]
        %v919 = vld [vmem:[#allocation3 + $0x98] sm:$0xff]
        %v920 = vld [vmem:[#allocation3 + $0xa0] sm:$0xff]
        %v921 = vld [vmem:[#allocation3 + $0xa8] sm:$0xff]
        %v922 = vld [vmem:[#allocation3 + $0xb0] sm:$0xff]
        %v923 = vld [vmem:[#allocation3 + $0xb8] sm:$0xff]
        %v924 = vld [vmem:[#allocation3 + $0xc0] sm:$0xff]
        %v925 = vld [vmem:[#allocation3 + $0xc8] sm:$0xff]
        %v926 = vld [vmem:[#allocation3 + $0xd0] sm:$0xff]
        %v927 = vld [vmem:[#allocation3 + $0xd8] sm:$0xff]
        %v928 = vld [vmem:[#allocation2] sm:$0xff]
        %v929 = vld [vmem:[#allocation2 + $0x8] sm:$0xff]
        %v930 = vld [vmem:[#allocation2 + $0x10] sm:$0xff]
        %v931 = vld [vmem:[#allocation2 + $0x18] sm:$0xff]
        %v932 = vld [vmem:[#allocation2 + $0x20] sm:$0xff]
        %v933 = vld [vmem:[#allocation2 + $0x28] sm:$0xff]
        %v934 = vld [vmem:[#allocation2 + $0x30] sm:$0xff]
        %v935 = vld [vmem:[#allocation2 + $0x38] sm:$0xff]
        %v936 = vld [vmem:[#allocation2 + $0x40] sm:$0xff]
        %v937 = vld [vmem:[#allocation2 + $0x48] sm:$0xff]
        %v938 = vld [vmem:[#allocation2 + $0x50] sm:$0xff]
        %v939 = vld [vmem:[#allocation2 + $0x58] sm:$0xff]
        %v940 = vld [vmem:[#allocation2 + $0x60] sm:$0xff]
        %v941 = vld [vmem:[#allocation2 + $0x68] sm:$0xff]
        %v942 = vld [vmem:[#allocation2 + $0x70] sm:$0x1]
        %s943 = scalar_lea.vmem [#allocation9], 64
        %v944 = vld [vmem:[%s943] sm:$0xf]
        %v945 = vld [vmem:[%s943 + $0x4] sm:$0xf]
        %v946 = vld [vmem:[%s943 + $0x8] sm:$0xf]
        %v947 = vld [vmem:[%s943 + $0xc] sm:$0xf]
        %v948 = vld [vmem:[%s943 + $0x10] sm:$0xf]
        %v949 = vld [vmem:[%s943 + $0x14] sm:$0xf]
        %v950 = vld [vmem:[%s943 + $0x18] sm:$0xf]
        %v951 = vld [vmem:[%s943 + $0x1c] sm:$0xf]
        %v952 = vld [vmem:[%s943 + $0x20] sm:$0xf]
        %v953 = vld [vmem:[%s943 + $0x24] sm:$0xf]
        %v954 = vld [vmem:[%s943 + $0x28] sm:$0xf]
        %v955 = vld [vmem:[%s943 + $0x2c] sm:$0xf]
        %v956 = vld [vmem:[%s943 + $0x30] sm:$0xf]
        %v957 = vld [vmem:[%s943 + $0x34] sm:$0xf]
        %v958 = vld [vmem:[%s943 + $0x38] sm:$0xf]
        %v959 = vld [vmem:[%s943 + $0x3c] sm:$0xf]
        %vm960 = vsmask.f32 7424
        %v962 = vshrl.u32 %v928, 16
        %v964 = vshll.u32 %v928, 16
        %v966 = vrot.slane %v964, 1
        %v967 = vor.u32 %v962, %v966
        %v969 = vshll.u32 %v929, 16
        %v971 = vrot.slane %v969, 1
        %v972 = vsel %vm960, %v967, %v971
        %v973 = vshrl.u32 %v929, 16
        %v975 = vor.u32 %v973, %v971
        %v977 = vshll.u32 %v930, 16
        %v979 = vrot.slane %v977, 1
        %v980 = vsel %vm960, %v975, %v979
        %v981 = vshrl.u32 %v930, 16
        %v983 = vor.u32 %v981, %v979
        %v985 = vshll.u32 %v931, 16
        %v987 = vrot.slane %v985, 1
        %v988 = vsel %vm960, %v983, %v987
        %v989 = vshrl.u32 %v931, 16
        %v991 = vor.u32 %v989, %v987
        %v993 = vshll.u32 %v932, 16
        %v995 = vrot.slane %v993, 1
        %v996 = vsel %vm960, %v991, %v995
        %v997 = vshrl.u32 %v932, 16
        %v999 = vor.u32 %v997, %v995
        %v1001 = vshll.u32 %v933, 16
        %v1003 = vrot.slane %v1001, 1
        %v1004 = vsel %vm960, %v999, %v1003
        %v1005 = vshrl.u32 %v933, 16
        %v1007 = vor.u32 %v1005, %v1003
        %v1009 = vshll.u32 %v934, 16
        %v1011 = vrot.slane %v1009, 1
        %v1012 = vsel %vm960, %v1007, %v1011
        %v1013 = vshrl.u32 %v934, 16
        %v1015 = vor.u32 %v1013, %v1011
        %v1017 = vshll.u32 %v935, 16
        %v1019 = vrot.slane %v1017, 1
        %v1020 = vsel %vm960, %v1015, %v1019
        %v1021 = vshrl.u32 %v935, 16
        %v1023 = vor.u32 %v1021, %v1019
        %v1025 = vshll.u32 %v936, 16
        %v1027 = vrot.slane %v1025, 1
        %v1028 = vsel %vm960, %v1023, %v1027
        %v1029 = vshrl.u32 %v936, 16
        %v1031 = vor.u32 %v1029, %v1027
        %v1033 = vshll.u32 %v937, 16
        %v1035 = vrot.slane %v1033, 1
        %v1036 = vsel %vm960, %v1031, %v1035
        %v1037 = vshrl.u32 %v937, 16
        %v1039 = vor.u32 %v1037, %v1035
        %v1041 = vshll.u32 %v938, 16
        %v1043 = vrot.slane %v1041, 1
        %v1044 = vsel %vm960, %v1039, %v1043
        %v1045 = vshrl.u32 %v938, 16
        %v1047 = vor.u32 %v1045, %v1043
        %v1049 = vshll.u32 %v939, 16
        %v1051 = vrot.slane %v1049, 1
        %v1052 = vsel %vm960, %v1047, %v1051
        %v1053 = vshrl.u32 %v939, 16
        %v1055 = vor.u32 %v1053, %v1051
        %v1057 = vshll.u32 %v940, 16
        %v1059 = vrot.slane %v1057, 1
        %v1060 = vsel %vm960, %v1055, %v1059
        %v1061 = vshrl.u32 %v940, 16
        %v1063 = vor.u32 %v1061, %v1059
        %v1065 = vshll.u32 %v941, 16
        %v1067 = vrot.slane %v1065, 1
        %v1068 = vsel %vm960, %v1063, %v1067
        %v1069 = vshrl.u32 %v941, 16
        %v1071 = vor.u32 %v1069, %v1067
        %v1073 = vshll.u32 %v942, 16
        %v1075 = vrot.slane %v1073, 1
        %v1076 = vsel %vm960, %v1071, %v1075
        %v1107 = vunpack.c.l.b16 %v944
        %v1108 = vunpack.c.l.b16 %v945
        %v1109 = vunpack.c.l.b16 %v946
        %v1110 = vunpack.c.l.b16 %v947
        %v1111 = vunpack.c.l.b16 %v948
        %v1112 = vunpack.c.l.b16 %v949
        %v1113 = vunpack.c.l.b16 %v950
        %v1114 = vunpack.c.l.b16 %v951
        %v1115 = vunpack.c.l.b16 %v952
        %v1116 = vunpack.c.l.b16 %v953
        %v1117 = vunpack.c.l.b16 %v954
        %v1118 = vunpack.c.l.b16 %v955
        %v1119 = vunpack.c.l.b16 %v956
        %v1120 = vunpack.c.l.b16 %v957
        %v1121 = vunpack.c.l.b16 %v958
        %v1122 = vunpack.c.l.b16 %v959
        %v1123 = vpack.c.b16 %v1108, %v1107
        %v1124 = vpack.c.b16 %v1110, %v1109
        %v1125 = vpack.c.b16 %v1112, %v1111
        %v1126 = vpack.c.b16 %v1114, %v1113
        %v1127 = vpack.c.b16 %v1116, %v1115
        %v1128 = vpack.c.b16 %v1118, %v1117
        %v1129 = vpack.c.b16 %v1120, %v1119
        %v1130 = vpack.c.b16 %v1122, %v1121
        %1139 = vmatprep.subr.bf16.mxu0 0
        %1140 = vmatpush1.bf16.msra.mxu0 %v1123
        %1141 = vmatprep.subr.bf16.mxu0 0
        %1142 = vmatpush1.bf16.msra.mxu0 %v1124
        %1143 = vmatprep.subr.bf16.mxu0 0
        %1144 = vmatpush1.bf16.msra.mxu0 %v1125
        %1145 = vmatprep.subr.bf16.mxu0 0
        %1146 = vmatpush1.bf16.msra.mxu0 %v1126
        %1147 = vmatprep.subr.bf16.mxu0 0
        %1148 = vmatpush1.bf16.msra.mxu0 %v1127
        %1149 = vmatprep.subr.bf16.mxu0 0
        %1150 = vmatpush1.bf16.msra.mxu0 %v1128
        %1151 = vmatprep.subr.bf16.mxu0 0
        %1152 = vmatpush1.bf16.msra.mxu0 %v1129
        %1153 = vmatprep.subr.bf16.mxu0 0
        %1154 = vmatpush1.bf16.msra.mxu0 %v1130
        %1155 = vmatprep.subr.bf16.mxu0 0
        %1156 = vmatpush1.bf16.msra.mxu0 0
        %1157 = vmatprep.subr.bf16.mxu0 0
        %1158 = vmatpush1.bf16.msra.mxu0 0
        %1159 = vmatprep.subr.bf16.mxu0 0
        %1160 = vmatpush1.bf16.msra.mxu0 0
        %1161 = vmatprep.subr.bf16.mxu0 0
        %1162 = vmatpush1.bf16.msra.mxu0 0
        %1163 = vmatprep.subr.bf16.mxu0 0
        %1164 = vmatpush1.bf16.msra.mxu0 0
        %1165 = vmatprep.subr.bf16.mxu0 0
        %1166 = vmatpush1.bf16.msra.mxu0 0
        %1167 = vmatprep.subr.bf16.mxu0 0
        %1168 = vmatpush1.bf16.msra.mxu0 0
        %1169 = vmatprep.subr.bf16.mxu0 0
        %1170 = vmatpush1.bf16.msra.mxu0 0
        %1171 = vmatprep.mubr.bf16.mxu0 0
        %1172 = vmatmul.mubr.bf16.gmra.mrb[0].mxu0 %v972
        %v1173 = vpop.f32.mrb[0].mxu0
        %v1174 = vadd.f32 0.0, %v1173
        %v1175 = vpop.f32.mrb[0].mxu0
        %v1176 = vpop.f32.mrb[0].mxu0
        %v1177 = vadd.f32 0.0, %v1176
        %v1178 = vpop.f32.mrb[0].mxu0
        %1179 = vmatprep.mubr.bf16.mxu0 0
        %1180 = vmatmul.mubr.bf16.gmra.mrb[0].mxu0 %v980
        %v1181 = vpop.f32.mrb[0].mxu0
        %v1182 = vadd.f32 0.0, %v1181
        %v1183 = vpop.f32.mrb[0].mxu0
        %v1184 = vpop.f32.mrb[0].mxu0
        %v1185 = vadd.f32 0.0, %v1184
        %v1186 = vpop.f32.mrb[0].mxu0
        %1187 = vmatprep.mubr.bf16.mxu0 0
        %1188 = vmatmul.mubr.bf16.gmra.mrb[0].mxu0 %v988
        %v1189 = vpop.f32.mrb[0].mxu0
        %v1190 = vadd.f32 0.0, %v1189
        %v1191 = vpop.f32.mrb[0].mxu0
        %v1192 = vpop.f32.mrb[0].mxu0
        %v1193 = vadd.f32 0.0, %v1192
        %v1194 = vpop.f32.mrb[0].mxu0
        %1195 = vmatprep.mubr.bf16.mxu0 0
        %1196 = vmatmul.mubr.bf16.gmra.mrb[0].mxu0 %v996
        %v1197 = vpop.f32.mrb[0].mxu0
        %v1198 = vadd.f32 0.0, %v1197
        %v1199 = vpop.f32.mrb[0].mxu0
        %v1200 = vpop.f32.mrb[0].mxu0
        %v1201 = vadd.f32 0.0, %v1200
        %v1202 = vpop.f32.mrb[0].mxu0
        %1203 = vmatprep.mubr.bf16.mxu0 0
        %1204 = vmatmul.mubr.bf16.gmra.mrb[0].mxu0 %v1004
        %v1205 = vpop.f32.mrb[0].mxu0
        %v1206 = vadd.f32 0.0, %v1205
        %v1207 = vpop.f32.mrb[0].mxu0
        %v1208 = vpop.f32.mrb[0].mxu0
        %v1209 = vadd.f32 0.0, %v1208
        %v1210 = vpop.f32.mrb[0].mxu0
        %1211 = vmatprep.mubr.bf16.mxu0 0
        %1212 = vmatmul.mubr.bf16.gmra.mrb[0].mxu0 %v1012
        %v1213 = vpop.f32.mrb[0].mxu0
        %v1214 = vadd.f32 0.0, %v1213
        %v1215 = vpop.f32.mrb[0].mxu0
        %v1216 = vpop.f32.mrb[0].mxu0
        %v1217 = vadd.f32 0.0, %v1216
        %v1218 = vpop.f32.mrb[0].mxu0
        %1219 = vmatprep.mubr.bf16.mxu0 0
        %1220 = vmatmul.mubr.bf16.gmra.mrb[0].mxu0 %v1020
        %v1221 = vpop.f32.mrb[0].mxu0
        %v1222 = vadd.f32 0.0, %v1221
        %v1223 = vpop.f32.mrb[0].mxu0
        %v1224 = vpop.f32.mrb[0].mxu0
        %v1225 = vadd.f32 0.0, %v1224
        %v1226 = vpop.f32.mrb[0].mxu0
        %1227 = vmatprep.mubr.bf16.mxu0 0
        %1228 = vmatmul.mubr.bf16.gmra.mrb[0].mxu0 %v1028
        %v1229 = vpop.f32.mrb[0].mxu0
        %v1230 = vadd.f32 0.0, %v1229
        %v1231 = vpop.f32.mrb[0].mxu0
        %v1232 = vpop.f32.mrb[0].mxu0
        %v1233 = vadd.f32 0.0, %v1232
        %v1234 = vpop.f32.mrb[0].mxu0
        %1235 = vmatprep.mubr.bf16.mxu0 0
        %1236 = vmatmul.mubr.bf16.gmra.mrb[0].mxu0 %v1036
        %v1237 = vpop.f32.mrb[0].mxu0
        %v1238 = vadd.f32 0.0, %v1237
        %v1239 = vpop.f32.mrb[0].mxu0
        %v1240 = vpop.f32.mrb[0].mxu0
        %v1241 = vadd.f32 0.0, %v1240
        %v1242 = vpop.f32.mrb[0].mxu0
        %1243 = vmatprep.mubr.bf16.mxu0 0
        %1244 = vmatmul.mubr.bf16.gmra.mrb[0].mxu0 %v1044
        %v1245 = vpop.f32.mrb[0].mxu0
        %v1246 = vadd.f32 0.0, %v1245
        %v1247 = vpop.f32.mrb[0].mxu0
        %v1248 = vpop.f32.mrb[0].mxu0
        %v1249 = vadd.f32 0.0, %v1248
        %v1250 = vpop.f32.mrb[0].mxu0
        %1251 = vmatprep.mubr.bf16.mxu0 0
        %1252 = vmatmul.mubr.bf16.gmra.mrb[0].mxu0 %v1052
        %v1253 = vpop.f32.mrb[0].mxu0
        %v1254 = vadd.f32 0.0, %v1253
        %v1255 = vpop.f32.mrb[0].mxu0
        %v1256 = vpop.f32.mrb[0].mxu0
        %v1257 = vadd.f32 0.0, %v1256
        %v1258 = vpop.f32.mrb[0].mxu0
        %1259 = vmatprep.mubr.bf16.mxu0 0
        %1260 = vmatmul.mubr.bf16.gmra.mrb[0].mxu0 %v1060
        %v1261 = vpop.f32.mrb[0].mxu0
        %v1262 = vadd.f32 0.0, %v1261
        %v1263 = vpop.f32.mrb[0].mxu0
        %v1264 = vpop.f32.mrb[0].mxu0
        %v1265 = vadd.f32 0.0, %v1264
        %v1266 = vpop.f32.mrb[0].mxu0
        %1267 = vmatprep.mubr.bf16.mxu0 0
        %1268 = vmatmul.mubr.bf16.gmra.mrb[0].mxu0 %v1068
        %v1269 = vpop.f32.mrb[0].mxu0
        %v1270 = vadd.f32 0.0, %v1269
        %v1271 = vpop.f32.mrb[0].mxu0
        %v1272 = vpop.f32.mrb[0].mxu0
        %v1273 = vadd.f32 0.0, %v1272
        %v1274 = vpop.f32.mrb[0].mxu0
        %1275 = vmatprep.mubr.bf16.mxu0 0
        %1276 = vmatmul.mubr.bf16.gmra.mrb[0].mxu0 %v1076
        %v1277 = vpop.f32.mrb[0].mxu0
        %v1278 = vadd.f32 0.0, %v1277
        %v1279 = vpop.f32.mrb[0].mxu0
        %v1280 = vpop.f32.mrb[0].mxu0
        %v1281 = vadd.f32 0.0, %v1280
        %v1282 = vpop.f32.mrb[0].mxu0
        %1283 = vdwg.mxu0
        %v1284 = vadd.f32 %v900, %v1174
        %v1285 = vadd.f32 %v901, %v1177
        %v1286 = vadd.f32 %v902, %v1182
        %v1287 = vadd.f32 %v903, %v1185
        %v1288 = vadd.f32 %v904, %v1190
        %v1289 = vadd.f32 %v905, %v1193
        %v1290 = vadd.f32 %v906, %v1198
        %v1291 = vadd.f32 %v907, %v1201
        %v1292 = vadd.f32 %v908, %v1206
        %v1293 = vadd.f32 %v909, %v1209
        %v1294 = vadd.f32 %v910, %v1214
        %v1295 = vadd.f32 %v911, %v1217
        %v1296 = vadd.f32 %v912, %v1222
        %v1297 = vadd.f32 %v913, %v1225
        %v1298 = vadd.f32 %v914, %v1230
        %v1299 = vadd.f32 %v915, %v1233
        %v1300 = vadd.f32 %v916, %v1238
        %v1301 = vadd.f32 %v917, %v1241
        %v1302 = vadd.f32 %v918, %v1246
        %v1303 = vadd.f32 %v919, %v1249
        %v1304 = vadd.f32 %v920, %v1254
        %v1305 = vadd.f32 %v921, %v1257
        %v1306 = vadd.f32 %v922, %v1262
        %v1307 = vadd.f32 %v923, %v1265
        %v1308 = vadd.f32 %v924, %v1270
        %v1309 = vadd.f32 %v925, %v1273
        %v1310 = vadd.f32 %v926, %v1278
        %v1311 = vadd.f32 %v927, %v1281
        %1312 = vst [vmem:[#allocation3] sm:$0xff] %v1284
        %1313 = vst [vmem:[#allocation3 + $0x8] sm:$0xff] %v1285
        %1314 = vst [vmem:[#allocation3 + $0x10] sm:$0xff] %v1286
        %1315 = vst [vmem:[#allocation3 + $0x18] sm:$0xff] %v1287
        %1316 = vst [vmem:[#allocation3 + $0x20] sm:$0xff] %v1288
        %1317 = vst [vmem:[#allocation3 + $0x28] sm:$0xff] %v1289
        %1318 = vst [vmem:[#allocation3 + $0x30] sm:$0xff] %v1290
        %1319 = vst [vmem:[#allocation3 + $0x38] sm:$0xff] %v1291
        %1320 = vst [vmem:[#allocation3 + $0x40] sm:$0xff] %v1292
        %1321 = vst [vmem:[#allocation3 + $0x48] sm:$0xff] %v1293
        %1322 = vst [vmem:[#allocation3 + $0x50] sm:$0xff] %v1294
        %1323 = vst [vmem:[#allocation3 + $0x58] sm:$0xff] %v1295
        %1324 = vst [vmem:[#allocation3 + $0x60] sm:$0xff] %v1296
        %1325 = vst [vmem:[#allocation3 + $0x68] sm:$0xff] %v1297
        %1326 = vst [vmem:[#allocation3 + $0x70] sm:$0xff] %v1298
        %1327 = vst [vmem:[#allocation3 + $0x78] sm:$0xff] %v1299
        %1328 = vst [vmem:[#allocation3 + $0x80] sm:$0xff] %v1300
        %1329 = vst [vmem:[#allocation3 + $0x88] sm:$0xff] %v1301
        %1330 = vst [vmem:[#allocation3 + $0x90] sm:$0xff] %v1302
        %1331 = vst [vmem:[#allocation3 + $0x98] sm:$0xff] %v1303
        %1332 = vst [vmem:[#allocation3 + $0xa0] sm:$0xff] %v1304
        %1333 = vst [vmem:[#allocation3 + $0xa8] sm:$0xff] %v1305
        %1334 = vst [vmem:[#allocation3 + $0xb0] sm:$0xff] %v1306
        %1335 = vst [vmem:[#allocation3 + $0xb8] sm:$0xff] %v1307
        %1336 = vst [vmem:[#allocation3 + $0xc0] sm:$0xff] %v1308
        %1337 = vst [vmem:[#allocation3 + $0xc8] sm:$0xff] %v1309
        %1338 = vst [vmem:[#allocation3 + $0xd0] sm:$0xff] %v1310
        %1339 = vst [vmem:[#allocation3 + $0xd8] sm:$0xff] %v1311
        %v1340 = vld [vmem:[#allocation3] sm:$0xff]
        %v1341 = vld [vmem:[#allocation3 + $0x8] sm:$0xff]
        %v1342 = vld [vmem:[#allocation3 + $0x10] sm:$0xff]
        %v1343 = vld [vmem:[#allocation3 + $0x18] sm:$0xff]
        %v1344 = vld [vmem:[#allocation3 + $0x20] sm:$0xff]
        %v1345 = vld [vmem:[#allocation3 + $0x28] sm:$0xff]
        %v1346 = vld [vmem:[#allocation3 + $0x30] sm:$0xff]
        %v1347 = vld [vmem:[#allocation3 + $0x38] sm:$0xff]
        %v1348 = vld [vmem:[#allocation3 + $0x40] sm:$0xff]
        %v1349 = vld [vmem:[#allocation3 + $0x48] sm:$0xff]
        %v1350 = vld [vmem:[#allocation3 + $0x50] sm:$0xff]
        %v1351 = vld [vmem:[#allocation3 + $0x58] sm:$0xff]
        %v1352 = vld [vmem:[#allocation3 + $0x60] sm:$0xff]
        %v1353 = vld [vmem:[#allocation3 + $0x68] sm:$0xff]
        %v1354 = vld [vmem:[#allocation3 + $0x70] sm:$0xff]
        %v1355 = vld [vmem:[#allocation3 + $0x78] sm:$0xff]
        %v1356 = vld [vmem:[#allocation3 + $0x80] sm:$0xff]
        %v1357 = vld [vmem:[#allocation3 + $0x88] sm:$0xff]
        %v1358 = vld [vmem:[#allocation3 + $0x90] sm:$0xff]
        %v1359 = vld [vmem:[#allocation3 + $0x98] sm:$0xff]
        %v1360 = vld [vmem:[#allocation3 + $0xa0] sm:$0xff]
        %v1361 = vld [vmem:[#allocation3 + $0xa8] sm:$0xff]
        %v1362 = vld [vmem:[#allocation3 + $0xb0] sm:$0xff]
        %v1363 = vld [vmem:[#allocation3 + $0xb8] sm:$0xff]
        %v1364 = vld [vmem:[#allocation3 + $0xc0] sm:$0xff]
        %v1365 = vld [vmem:[#allocation3 + $0xc8] sm:$0xff]
        %v1366 = vld [vmem:[#allocation3 + $0xd0] sm:$0xff]
        %v1367 = vld [vmem:[#allocation3 + $0xd8] sm:$0xff]
        %v1368 = vld [vmem:[#allocation2] sm:$0xfe]
        %v1369 = vld [vmem:[#allocation2 + $0x8] sm:$0xff]
        %v1370 = vld [vmem:[#allocation2 + $0x10] sm:$0xff]
        %v1371 = vld [vmem:[#allocation2 + $0x18] sm:$0xff]
        %v1372 = vld [vmem:[#allocation2 + $0x20] sm:$0xff]
        %v1373 = vld [vmem:[#allocation2 + $0x28] sm:$0xff]
        %v1374 = vld [vmem:[#allocation2 + $0x30] sm:$0xff]
        %v1375 = vld [vmem:[#allocation2 + $0x38] sm:$0xff]
        %v1376 = vld [vmem:[#allocation2 + $0x40] sm:$0xff]
        %v1377 = vld [vmem:[#allocation2 + $0x48] sm:$0xff]
        %v1378 = vld [vmem:[#allocation2 + $0x50] sm:$0xff]
        %v1379 = vld [vmem:[#allocation2 + $0x58] sm:$0xff]
        %v1380 = vld [vmem:[#allocation2 + $0x60] sm:$0xff]
        %v1381 = vld [vmem:[#allocation2 + $0x68] sm:$0xff]
        %v1382 = vld [vmem:[#allocation2 + $0x70] sm:$0x1]
        %s1383 = scalar_lea.vmem [#allocation9], 128
        %v1384 = vld [vmem:[%s1383] sm:$0xf]
        %v1385 = vld [vmem:[%s1383 + $0x4] sm:$0xf]
        %v1386 = vld [vmem:[%s1383 + $0x8] sm:$0xf]
        %v1387 = vld [vmem:[%s1383 + $0xc] sm:$0xf]
        %v1388 = vld [vmem:[%s1383 + $0x10] sm:$0xf]
        %v1389 = vld [vmem:[%s1383 + $0x14] sm:$0xf]
        %v1390 = vld [vmem:[%s1383 + $0x18] sm:$0xf]
        %v1391 = vld [vmem:[%s1383 + $0x1c] sm:$0xf]
        %v1392 = vld [vmem:[%s1383 + $0x20] sm:$0xf]
        %v1393 = vld [vmem:[%s1383 + $0x24] sm:$0xf]
        %v1394 = vld [vmem:[%s1383 + $0x28] sm:$0xf]
        %v1395 = vld [vmem:[%s1383 + $0x2c] sm:$0xf]
        %v1396 = vld [vmem:[%s1383 + $0x30] sm:$0xf]
        %v1397 = vld [vmem:[%s1383 + $0x34] sm:$0xf]
        %v1398 = vld [vmem:[%s1383 + $0x38] sm:$0xf]
        %v1399 = vld [vmem:[%s1383 + $0x3c] sm:$0xf]
        %vm1415 = vcmask 1046528
        %v1416 = vrot.slane %v1368, 1
        %v1417 = vrot.slane %v1369, 1
        %v1418 = vsel %vm1415, %v1416, %v1417
        %v1419 = vrot.slane %v1370, 1
        %v1420 = vsel %vm1415, %v1417, %v1419
        %v1421 = vrot.slane %v1371, 1
        %v1422 = vsel %vm1415, %v1419, %v1421
        %v1423 = vrot.slane %v1372, 1
        %v1424 = vsel %vm1415, %v1421, %v1423
        %v1425 = vrot.slane %v1373, 1
        %v1426 = vsel %vm1415, %v1423, %v1425
        %v1427 = vrot.slane %v1374, 1
        %v1428 = vsel %vm1415, %v1425, %v1427
        %v1429 = vrot.slane %v1375, 1
        %v1430 = vsel %vm1415, %v1427, %v1429
        %v1431 = vrot.slane %v1376, 1
        %v1432 = vsel %vm1415, %v1429, %v1431
        %v1433 = vrot.slane %v1377, 1
        %v1434 = vsel %vm1415, %v1431, %v1433
        %v1435 = vrot.slane %v1378, 1
        %v1436 = vsel %vm1415, %v1433, %v1435
        %v1437 = vrot.slane %v1379, 1
        %v1438 = vsel %vm1415, %v1435, %v1437
        %v1439 = vrot.slane %v1380, 1
        %v1440 = vsel %vm1415, %v1437, %v1439
        %v1441 = vrot.slane %v1381, 1
        %v1442 = vsel %vm1415, %v1439, %v1441
        %v1443 = vrot.slane %v1382, 1
        %v1444 = vsel %vm1415, %v1441, %v1443
        %v1475 = vunpack.c.l.b16 %v1384
        %v1476 = vunpack.c.l.b16 %v1385
        %v1477 = vunpack.c.l.b16 %v1386
        %v1478 = vunpack.c.l.b16 %v1387
        %v1479 = vunpack.c.l.b16 %v1388
        %v1480 = vunpack.c.l.b16 %v1389
        %v1481 = vunpack.c.l.b16 %v1390
        %v1482 = vunpack.c.l.b16 %v1391
        %v1483 = vunpack.c.l.b16 %v1392
        %v1484 = vunpack.c.l.b16 %v1393
        %v1485 = vunpack.c.l.b16 %v1394
        %v1486 = vunpack.c.l.b16 %v1395
        %v1487 = vunpack.c.l.b16 %v1396
        %v1488 = vunpack.c.l.b16 %v1397
        %v1489 = vunpack.c.l.b16 %v1398
        %v1490 = vunpack.c.l.b16 %v1399
        %v1491 = vpack.c.b16 %v1476, %v1475
        %v1492 = vpack.c.b16 %v1478, %v1477
        %v1493 = vpack.c.b16 %v1480, %v1479
        %v1494 = vpack.c.b16 %v1482, %v1481
        %v1495 = vpack.c.b16 %v1484, %v1483
        %v1496 = vpack.c.b16 %v1486, %v1485
        %v1497 = vpack.c.b16 %v1488, %v1487
        %v1498 = vpack.c.b16 %v1490, %v1489
        %1507 = vmatprep.subr.bf16.mxu0 0
        %1508 = vmatpush1.bf16.msra.mxu0 %v1491
        %1509 = vmatprep.subr.bf16.mxu0 0
        %1510 = vmatpush1.bf16.msra.mxu0 %v1492
        %1511 = vmatprep.subr.bf16.mxu0 0
        %1512 = vmatpush1.bf16.msra.mxu0 %v1493
        %1513 = vmatprep.subr.bf16.mxu0 0
        %1514 = vmatpush1.bf16.msra.mxu0 %v1494
        %1515 = vmatprep.subr.bf16.mxu0 0
        %1516 = vmatpush1.bf16.msra.mxu0 %v1495
        %1517 = vmatprep.subr.bf16.mxu0 0
        %1518 = vmatpush1.bf16.msra.mxu0 %v1496
        %1519 = vmatprep.subr.bf16.mxu0 0
        %1520 = vmatpush1.bf16.msra.mxu0 %v1497
        %1521 = vmatprep.subr.bf16.mxu0 0
        %1522 = vmatpush1.bf16.msra.mxu0 %v1498
        %1523 = vmatprep.subr.bf16.mxu0 0
        %1524 = vmatpush1.bf16.msra.mxu0 0
        %1525 = vmatprep.subr.bf16.mxu0 0
        %1526 = vmatpush1.bf16.msra.mxu0 0
        %1527 = vmatprep.subr.bf16.mxu0 0
        %1528 = vmatpush1.bf16.msra.mxu0 0
        %1529 = vmatprep.subr.bf16.mxu0 0
        %1530 = vmatpush1.bf16.msra.mxu0 0
        %1531 = vmatprep.subr.bf16.mxu0 0
        %1532 = vmatpush1.bf16.msra.mxu0 0
        %1533 = vmatprep.subr.bf16.mxu0 0
        %1534 = vmatpush1.bf16.msra.mxu0 0
        %1535 = vmatprep.subr.bf16.mxu0 0
        %1536 = vmatpush1.bf16.msra.mxu0 0
        %1537 = vmatprep.subr.bf16.mxu0 0
        %1538 = vmatpush1.bf16.msra.mxu0 0
        %1539 = vmatprep.mubr.bf16.mxu0 0
        %1540 = vmatmul.mubr.bf16.gmra.mrb[0].mxu0 %v1418
        %v1541 = vpop.f32.mrb[0].mxu0
        %v1542 = vadd.f32 0.0, %v1541
        %v1543 = vpop.f32.mrb[0].mxu0
        %v1544 = vpop.f32.mrb[0].mxu0
        %v1545 = vadd.f32 0.0, %v1544
        %v1546 = vpop.f32.mrb[0].mxu0
        %1547 = vmatprep.mubr.bf16.mxu0 0
        %1548 = vmatmul.mubr.bf16.gmra.mrb[0].mxu0 %v1420
        %v1549 = vpop.f32.mrb[0].mxu0
        %v1550 = vadd.f32 0.0, %v1549
        %v1551 = vpop.f32.mrb[0].mxu0
        %v1552 = vpop.f32.mrb[0].mxu0
        %v1553 = vadd.f32 0.0, %v1552
        %v1554 = vpop.f32.mrb[0].mxu0
        %1555 = vmatprep.mubr.bf16.mxu0 0
        %1556 = vmatmul.mubr.bf16.gmra.mrb[0].mxu0 %v1422
        %v1557 = vpop.f32.mrb[0].mxu0
        %v1558 = vadd.f32 0.0, %v1557
        %v1559 = vpop.f32.mrb[0].mxu0
        %v1560 = vpop.f32.mrb[0].mxu0
        %v1561 = vadd.f32 0.0, %v1560
        %v1562 = vpop.f32.mrb[0].mxu0
        %1563 = vmatprep.mubr.bf16.mxu0 0
        %1564 = vmatmul.mubr.bf16.gmra.mrb[0].mxu0 %v1424
        %v1565 = vpop.f32.mrb[0].mxu0
        %v1566 = vadd.f32 0.0, %v1565
        %v1567 = vpop.f32.mrb[0].mxu0
        %v1568 = vpop.f32.mrb[0].mxu0
        %v1569 = vadd.f32 0.0, %v1568
        %v1570 = vpop.f32.mrb[0].mxu0
        %1571 = vmatprep.mubr.bf16.mxu0 0
        %1572 = vmatmul.mubr.bf16.gmra.mrb[0].mxu0 %v1426
        %v1573 = vpop.f32.mrb[0].mxu0
        %v1574 = vadd.f32 0.0, %v1573
        %v1575 = vpop.f32.mrb[0].mxu0
        %v1576 = vpop.f32.mrb[0].mxu0
        %v1577 = vadd.f32 0.0, %v1576
        %v1578 = vpop.f32.mrb[0].mxu0
        %1579 = vmatprep.mubr.bf16.mxu0 0
        %1580 = vmatmul.mubr.bf16.gmra.mrb[0].mxu0 %v1428
        %v1581 = vpop.f32.mrb[0].mxu0
        %v1582 = vadd.f32 0.0, %v1581
        %v1583 = vpop.f32.mrb[0].mxu0
        %v1584 = vpop.f32.mrb[0].mxu0
        %v1585 = vadd.f32 0.0, %v1584
        %v1586 = vpop.f32.mrb[0].mxu0
        %1587 = vmatprep.mubr.bf16.mxu0 0
        %1588 = vmatmul.mubr.bf16.gmra.mrb[0].mxu0 %v1430
        %v1589 = vpop.f32.mrb[0].mxu0
        %v1590 = vadd.f32 0.0, %v1589
        %v1591 = vpop.f32.mrb[0].mxu0
        %v1592 = vpop.f32.mrb[0].mxu0
        %v1593 = vadd.f32 0.0, %v1592
        %v1594 = vpop.f32.mrb[0].mxu0
        %1595 = vmatprep.mubr.bf16.mxu0 0
        %1596 = vmatmul.mubr.bf16.gmra.mrb[0].mxu0 %v1432
        %v1597 = vpop.f32.mrb[0].mxu0
        %v1598 = vadd.f32 0.0, %v1597
        %v1599 = vpop.f32.mrb[0].mxu0
        %v1600 = vpop.f32.mrb[0].mxu0
        %v1601 = vadd.f32 0.0, %v1600
        %v1602 = vpop.f32.mrb[0].mxu0
        %1603 = vmatprep.mubr.bf16.mxu0 0
        %1604 = vmatmul.mubr.bf16.gmra.mrb[0].mxu0 %v1434
        %v1605 = vpop.f32.mrb[0].mxu0
        %v1606 = vadd.f32 0.0, %v1605
        %v1607 = vpop.f32.mrb[0].mxu0
        %v1608 = vpop.f32.mrb[0].mxu0
        %v1609 = vadd.f32 0.0, %v1608
        %v1610 = vpop.f32.mrb[0].mxu0
        %1611 = vmatprep.mubr.bf16.mxu0 0
        %1612 = vmatmul.mubr.bf16.gmra.mrb[0].mxu0 %v1436
        %v1613 = vpop.f32.mrb[0].mxu0
        %v1614 = vadd.f32 0.0, %v1613
        %v1615 = vpop.f32.mrb[0].mxu0
        %v1616 = vpop.f32.mrb[0].mxu0
        %v1617 = vadd.f32 0.0, %v1616
        %v1618 = vpop.f32.mrb[0].mxu0
        %1619 = vmatprep.mubr.bf16.mxu0 0
        %1620 = vmatmul.mubr.bf16.gmra.mrb[0].mxu0 %v1438
        %v1621 = vpop.f32.mrb[0].mxu0
        %v1622 = vadd.f32 0.0, %v1621
        %v1623 = vpop.f32.mrb[0].mxu0
        %v1624 = vpop.f32.mrb[0].mxu0
        %v1625 = vadd.f32 0.0, %v1624
        %v1626 = vpop.f32.mrb[0].mxu0
        %1627 = vmatprep.mubr.bf16.mxu0 0
        %1628 = vmatmul.mubr.bf16.gmra.mrb[0].mxu0 %v1440
        %v1629 = vpop.f32.mrb[0].mxu0
        %v1630 = vadd.f32 0.0, %v1629
        %v1631 = vpop.f32.mrb[0].mxu0
        %v1632 = vpop.f32.mrb[0].mxu0
        %v1633 = vadd.f32 0.0, %v1632
        %v1634 = vpop.f32.mrb[0].mxu0
        %1635 = vmatprep.mubr.bf16.mxu0 0
        %1636 = vmatmul.mubr.bf16.gmra.mrb[0].mxu0 %v1442
        %v1637 = vpop.f32.mrb[0].mxu0
        %v1638 = vadd.f32 0.0, %v1637
        %v1639 = vpop.f32.mrb[0].mxu0
        %v1640 = vpop.f32.mrb[0].mxu0
        %v1641 = vadd.f32 0.0, %v1640
        %v1642 = vpop.f32.mrb[0].mxu0
        %1643 = vmatprep.mubr.bf16.mxu0 0
        %1644 = vmatmul.mubr.bf16.gmra.mrb[0].mxu0 %v1444
        %v1645 = vpop.f32.mrb[0].mxu0
        %v1646 = vadd.f32 0.0, %v1645
        %v1647 = vpop.f32.mrb[0].mxu0
        %v1648 = vpop.f32.mrb[0].mxu0
        %v1649 = vadd.f32 0.0, %v1648
        %v1650 = vpop.f32.mrb[0].mxu0
        %1651 = vdwg.mxu0
        %v1652 = vadd.f32 %v1340, %v1542
        %v1653 = vadd.f32 %v1341, %v1545
        %v1654 = vadd.f32 %v1342, %v1550
        %v1655 = vadd.f32 %v1343, %v1553
        %v1656 = vadd.f32 %v1344, %v1558
        %v1657 = vadd.f32 %v1345, %v1561
        %v1658 = vadd.f32 %v1346, %v1566
        %v1659 = vadd.f32 %v1347, %v1569
        %v1660 = vadd.f32 %v1348, %v1574
        %v1661 = vadd.f32 %v1349, %v1577
        %v1662 = vadd.f32 %v1350, %v1582
        %v1663 = vadd.f32 %v1351, %v1585
        %v1664 = vadd.f32 %v1352, %v1590
        %v1665 = vadd.f32 %v1353, %v1593
        %v1666 = vadd.f32 %v1354, %v1598
        %v1667 = vadd.f32 %v1355, %v1601
        %v1668 = vadd.f32 %v1356, %v1606
        %v1669 = vadd.f32 %v1357, %v1609
        %v1670 = vadd.f32 %v1358, %v1614
        %v1671 = vadd.f32 %v1359, %v1617
        %v1672 = vadd.f32 %v1360, %v1622
        %v1673 = vadd.f32 %v1361, %v1625
        %v1674 = vadd.f32 %v1362, %v1630
        %v1675 = vadd.f32 %v1363, %v1633
        %v1676 = vadd.f32 %v1364, %v1638
        %v1677 = vadd.f32 %v1365, %v1641
        %v1678 = vadd.f32 %v1366, %v1646
        %v1679 = vadd.f32 %v1367, %v1649
        %1680 = vst [vmem:[#allocation3] sm:$0xff] %v1652
        %1681 = vst [vmem:[#allocation3 + $0x8] sm:$0xff] %v1653
        %1682 = vst [vmem:[#allocation3 + $0x10] sm:$0xff] %v1654
        %1683 = vst [vmem:[#allocation3 + $0x18] sm:$0xff] %v1655
        %1684 = vst [vmem:[#allocation3 + $0x20] sm:$0xff] %v1656
        %1685 = vst [vmem:[#allocation3 + $0x28] sm:$0xff] %v1657
        %1686 = vst [vmem:[#allocation3 + $0x30] sm:$0xff] %v1658
        %1687 = vst [vmem:[#allocation3 + $0x38] sm:$0xff] %v1659
        %1688 = vst [vmem:[#allocation3 + $0x40] sm:$0xff] %v1660
        %1689 = vst [vmem:[#allocation3 + $0x48] sm:$0xff] %v1661
        %1690 = vst [vmem:[#allocation3 + $0x50] sm:$0xff] %v1662
        %1691 = vst [vmem:[#allocation3 + $0x58] sm:$0xff] %v1663
        %1692 = vst [vmem:[#allocation3 + $0x60] sm:$0xff] %v1664
        %1693 = vst [vmem:[#allocation3 + $0x68] sm:$0xff] %v1665
        %1694 = vst [vmem:[#allocation3 + $0x70] sm:$0xff] %v1666
        %1695 = vst [vmem:[#allocation3 + $0x78] sm:$0xff] %v1667
        %1696 = vst [vmem:[#allocation3 + $0x80] sm:$0xff] %v1668
        %1697 = vst [vmem:[#allocation3 + $0x88] sm:$0xff] %v1669
        %1698 = vst [vmem:[#allocation3 + $0x90] sm:$0xff] %v1670
        %1699 = vst [vmem:[#allocation3 + $0x98] sm:$0xff] %v1671
        %1700 = vst [vmem:[#allocation3 + $0xa0] sm:$0xff] %v1672
        %1701 = vst [vmem:[#allocation3 + $0xa8] sm:$0xff] %v1673
        %1702 = vst [vmem:[#allocation3 + $0xb0] sm:$0xff] %v1674
        %1703 = vst [vmem:[#allocation3 + $0xb8] sm:$0xff] %v1675
        %1704 = vst [vmem:[#allocation3 + $0xc0] sm:$0xff] %v1676
        %1705 = vst [vmem:[#allocation3 + $0xc8] sm:$0xff] %v1677
        %1706 = vst [vmem:[#allocation3 + $0xd0] sm:$0xff] %v1678
        %1707 = vst [vmem:[#allocation3 + $0xd8] sm:$0xff] %v1679
        %v1708 = vld [vmem:[#allocation3] sm:$0xff]
        %v1709 = vld [vmem:[#allocation3 + $0x8] sm:$0xff]
        %v1710 = vld [vmem:[#allocation3 + $0x10] sm:$0xff]
        %v1711 = vld [vmem:[#allocation3 + $0x18] sm:$0xff]
        %v1712 = vld [vmem:[#allocation3 + $0x20] sm:$0xff]
        %v1713 = vld [vmem:[#allocation3 + $0x28] sm:$0xff]
        %v1714 = vld [vmem:[#allocation3 + $0x30] sm:$0xff]
        %v1715 = vld [vmem:[#allocation3 + $0x38] sm:$0xff]
        %v1716 = vld [vmem:[#allocation3 + $0x40] sm:$0xff]
        %v1717 = vld [vmem:[#allocation3 + $0x48] sm:$0xff]
        %v1718 = vld [vmem:[#allocation3 + $0x50] sm:$0xff]
        %v1719 = vld [vmem:[#allocation3 + $0x58] sm:$0xff]
        %v1720 = vld [vmem:[#allocation3 + $0x60] sm:$0xff]
        %v1721 = vld [vmem:[#allocation3 + $0x68] sm:$0xff]
        %v1722 = vld [vmem:[#allocation3 + $0x70] sm:$0xff]
        %v1723 = vld [vmem:[#allocation3 + $0x78] sm:$0xff]
        %v1724 = vld [vmem:[#allocation3 + $0x80] sm:$0xff]
        %v1725 = vld [vmem:[#allocation3 + $0x88] sm:$0xff]
        %v1726 = vld [vmem:[#allocation3 + $0x90] sm:$0xff]
        %v1727 = vld [vmem:[#allocation3 + $0x98] sm:$0xff]
        %v1728 = vld [vmem:[#allocation3 + $0xa0] sm:$0xff]
        %v1729 = vld [vmem:[#allocation3 + $0xa8] sm:$0xff]
        %v1730 = vld [vmem:[#allocation3 + $0xb0] sm:$0xff]
        %v1731 = vld [vmem:[#allocation3 + $0xb8] sm:$0xff]
        %v1732 = vld [vmem:[#allocation3 + $0xc0] sm:$0xff]
        %v1733 = vld [vmem:[#allocation3 + $0xc8] sm:$0xff]
        %v1734 = vld [vmem:[#allocation3 + $0xd0] sm:$0xff]
        %v1735 = vld [vmem:[#allocation3 + $0xd8] sm:$0xff]
        %v1736 = vld [vmem:[#allocation2 + $0x8] sm:$0xff]
        %v1737 = vld [vmem:[#allocation2 + $0x10] sm:$0xff]
        %v1738 = vld [vmem:[#allocation2 + $0x18] sm:$0xff]
        %v1739 = vld [vmem:[#allocation2 + $0x20] sm:$0xff]
        %v1740 = vld [vmem:[#allocation2 + $0x28] sm:$0xff]
        %v1741 = vld [vmem:[#allocation2 + $0x30] sm:$0xff]
        %v1742 = vld [vmem:[#allocation2 + $0x38] sm:$0xff]
        %v1743 = vld [vmem:[#allocation2 + $0x40] sm:$0xff]
        %v1744 = vld [vmem:[#allocation2 + $0x48] sm:$0xff]
        %v1745 = vld [vmem:[#allocation2 + $0x50] sm:$0xff]
        %v1746 = vld [vmem:[#allocation2 + $0x58] sm:$0xff]
        %v1747 = vld [vmem:[#allocation2 + $0x60] sm:$0xff]
        %v1748 = vld [vmem:[#allocation2 + $0x68] sm:$0xff]
        %v1749 = vld [vmem:[#allocation2 + $0x70] sm:$0xff]
        %s1750 = scalar_lea.vmem [#allocation9], 192
        %v1751 = vld [vmem:[%s1750] sm:$0xf]
        %v1752 = vld [vmem:[%s1750 + $0x4] sm:$0xf]
        %v1753 = vld [vmem:[%s1750 + $0x8] sm:$0xf]
        %v1754 = vld [vmem:[%s1750 + $0xc] sm:$0xf]
        %v1755 = vld [vmem:[%s1750 + $0x10] sm:$0xf]
        %v1756 = vld [vmem:[%s1750 + $0x14] sm:$0xf]
        %v1757 = vld [vmem:[%s1750 + $0x18] sm:$0xf]
        %v1758 = vld [vmem:[%s1750 + $0x1c] sm:$0xf]
        %v1759 = vld [vmem:[%s1750 + $0x20] sm:$0xf]
        %v1760 = vld [vmem:[%s1750 + $0x24] sm:$0xf]
        %v1761 = vld [vmem:[%s1750 + $0x28] sm:$0xf]
        %v1762 = vld [vmem:[%s1750 + $0x2c] sm:$0xf]
        %v1763 = vld [vmem:[%s1750 + $0x30] sm:$0xf]
        %v1764 = vld [vmem:[%s1750 + $0x34] sm:$0xf]
        %v1765 = vld [vmem:[%s1750 + $0x38] sm:$0xf]
        %v1766 = vld [vmem:[%s1750 + $0x3c] sm:$0xf]
        %v1783 = vunpack.c.l.b16 %v1751
        %v1784 = vunpack.c.l.b16 %v1752
        %v1785 = vunpack.c.l.b16 %v1753
        %v1786 = vunpack.c.l.b16 %v1754
        %v1787 = vunpack.c.l.b16 %v1755
        %v1788 = vunpack.c.l.b16 %v1756
        %v1789 = vunpack.c.l.b16 %v1757
        %v1790 = vunpack.c.l.b16 %v1758
        %v1791 = vunpack.c.l.b16 %v1759
        %v1792 = vunpack.c.l.b16 %v1760
        %v1793 = vunpack.c.l.b16 %v1761
        %v1794 = vunpack.c.l.b16 %v1762
        %v1795 = vunpack.c.l.b16 %v1763
        %v1796 = vunpack.c.l.b16 %v1764
        %v1797 = vunpack.c.l.b16 %v1765
        %v1798 = vunpack.c.l.b16 %v1766
        %v1799 = vpack.c.b16 %v1784, %v1783
        %v1800 = vpack.c.b16 %v1786, %v1785
        %v1801 = vpack.c.b16 %v1788, %v1787
        %v1802 = vpack.c.b16 %v1790, %v1789
        %v1803 = vpack.c.b16 %v1792, %v1791
        %v1804 = vpack.c.b16 %v1794, %v1793
        %v1805 = vpack.c.b16 %v1796, %v1795
        %v1806 = vpack.c.b16 %v1798, %v1797
        %1815 = vmatprep.subr.bf16.mxu0 0
        %1816 = vmatpush1.bf16.msra.mxu0 %v1799
        %1817 = vmatprep.subr.bf16.mxu0 0
        %1818 = vmatpush1.bf16.msra.mxu0 %v1800
        %1819 = vmatprep.subr.bf16.mxu0 0
        %1820 = vmatpush1.bf16.msra.mxu0 %v1801
        %1821 = vmatprep.subr.bf16.mxu0 0
        %1822 = vmatpush1.bf16.msra.mxu0 %v1802
        %1823 = vmatprep.subr.bf16.mxu0 0
        %1824 = vmatpush1.bf16.msra.mxu0 %v1803
        %1825 = vmatprep.subr.bf16.mxu0 0
        %1826 = vmatpush1.bf16.msra.mxu0 %v1804
        %1827 = vmatprep.subr.bf16.mxu0 0
        %1828 = vmatpush1.bf16.msra.mxu0 %v1805
        %1829 = vmatprep.subr.bf16.mxu0 0
        %1830 = vmatpush1.bf16.msra.mxu0 %v1806
        %1831 = vmatprep.subr.bf16.mxu0 0
        %1832 = vmatpush1.bf16.msra.mxu0 0
        %1833 = vmatprep.subr.bf16.mxu0 0
        %1834 = vmatpush1.bf16.msra.mxu0 0
        %1835 = vmatprep.subr.bf16.mxu0 0
        %1836 = vmatpush1.bf16.msra.mxu0 0
        %1837 = vmatprep.subr.bf16.mxu0 0
        %1838 = vmatpush1.bf16.msra.mxu0 0
        %1839 = vmatprep.subr.bf16.mxu0 0
        %1840 = vmatpush1.bf16.msra.mxu0 0
        %1841 = vmatprep.subr.bf16.mxu0 0
        %1842 = vmatpush1.bf16.msra.mxu0 0
        %1843 = vmatprep.subr.bf16.mxu0 0
        %1844 = vmatpush1.bf16.msra.mxu0 0
        %1845 = vmatprep.subr.bf16.mxu0 0
        %1846 = vmatpush1.bf16.msra.mxu0 0
        %1847 = vmatprep.mubr.bf16.mxu0 0
        %1848 = vmatmul.mubr.bf16.gmra.mrb[0].mxu0 %v1736
        %v1849 = vpop.f32.mrb[0].mxu0
        %v1850 = vadd.f32 0.0, %v1849
        %v1851 = vpop.f32.mrb[0].mxu0
        %v1852 = vpop.f32.mrb[0].mxu0
        %v1853 = vadd.f32 0.0, %v1852
        %v1854 = vpop.f32.mrb[0].mxu0
        %1855 = vmatprep.mubr.bf16.mxu0 0
        %1856 = vmatmul.mubr.bf16.gmra.mrb[0].mxu0 %v1737
        %v1857 = vpop.f32.mrb[0].mxu0
        %v1858 = vadd.f32 0.0, %v1857
        %v1859 = vpop.f32.mrb[0].mxu0
        %v1860 = vpop.f32.mrb[0].mxu0
        %v1861 = vadd.f32 0.0, %v1860
        %v1862 = vpop.f32.mrb[0].mxu0
        %1863 = vmatprep.mubr.bf16.mxu0 0
        %1864 = vmatmul.mubr.bf16.gmra.mrb[0].mxu0 %v1738
        %v1865 = vpop.f32.mrb[0].mxu0
        %v1866 = vadd.f32 0.0, %v1865
        %v1867 = vpop.f32.mrb[0].mxu0
        %v1868 = vpop.f32.mrb[0].mxu0
        %v1869 = vadd.f32 0.0, %v1868
        %v1870 = vpop.f32.mrb[0].mxu0
        %1871 = vmatprep.mubr.bf16.mxu0 0
        %1872 = vmatmul.mubr.bf16.gmra.mrb[0].mxu0 %v1739
        %v1873 = vpop.f32.mrb[0].mxu0
        %v1874 = vadd.f32 0.0, %v1873
        %v1875 = vpop.f32.mrb[0].mxu0
        %v1876 = vpop.f32.mrb[0].mxu0
        %v1877 = vadd.f32 0.0, %v1876
        %v1878 = vpop.f32.mrb[0].mxu0
        %1879 = vmatprep.mubr.bf16.mxu0 0
        %1880 = vmatmul.mubr.bf16.gmra.mrb[0].mxu0 %v1740
        %v1881 = vpop.f32.mrb[0].mxu0
        %v1882 = vadd.f32 0.0, %v1881
        %v1883 = vpop.f32.mrb[0].mxu0
        %v1884 = vpop.f32.mrb[0].mxu0
        %v1885 = vadd.f32 0.0, %v1884
        %v1886 = vpop.f32.mrb[0].mxu0
        %1887 = vmatprep.mubr.bf16.mxu0 0
        %1888 = vmatmul.mubr.bf16.gmra.mrb[0].mxu0 %v1741
        %v1889 = vpop.f32.mrb[0].mxu0
        %v1890 = vadd.f32 0.0, %v1889
        %v1891 = vpop.f32.mrb[0].mxu0
        %v1892 = vpop.f32.mrb[0].mxu0
        %v1893 = vadd.f32 0.0, %v1892
        %v1894 = vpop.f32.mrb[0].mxu0
        %1895 = vmatprep.mubr.bf16.mxu0 0
        %1896 = vmatmul.mubr.bf16.gmra.mrb[0].mxu0 %v1742
        %v1897 = vpop.f32.mrb[0].mxu0
        %v1898 = vadd.f32 0.0, %v1897
        %v1899 = vpop.f32.mrb[0].mxu0
        %v1900 = vpop.f32.mrb[0].mxu0
        %v1901 = vadd.f32 0.0, %v1900
        %v1902 = vpop.f32.mrb[0].mxu0
        %1903 = vmatprep.mubr.bf16.mxu0 0
        %1904 = vmatmul.mubr.bf16.gmra.mrb[0].mxu0 %v1743
        %v1905 = vpop.f32.mrb[0].mxu0
        %v1906 = vadd.f32 0.0, %v1905
        %v1907 = vpop.f32.mrb[0].mxu0
        %v1908 = vpop.f32.mrb[0].mxu0
        %v1909 = vadd.f32 0.0, %v1908
        %v1910 = vpop.f32.mrb[0].mxu0
        %1911 = vmatprep.mubr.bf16.mxu0 0
        %1912 = vmatmul.mubr.bf16.gmra.mrb[0].mxu0 %v1744
        %v1913 = vpop.f32.mrb[0].mxu0
        %v1914 = vadd.f32 0.0, %v1913
        %v1915 = vpop.f32.mrb[0].mxu0
        %v1916 = vpop.f32.mrb[0].mxu0
        %v1917 = vadd.f32 0.0, %v1916
        %v1918 = vpop.f32.mrb[0].mxu0
        %1919 = vmatprep.mubr.bf16.mxu0 0
        %1920 = vmatmul.mubr.bf16.gmra.mrb[0].mxu0 %v1745
        %v1921 = vpop.f32.mrb[0].mxu0
        %v1922 = vadd.f32 0.0, %v1921
        %v1923 = vpop.f32.mrb[0].mxu0
        %v1924 = vpop.f32.mrb[0].mxu0
        %v1925 = vadd.f32 0.0, %v1924
        %v1926 = vpop.f32.mrb[0].mxu0
        %1927 = vmatprep.mubr.bf16.mxu0 0
        %1928 = vmatmul.mubr.bf16.gmra.mrb[0].mxu0 %v1746
        %v1929 = vpop.f32.mrb[0].mxu0
        %v1930 = vadd.f32 0.0, %v1929
        %v1931 = vpop.f32.mrb[0].mxu0
        %v1932 = vpop.f32.mrb[0].mxu0
        %v1933 = vadd.f32 0.0, %v1932
        %v1934 = vpop.f32.mrb[0].mxu0
        %1935 = vmatprep.mubr.bf16.mxu0 0
        %1936 = vmatmul.mubr.bf16.gmra.mrb[0].mxu0 %v1747
        %v1937 = vpop.f32.mrb[0].mxu0
        %v1938 = vadd.f32 0.0, %v1937
        %v1939 = vpop.f32.mrb[0].mxu0
        %v1940 = vpop.f32.mrb[0].mxu0
        %v1941 = vadd.f32 0.0, %v1940
        %v1942 = vpop.f32.mrb[0].mxu0
        %1943 = vmatprep.mubr.bf16.mxu0 0
        %1944 = vmatmul.mubr.bf16.gmra.mrb[0].mxu0 %v1748
        %v1945 = vpop.f32.mrb[0].mxu0
        %v1946 = vadd.f32 0.0, %v1945
        %v1947 = vpop.f32.mrb[0].mxu0
        %v1948 = vpop.f32.mrb[0].mxu0
        %v1949 = vadd.f32 0.0, %v1948
        %v1950 = vpop.f32.mrb[0].mxu0
        %1951 = vmatprep.mubr.bf16.mxu0 0
        %1952 = vmatmul.mubr.bf16.gmra.mrb[0].mxu0 %v1749
        %v1953 = vpop.f32.mrb[0].mxu0
        %v1954 = vadd.f32 0.0, %v1953
        %v1955 = vpop.f32.mrb[0].mxu0
        %v1956 = vpop.f32.mrb[0].mxu0
        %v1957 = vadd.f32 0.0, %v1956
        %v1958 = vpop.f32.mrb[0].mxu0
        %1959 = vdwg.mxu0
        %v1960 = vadd.f32 %v1708, %v1850
        %v1961 = vadd.f32 %v1709, %v1853
        %v1962 = vadd.f32 %v1710, %v1858
        %v1963 = vadd.f32 %v1711, %v1861
        %v1964 = vadd.f32 %v1712, %v1866
        %v1965 = vadd.f32 %v1713, %v1869
        %v1966 = vadd.f32 %v1714, %v1874
        %v1967 = vadd.f32 %v1715, %v1877
        %v1968 = vadd.f32 %v1716, %v1882
        %v1969 = vadd.f32 %v1717, %v1885
        %v1970 = vadd.f32 %v1718, %v1890
        %v1971 = vadd.f32 %v1719, %v1893
        %v1972 = vadd.f32 %v1720, %v1898
        %v1973 = vadd.f32 %v1721, %v1901
        %v1974 = vadd.f32 %v1722, %v1906
        %v1975 = vadd.f32 %v1723, %v1909
        %v1976 = vadd.f32 %v1724, %v1914
        %v1977 = vadd.f32 %v1725, %v1917
        %v1978 = vadd.f32 %v1726, %v1922
        %v1979 = vadd.f32 %v1727, %v1925
        %v1980 = vadd.f32 %v1728, %v1930
        %v1981 = vadd.f32 %v1729, %v1933
        %v1982 = vadd.f32 %v1730, %v1938
        %v1983 = vadd.f32 %v1731, %v1941
        %v1984 = vadd.f32 %v1732, %v1946
        %v1985 = vadd.f32 %v1733, %v1949
        %v1986 = vadd.f32 %v1734, %v1954
        %v1987 = vadd.f32 %v1735, %v1957
        %1988 = vst [vmem:[#allocation3] sm:$0xff] %v1960
        %1989 = vst [vmem:[#allocation3 + $0x8] sm:$0xff] %v1961
        %1990 = vst [vmem:[#allocation3 + $0x10] sm:$0xff] %v1962
        %1991 = vst [vmem:[#allocation3 + $0x18] sm:$0xff] %v1963
        %1992 = vst [vmem:[#allocation3 + $0x20] sm:$0xff] %v1964
        %1993 = vst [vmem:[#allocation3 + $0x28] sm:$0xff] %v1965
        %1994 = vst [vmem:[#allocation3 + $0x30] sm:$0xff] %v1966
        %1995 = vst [vmem:[#allocation3 + $0x38] sm:$0xff] %v1967
        %1996 = vst [vmem:[#allocation3 + $0x40] sm:$0xff] %v1968
        %1997 = vst [vmem:[#allocation3 + $0x48] sm:$0xff] %v1969
        %1998 = vst [vmem:[#allocation3 + $0x50] sm:$0xff] %v1970
        %1999 = vst [vmem:[#allocation3 + $0x58] sm:$0xff] %v1971
        %2000 = vst [vmem:[#allocation3 + $0x60] sm:$0xff] %v1972
        %2001 = vst [vmem:[#allocation3 + $0x68] sm:$0xff] %v1973
        %2002 = vst [vmem:[#allocation3 + $0x70] sm:$0xff] %v1974
        %2003 = vst [vmem:[#allocation3 + $0x78] sm:$0xff] %v1975
        %2004 = vst [vmem:[#allocation3 + $0x80] sm:$0xff] %v1976
        %2005 = vst [vmem:[#allocation3 + $0x88] sm:$0xff] %v1977
        %2006 = vst [vmem:[#allocation3 + $0x90] sm:$0xff] %v1978
        %2007 = vst [vmem:[#allocation3 + $0x98] sm:$0xff] %v1979
        %2008 = vst [vmem:[#allocation3 + $0xa0] sm:$0xff] %v1980
        %2009 = vst [vmem:[#allocation3 + $0xa8] sm:$0xff] %v1981
        %2010 = vst [vmem:[#allocation3 + $0xb0] sm:$0xff] %v1982
        %2011 = vst [vmem:[#allocation3 + $0xb8] sm:$0xff] %v1983
        %2012 = vst [vmem:[#allocation3 + $0xc0] sm:$0xff] %v1984
        %2013 = vst [vmem:[#allocation3 + $0xc8] sm:$0xff] %v1985
        %2014 = vst [vmem:[#allocation3 + $0xd0] sm:$0xff] %v1986
        %2015 = vst [vmem:[#allocation3 + $0xd8] sm:$0xff] %v1987
        %v2016 = vld [vmem:[#allocation3] sm:$0xff]
        %v2017 = vld [vmem:[#allocation3 + $0x8] sm:$0xff]
        %v2018 = vld [vmem:[#allocation3 + $0x10] sm:$0xff]
        %v2019 = vld [vmem:[#allocation3 + $0x18] sm:$0xff]
        %v2020 = vld [vmem:[#allocation3 + $0x20] sm:$0xff]
        %v2021 = vld [vmem:[#allocation3 + $0x28] sm:$0xff]
        %v2022 = vld [vmem:[#allocation3 + $0x30] sm:$0xff]
        %v2023 = vld [vmem:[#allocation3 + $0x38] sm:$0xff]
        %v2024 = vld [vmem:[#allocation3 + $0x40] sm:$0xff]
        %v2025 = vld [vmem:[#allocation3 + $0x48] sm:$0xff]
        %v2026 = vld [vmem:[#allocation3 + $0x50] sm:$0xff]
        %v2027 = vld [vmem:[#allocation3 + $0x58] sm:$0xff]
        %v2028 = vld [vmem:[#allocation3 + $0x60] sm:$0xff]
        %v2029 = vld [vmem:[#allocation3 + $0x68] sm:$0xff]
        %v2030 = vld [vmem:[#allocation3 + $0x70] sm:$0xff]
        %v2031 = vld [vmem:[#allocation3 + $0x78] sm:$0xff]
        %v2032 = vld [vmem:[#allocation3 + $0x80] sm:$0xff]
        %v2033 = vld [vmem:[#allocation3 + $0x88] sm:$0xff]
        %v2034 = vld [vmem:[#allocation3 + $0x90] sm:$0xff]
        %v2035 = vld [vmem:[#allocation3 + $0x98] sm:$0xff]
        %v2036 = vld [vmem:[#allocation3 + $0xa0] sm:$0xff]
        %v2037 = vld [vmem:[#allocation3 + $0xa8] sm:$0xff]
        %v2038 = vld [vmem:[#allocation3 + $0xb0] sm:$0xff]
        %v2039 = vld [vmem:[#allocation3 + $0xb8] sm:$0xff]
        %v2040 = vld [vmem:[#allocation3 + $0xc0] sm:$0xff]
        %v2041 = vld [vmem:[#allocation3 + $0xc8] sm:$0xff]
        %v2042 = vld [vmem:[#allocation3 + $0xd0] sm:$0xff]
        %v2043 = vld [vmem:[#allocation3 + $0xd8] sm:$0xff]
        %v2044 = vld [vmem:[#allocation2 + $0x8] sm:$0xff]
        %v2045 = vld [vmem:[#allocation2 + $0x10] sm:$0xff]
        %v2046 = vld [vmem:[#allocation2 + $0x18] sm:$0xff]
        %v2047 = vld [vmem:[#allocation2 + $0x20] sm:$0xff]
        %v2048 = vld [vmem:[#allocation2 + $0x28] sm:$0xff]
        %v2049 = vld [vmem:[#allocation2 + $0x30] sm:$0xff]
        %v2050 = vld [vmem:[#allocation2 + $0x38] sm:$0xff]
        %v2051 = vld [vmem:[#allocation2 + $0x40] sm:$0xff]
        %v2052 = vld [vmem:[#allocation2 + $0x48] sm:$0xff]
        %v2053 = vld [vmem:[#allocation2 + $0x50] sm:$0xff]
        %v2054 = vld [vmem:[#allocation2 + $0x58] sm:$0xff]
        %v2055 = vld [vmem:[#allocation2 + $0x60] sm:$0xff]
        %v2056 = vld [vmem:[#allocation2 + $0x68] sm:$0xff]
        %v2057 = vld [vmem:[#allocation2 + $0x70] sm:$0xff]
        %v2058 = vld [vmem:[#allocation2 + $0x78] sm:$0x1]
        %s2059 = scalar_lea.vmem [#allocation9], 256
        %v2060 = vld [vmem:[%s2059] sm:$0xf]
        %v2061 = vld [vmem:[%s2059 + $0x4] sm:$0xf]
        %v2062 = vld [vmem:[%s2059 + $0x8] sm:$0xf]
        %v2063 = vld [vmem:[%s2059 + $0xc] sm:$0xf]
        %v2064 = vld [vmem:[%s2059 + $0x10] sm:$0xf]
        %v2065 = vld [vmem:[%s2059 + $0x14] sm:$0xf]
        %v2066 = vld [vmem:[%s2059 + $0x18] sm:$0xf]
        %v2067 = vld [vmem:[%s2059 + $0x1c] sm:$0xf]
        %v2068 = vld [vmem:[%s2059 + $0x20] sm:$0xf]
        %v2069 = vld [vmem:[%s2059 + $0x24] sm:$0xf]
        %v2070 = vld [vmem:[%s2059 + $0x28] sm:$0xf]
        %v2071 = vld [vmem:[%s2059 + $0x2c] sm:$0xf]
        %v2072 = vld [vmem:[%s2059 + $0x30] sm:$0xf]
        %v2073 = vld [vmem:[%s2059 + $0x34] sm:$0xf]
        %v2074 = vld [vmem:[%s2059 + $0x38] sm:$0xf]
        %v2075 = vld [vmem:[%s2059 + $0x3c] sm:$0xf]
        %v2077 = vshrl.u32 %v2044, 16
        %v2079 = vshll.u32 %v2044, 16
        %v2081 = vrot.slane %v2079, 1
        %v2082 = vor.u32 %v2077, %v2081
        %v2084 = vshll.u32 %v2045, 16
        %v2086 = vrot.slane %v2084, 1
        %v2087 = vsel %vm960, %v2082, %v2086
        %v2088 = vshrl.u32 %v2045, 16
        %v2090 = vor.u32 %v2088, %v2086
        %v2092 = vshll.u32 %v2046, 16
        %v2094 = vrot.slane %v2092, 1
        %v2095 = vsel %vm960, %v2090, %v2094
        %v2096 = vshrl.u32 %v2046, 16
        %v2098 = vor.u32 %v2096, %v2094
        %v2100 = vshll.u32 %v2047, 16
        %v2102 = vrot.slane %v2100, 1
        %v2103 = vsel %vm960, %v2098, %v2102
        %v2104 = vshrl.u32 %v2047, 16
        %v2106 = vor.u32 %v2104, %v2102
        %v2108 = vshll.u32 %v2048, 16
        %v2110 = vrot.slane %v2108, 1
        %v2111 = vsel %vm960, %v2106, %v2110
        %v2112 = vshrl.u32 %v2048, 16
        %v2114 = vor.u32 %v2112, %v2110
        %v2116 = vshll.u32 %v2049, 16
        %v2118 = vrot.slane %v2116, 1
        %v2119 = vsel %vm960, %v2114, %v2118
        %v2120 = vshrl.u32 %v2049, 16
        %v2122 = vor.u32 %v2120, %v2118
        %v2124 = vshll.u32 %v2050, 16
        %v2126 = vrot.slane %v2124, 1
        %v2127 = vsel %vm960, %v2122, %v2126
        %v2128 = vshrl.u32 %v2050, 16
        %v2130 = vor.u32 %v2128, %v2126
        %v2132 = vshll.u32 %v2051, 16
        %v2134 = vrot.slane %v2132, 1
        %v2135 = vsel %vm960, %v2130, %v2134
        %v2136 = vshrl.u32 %v2051, 16
        %v2138 = vor.u32 %v2136, %v2134
        %v2140 = vshll.u32 %v2052, 16
        %v2142 = vrot.slane %v2140, 1
        %v2143 = vsel %vm960, %v2138, %v2142
        %v2144 = vshrl.u32 %v2052, 16
        %v2146 = vor.u32 %v2144, %v2142
        %v2148 = vshll.u32 %v2053, 16
        %v2150 = vrot.slane %v2148, 1
        %v2151 = vsel %vm960, %v2146, %v2150
        %v2152 = vshrl.u32 %v2053, 16
        %v2154 = vor.u32 %v2152, %v2150
        %v2156 = vshll.u32 %v2054, 16
        %v2158 = vrot.slane %v2156, 1
        %v2159 = vsel %vm960, %v2154, %v2158
        %v2160 = vshrl.u32 %v2054, 16
        %v2162 = vor.u32 %v2160, %v2158
        %v2164 = vshll.u32 %v2055, 16
        %v2166 = vrot.slane %v2164, 1
        %v2167 = vsel %vm960, %v2162, %v2166
        %v2168 = vshrl.u32 %v2055, 16
        %v2170 = vor.u32 %v2168, %v2166
        %v2172 = vshll.u32 %v2056, 16
        %v2174 = vrot.slane %v2172, 1
        %v2175 = vsel %vm960, %v2170, %v2174
        %v2176 = vshrl.u32 %v2056, 16
        %v2178 = vor.u32 %v2176, %v2174
        %v2180 = vshll.u32 %v2057, 16
        %v2182 = vrot.slane %v2180, 1
        %v2183 = vsel %vm960, %v2178, %v2182
        %v2184 = vshrl.u32 %v2057, 16
        %v2186 = vor.u32 %v2184, %v2182
        %v2188 = vshll.u32 %v2058, 16
        %v2190 = vrot.slane %v2188, 1
        %v2191 = vsel %vm960, %v2186, %v2190
        %v2222 = vunpack.c.l.b16 %v2060
        %v2223 = vunpack.c.l.b16 %v2061
        %v2224 = vunpack.c.l.b16 %v2062
        %v2225 = vunpack.c.l.b16 %v2063
        %v2226 = vunpack.c.l.b16 %v2064
        %v2227 = vunpack.c.l.b16 %v2065
        %v2228 = vunpack.c.l.b16 %v2066
        %v2229 = vunpack.c.l.b16 %v2067
        %v2230 = vunpack.c.l.b16 %v2068
        %v2231 = vunpack.c.l.b16 %v2069
        %v2232 = vunpack.c.l.b16 %v2070
        %v2233 = vunpack.c.l.b16 %v2071
        %v2234 = vunpack.c.l.b16 %v2072
        %v2235 = vunpack.c.l.b16 %v2073
        %v2236 = vunpack.c.l.b16 %v2074
        %v2237 = vunpack.c.l.b16 %v2075
        %v2238 = vpack.c.b16 %v2223, %v2222
        %v2239 = vpack.c.b16 %v2225, %v2224
        %v2240 = vpack.c.b16 %v2227, %v2226
        %v2241 = vpack.c.b16 %v2229, %v2228
        %v2242 = vpack.c.b16 %v2231, %v2230
        %v2243 = vpack.c.b16 %v2233, %v2232
        %v2244 = vpack.c.b16 %v2235, %v2234
        %v2245 = vpack.c.b16 %v2237, %v2236
        %2254 = vmatprep.subr.bf16.mxu0 0
        %2255 = vmatpush1.bf16.msra.mxu0 %v2238
        %2256 = vmatprep.subr.bf16.mxu0 0
        %2257 = vmatpush1.bf16.msra.mxu0 %v2239
        %2258 = vmatprep.subr.bf16.mxu0 0
        %2259 = vmatpush1.bf16.msra.mxu0 %v2240
        %2260 = vmatprep.subr.bf16.mxu0 0
        %2261 = vmatpush1.bf16.msra.mxu0 %v2241
        %2262 = vmatprep.subr.bf16.mxu0 0
        %2263 = vmatpush1.bf16.msra.mxu0 %v2242
        %2264 = vmatprep.subr.bf16.mxu0 0
        %2265 = vmatpush1.bf16.msra.mxu0 %v2243
        %2266 = vmatprep.subr.bf16.mxu0 0
        %2267 = vmatpush1.bf16.msra.mxu0 %v2244
        %2268 = vmatprep.subr.bf16.mxu0 0
        %2269 = vmatpush1.bf16.msra.mxu0 %v2245
        %2270 = vmatprep.subr.bf16.mxu0 0
        %2271 = vmatpush1.bf16.msra.mxu0 0
        %2272 = vmatprep.subr.bf16.mxu0 0
        %2273 = vmatpush1.bf16.msra.mxu0 0
        %2274 = vmatprep.subr.bf16.mxu0 0
        %2275 = vmatpush1.bf16.msra.mxu0 0
        %2276 = vmatprep.subr.bf16.mxu0 0
        %2277 = vmatpush1.bf16.msra.mxu0 0
        %2278 = vmatprep.subr.bf16.mxu0 0
        %2279 = vmatpush1.bf16.msra.mxu0 0
        %2280 = vmatprep.subr.bf16.mxu0 0
        %2281 = vmatpush1.bf16.msra.mxu0 0
        %2282 = vmatprep.subr.bf16.mxu0 0
        %2283 = vmatpush1.bf16.msra.mxu0 0
        %2284 = vmatprep.subr.bf16.mxu0 0
        %2285 = vmatpush1.bf16.msra.mxu0 0
        %2286 = vmatprep.mubr.bf16.mxu0 0
        %2287 = vmatmul.mubr.bf16.gmra.mrb[0].mxu0 %v2087
        %v2288 = vpop.f32.mrb[0].mxu0
        %v2289 = vadd.f32 0.0, %v2288
        %v2290 = vpop.f32.mrb[0].mxu0
        %v2291 = vpop.f32.mrb[0].mxu0
        %v2292 = vadd.f32 0.0, %v2291
        %v2293 = vpop.f32.mrb[0].mxu0
        %2294 = vmatprep.mubr.bf16.mxu0 0
        %2295 = vmatmul.mubr.bf16.gmra.mrb[0].mxu0 %v2095
        %v2296 = vpop.f32.mrb[0].mxu0
        %v2297 = vadd.f32 0.0, %v2296
        %v2298 = vpop.f32.mrb[0].mxu0
        %v2299 = vpop.f32.mrb[0].mxu0
        %v2300 = vadd.f32 0.0, %v2299
        %v2301 = vpop.f32.mrb[0].mxu0
        %2302 = vmatprep.mubr.bf16.mxu0 0
        %2303 = vmatmul.mubr.bf16.gmra.mrb[0].mxu0 %v2103
        %v2304 = vpop.f32.mrb[0].mxu0
        %v2305 = vadd.f32 0.0, %v2304
        %v2306 = vpop.f32.mrb[0].mxu0
        %v2307 = vpop.f32.mrb[0].mxu0
        %v2308 = vadd.f32 0.0, %v2307
        %v2309 = vpop.f32.mrb[0].mxu0
        %2310 = vmatprep.mubr.bf16.mxu0 0
        %2311 = vmatmul.mubr.bf16.gmra.mrb[0].mxu0 %v2111
        %v2312 = vpop.f32.mrb[0].mxu0
        %v2313 = vadd.f32 0.0, %v2312
        %v2314 = vpop.f32.mrb[0].mxu0
        %v2315 = vpop.f32.mrb[0].mxu0
        %v2316 = vadd.f32 0.0, %v2315
        %v2317 = vpop.f32.mrb[0].mxu0
        %2318 = vmatprep.mubr.bf16.mxu0 0
        %2319 = vmatmul.mubr.bf16.gmra.mrb[0].mxu0 %v2119
        %v2320 = vpop.f32.mrb[0].mxu0
        %v2321 = vadd.f32 0.0, %v2320
        %v2322 = vpop.f32.mrb[0].mxu0
        %v2323 = vpop.f32.mrb[0].mxu0
        %v2324 = vadd.f32 0.0, %v2323
        %v2325 = vpop.f32.mrb[0].mxu0
        %2326 = vmatprep.mubr.bf16.mxu0 0
        %2327 = vmatmul.mubr.bf16.gmra.mrb[0].mxu0 %v2127
        %v2328 = vpop.f32.mrb[0].mxu0
        %v2329 = vadd.f32 0.0, %v2328
        %v2330 = vpop.f32.mrb[0].mxu0
        %v2331 = vpop.f32.mrb[0].mxu0
        %v2332 = vadd.f32 0.0, %v2331
        %v2333 = vpop.f32.mrb[0].mxu0
        %2334 = vmatprep.mubr.bf16.mxu0 0
        %2335 = vmatmul.mubr.bf16.gmra.mrb[0].mxu0 %v2135
        %v2336 = vpop.f32.mrb[0].mxu0
        %v2337 = vadd.f32 0.0, %v2336
        %v2338 = vpop.f32.mrb[0].mxu0
        %v2339 = vpop.f32.mrb[0].mxu0
        %v2340 = vadd.f32 0.0, %v2339
        %v2341 = vpop.f32.mrb[0].mxu0
        %2342 = vmatprep.mubr.bf16.mxu0 0
        %2343 = vmatmul.mubr.bf16.gmra.mrb[0].mxu0 %v2143
        %v2344 = vpop.f32.mrb[0].mxu0
        %v2345 = vadd.f32 0.0, %v2344
        %v2346 = vpop.f32.mrb[0].mxu0
        %v2347 = vpop.f32.mrb[0].mxu0
        %v2348 = vadd.f32 0.0, %v2347
        %v2349 = vpop.f32.mrb[0].mxu0
        %2350 = vmatprep.mubr.bf16.mxu0 0
        %2351 = vmatmul.mubr.bf16.gmra.mrb[0].mxu0 %v2151
        %v2352 = vpop.f32.mrb[0].mxu0
        %v2353 = vadd.f32 0.0, %v2352
        %v2354 = vpop.f32.mrb[0].mxu0
        %v2355 = vpop.f32.mrb[0].mxu0
        %v2356 = vadd.f32 0.0, %v2355
        %v2357 = vpop.f32.mrb[0].mxu0
        %2358 = vmatprep.mubr.bf16.mxu0 0
        %2359 = vmatmul.mubr.bf16.gmra.mrb[0].mxu0 %v2159
        %v2360 = vpop.f32.mrb[0].mxu0
        %v2361 = vadd.f32 0.0, %v2360
        %v2362 = vpop.f32.mrb[0].mxu0
        %v2363 = vpop.f32.mrb[0].mxu0
        %v2364 = vadd.f32 0.0, %v2363
        %v2365 = vpop.f32.mrb[0].mxu0
        %2366 = vmatprep.mubr.bf16.mxu0 0
        %2367 = vmatmul.mubr.bf16.gmra.mrb[0].mxu0 %v2167
        %v2368 = vpop.f32.mrb[0].mxu0
        %v2369 = vadd.f32 0.0, %v2368
        %v2370 = vpop.f32.mrb[0].mxu0
        %v2371 = vpop.f32.mrb[0].mxu0
        %v2372 = vadd.f32 0.0, %v2371
        %v2373 = vpop.f32.mrb[0].mxu0
        %2374 = vmatprep.mubr.bf16.mxu0 0
        %2375 = vmatmul.mubr.bf16.gmra.mrb[0].mxu0 %v2175
        %v2376 = vpop.f32.mrb[0].mxu0
        %v2377 = vadd.f32 0.0, %v2376
        %v2378 = vpop.f32.mrb[0].mxu0
        %v2379 = vpop.f32.mrb[0].mxu0
        %v2380 = vadd.f32 0.0, %v2379
        %v2381 = vpop.f32.mrb[0].mxu0
        %2382 = vmatprep.mubr.bf16.mxu0 0
        %2383 = vmatmul.mubr.bf16.gmra.mrb[0].mxu0 %v2183
        %v2384 = vpop.f32.mrb[0].mxu0
        %v2385 = vadd.f32 0.0, %v2384
        %v2386 = vpop.f32.mrb[0].mxu0
        %v2387 = vpop.f32.mrb[0].mxu0
        %v2388 = vadd.f32 0.0, %v2387
        %v2389 = vpop.f32.mrb[0].mxu0
        %2390 = vmatprep.mubr.bf16.mxu0 0
        %2391 = vmatmul.mubr.bf16.gmra.mrb[0].mxu0 %v2191
        %v2392 = vpop.f32.mrb[0].mxu0
        %v2393 = vadd.f32 0.0, %v2392
        %v2394 = vpop.f32.mrb[0].mxu0
        %v2395 = vpop.f32.mrb[0].mxu0
        %v2396 = vadd.f32 0.0, %v2395
        %v2397 = vpop.f32.mrb[0].mxu0
        %2398 = vdwg.mxu0
        %v2399 = vadd.f32 %v2016, %v2289
        %v2400 = vadd.f32 %v2017, %v2292
        %v2401 = vadd.f32 %v2018, %v2297
        %v2402 = vadd.f32 %v2019, %v2300
        %v2403 = vadd.f32 %v2020, %v2305
        %v2404 = vadd.f32 %v2021, %v2308
        %v2405 = vadd.f32 %v2022, %v2313
        %v2406 = vadd.f32 %v2023, %v2316
        %v2407 = vadd.f32 %v2024, %v2321
        %v2408 = vadd.f32 %v2025, %v2324
        %v2409 = vadd.f32 %v2026, %v2329
        %v2410 = vadd.f32 %v2027, %v2332
        %v2411 = vadd.f32 %v2028, %v2337
        %v2412 = vadd.f32 %v2029, %v2340
        %v2413 = vadd.f32 %v2030, %v2345
        %v2414 = vadd.f32 %v2031, %v2348
        %v2415 = vadd.f32 %v2032, %v2353
        %v2416 = vadd.f32 %v2033, %v2356
        %v2417 = vadd.f32 %v2034, %v2361
        %v2418 = vadd.f32 %v2035, %v2364
        %v2419 = vadd.f32 %v2036, %v2369
        %v2420 = vadd.f32 %v2037, %v2372
        %v2421 = vadd.f32 %v2038, %v2377
        %v2422 = vadd.f32 %v2039, %v2380
        %v2423 = vadd.f32 %v2040, %v2385
        %v2424 = vadd.f32 %v2041, %v2388
        %v2425 = vadd.f32 %v2042, %v2393
        %v2426 = vadd.f32 %v2043, %v2396
        %2427 = vst [vmem:[#allocation3] sm:$0xff] %v2399
        %2428 = vst [vmem:[#allocation3 + $0x8] sm:$0xff] %v2400
        %2429 = vst [vmem:[#allocation3 + $0x10] sm:$0xff] %v2401
        %2430 = vst [vmem:[#allocation3 + $0x18] sm:$0xff] %v2402
        %2431 = vst [vmem:[#allocation3 + $0x20] sm:$0xff] %v2403
        %2432 = vst [vmem:[#allocation3 + $0x28] sm:$0xff] %v2404
        %2433 = vst [vmem:[#allocation3 + $0x30] sm:$0xff] %v2405
        %2434 = vst [vmem:[#allocation3 + $0x38] sm:$0xff] %v2406
        %2435 = vst [vmem:[#allocation3 + $0x40] sm:$0xff] %v2407
        %2436 = vst [vmem:[#allocation3 + $0x48] sm:$0xff] %v2408
        %2437 = vst [vmem:[#allocation3 + $0x50] sm:$0xff] %v2409
        %2438 = vst [vmem:[#allocation3 + $0x58] sm:$0xff] %v2410
        %2439 = vst [vmem:[#allocation3 + $0x60] sm:$0xff] %v2411
        %2440 = vst [vmem:[#allocation3 + $0x68] sm:$0xff] %v2412
        %2441 = vst [vmem:[#allocation3 + $0x70] sm:$0xff] %v2413
        %2442 = vst [vmem:[#allocation3 + $0x78] sm:$0xff] %v2414
        %2443 = vst [vmem:[#allocation3 + $0x80] sm:$0xff] %v2415
        %2444 = vst [vmem:[#allocation3 + $0x88] sm:$0xff] %v2416
        %2445 = vst [vmem:[#allocation3 + $0x90] sm:$0xff] %v2417
        %2446 = vst [vmem:[#allocation3 + $0x98] sm:$0xff] %v2418
        %2447 = vst [vmem:[#allocation3 + $0xa0] sm:$0xff] %v2419
        %2448 = vst [vmem:[#allocation3 + $0xa8] sm:$0xff] %v2420
        %2449 = vst [vmem:[#allocation3 + $0xb0] sm:$0xff] %v2421
        %2450 = vst [vmem:[#allocation3 + $0xb8] sm:$0xff] %v2422
        %2451 = vst [vmem:[#allocation3 + $0xc0] sm:$0xff] %v2423
        %2452 = vst [vmem:[#allocation3 + $0xc8] sm:$0xff] %v2424
        %2453 = vst [vmem:[#allocation3 + $0xd0] sm:$0xff] %v2425
        %2454 = vst [vmem:[#allocation3 + $0xd8] sm:$0xff] %v2426
        %v2455 = vld [vmem:[#allocation3] sm:$0xff]
        %v2456 = vld [vmem:[#allocation3 + $0x8] sm:$0xff]
        %v2457 = vld [vmem:[#allocation3 + $0x10] sm:$0xff]
        %v2458 = vld [vmem:[#allocation3 + $0x18] sm:$0xff]
        %v2459 = vld [vmem:[#allocation3 + $0x20] sm:$0xff]
        %v2460 = vld [vmem:[#allocation3 + $0x28] sm:$0xff]
        %v2461 = vld [vmem:[#allocation3 + $0x30] sm:$0xff]
        %v2462 = vld [vmem:[#allocation3 + $0x38] sm:$0xff]
        %v2463 = vld [vmem:[#allocation3 + $0x40] sm:$0xff]
        %v2464 = vld [vmem:[#allocation3 + $0x48] sm:$0xff]
        %v2465 = vld [vmem:[#allocation3 + $0x50] sm:$0xff]
        %v2466 = vld [vmem:[#allocation3 + $0x58] sm:$0xff]
        %v2467 = vld [vmem:[#allocation3 + $0x60] sm:$0xff]
        %v2468 = vld [vmem:[#allocation3 + $0x68] sm:$0xff]
        %v2469 = vld [vmem:[#allocation3 + $0x70] sm:$0xff]
        %v2470 = vld [vmem:[#allocation3 + $0x78] sm:$0xff]
        %v2471 = vld [vmem:[#allocation3 + $0x80] sm:$0xff]
        %v2472 = vld [vmem:[#allocation3 + $0x88] sm:$0xff]
        %v2473 = vld [vmem:[#allocation3 + $0x90] sm:$0xff]
        %v2474 = vld [vmem:[#allocation3 + $0x98] sm:$0xff]
        %v2475 = vld [vmem:[#allocation3 + $0xa0] sm:$0xff]
        %v2476 = vld [vmem:[#allocation3 + $0xa8] sm:$0xff]
        %v2477 = vld [vmem:[#allocation3 + $0xb0] sm:$0xff]
        %v2478 = vld [vmem:[#allocation3 + $0xb8] sm:$0xff]
        %v2479 = vld [vmem:[#allocation3 + $0xc0] sm:$0xff]
        %v2480 = vld [vmem:[#allocation3 + $0xc8] sm:$0xff]
        %v2481 = vld [vmem:[#allocation3 + $0xd0] sm:$0xff]
        %v2482 = vld [vmem:[#allocation3 + $0xd8] sm:$0xff]
        %v2483 = vld [vmem:[#allocation2 + $0x8] sm:$0xfe]
        %v2484 = vld [vmem:[#allocation2 + $0x10] sm:$0xff]
        %v2485 = vld [vmem:[#allocation2 + $0x18] sm:$0xff]
        %v2486 = vld [vmem:[#allocation2 + $0x20] sm:$0xff]
        %v2487 = vld [vmem:[#allocation2 + $0x28] sm:$0xff]
        %v2488 = vld [vmem:[#allocation2 + $0x30] sm:$0xff]
        %v2489 = vld [vmem:[#allocation2 + $0x38] sm:$0xff]
        %v2490 = vld [vmem:[#allocation2 + $0x40] sm:$0xff]
        %v2491 = vld [vmem:[#allocation2 + $0x48] sm:$0xff]
        %v2492 = vld [vmem:[#allocation2 + $0x50] sm:$0xff]
        %v2493 = vld [vmem:[#allocation2 + $0x58] sm:$0xff]
        %v2494 = vld [vmem:[#allocation2 + $0x60] sm:$0xff]
        %v2495 = vld [vmem:[#allocation2 + $0x68] sm:$0xff]
        %v2496 = vld [vmem:[#allocation2 + $0x70] sm:$0xff]
        %v2497 = vld [vmem:[#allocation2 + $0x78] sm:$0x1]
        %s2498 = scalar_lea.vmem [#allocation9], 320
        %v2499 = vld [vmem:[%s2498] sm:$0xf]
        %v2500 = vld [vmem:[%s2498 + $0x4] sm:$0xf]
        %v2501 = vld [vmem:[%s2498 + $0x8] sm:$0xf]
        %v2502 = vld [vmem:[%s2498 + $0xc] sm:$0xf]
        %v2503 = vld [vmem:[%s2498 + $0x10] sm:$0xf]
        %v2504 = vld [vmem:[%s2498 + $0x14] sm:$0xf]
        %v2505 = vld [vmem:[%s2498 + $0x18] sm:$0xf]
        %v2506 = vld [vmem:[%s2498 + $0x1c] sm:$0xf]
        %v2507 = vld [vmem:[%s2498 + $0x20] sm:$0xf]
        %v2508 = vld [vmem:[%s2498 + $0x24] sm:$0xf]
        %v2509 = vld [vmem:[%s2498 + $0x28] sm:$0xf]
        %v2510 = vld [vmem:[%s2498 + $0x2c] sm:$0xf]
        %v2511 = vld [vmem:[%s2498 + $0x30] sm:$0xf]
        %v2512 = vld [vmem:[%s2498 + $0x34] sm:$0xf]
        %v2513 = vld [vmem:[%s2498 + $0x38] sm:$0xf]
        %v2514 = vld [vmem:[%s2498 + $0x3c] sm:$0xf]
        %v2530 = vrot.slane %v2483, 1
        %v2531 = vrot.slane %v2484, 1
        %v2532 = vsel %vm1415, %v2530, %v2531
        %v2533 = vrot.slane %v2485, 1
        %v2534 = vsel %vm1415, %v2531, %v2533
        %v2535 = vrot.slane %v2486, 1
        %v2536 = vsel %vm1415, %v2533, %v2535
        %v2537 = vrot.slane %v2487, 1
        %v2538 = vsel %vm1415, %v2535, %v2537
        %v2539 = vrot.slane %v2488, 1
        %v2540 = vsel %vm1415, %v2537, %v2539
        %v2541 = vrot.slane %v2489, 1
        %v2542 = vsel %vm1415, %v2539, %v2541
        %v2543 = vrot.slane %v2490, 1
        %v2544 = vsel %vm1415, %v2541, %v2543
        %v2545 = vrot.slane %v2491, 1
        %v2546 = vsel %vm1415, %v2543, %v2545
        %v2547 = vrot.slane %v2492, 1
        %v2548 = vsel %vm1415, %v2545, %v2547
        %v2549 = vrot.slane %v2493, 1
        %v2550 = vsel %vm1415, %v2547, %v2549
        %v2551 = vrot.slane %v2494, 1
        %v2552 = vsel %vm1415, %v2549, %v2551
        %v2553 = vrot.slane %v2495, 1
        %v2554 = vsel %vm1415, %v2551, %v2553
        %v2555 = vrot.slane %v2496, 1
        %v2556 = vsel %vm1415, %v2553, %v2555
        %v2557 = vrot.slane %v2497, 1
        %v2558 = vsel %vm1415, %v2555, %v2557
        %v2589 = vunpack.c.l.b16 %v2499
        %v2590 = vunpack.c.l.b16 %v2500
        %v2591 = vunpack.c.l.b16 %v2501
        %v2592 = vunpack.c.l.b16 %v2502
        %v2593 = vunpack.c.l.b16 %v2503
        %v2594 = vunpack.c.l.b16 %v2504
        %v2595 = vunpack.c.l.b16 %v2505
        %v2596 = vunpack.c.l.b16 %v2506
        %v2597 = vunpack.c.l.b16 %v2507
        %v2598 = vunpack.c.l.b16 %v2508
        %v2599 = vunpack.c.l.b16 %v2509
        %v2600 = vunpack.c.l.b16 %v2510
        %v2601 = vunpack.c.l.b16 %v2511
        %v2602 = vunpack.c.l.b16 %v2512
        %v2603 = vunpack.c.l.b16 %v2513
        %v2604 = vunpack.c.l.b16 %v2514
        %v2605 = vpack.c.b16 %v2590, %v2589
        %v2606 = vpack.c.b16 %v2592, %v2591
        %v2607 = vpack.c.b16 %v2594, %v2593
        %v2608 = vpack.c.b16 %v2596, %v2595
        %v2609 = vpack.c.b16 %v2598, %v2597
        %v2610 = vpack.c.b16 %v2600, %v2599
        %v2611 = vpack.c.b16 %v2602, %v2601
        %v2612 = vpack.c.b16 %v2604, %v2603
        %2621 = vmatprep.subr.bf16.mxu0 0
        %2622 = vmatpush1.bf16.msra.mxu0 %v2605
        %2623 = vmatprep.subr.bf16.mxu0 0
        %2624 = vmatpush1.bf16.msra.mxu0 %v2606
        %2625 = vmatprep.subr.bf16.mxu0 0
        %2626 = vmatpush1.bf16.msra.mxu0 %v2607
        %2627 = vmatprep.subr.bf16.mxu0 0
        %2628 = vmatpush1.bf16.msra.mxu0 %v2608
        %2629 = vmatprep.subr.bf16.mxu0 0
        %2630 = vmatpush1.bf16.msra.mxu0 %v2609
        %2631 = vmatprep.subr.bf16.mxu0 0
        %2632 = vmatpush1.bf16.msra.mxu0 %v2610
        %2633 = vmatprep.subr.bf16.mxu0 0
        %2634 = vmatpush1.bf16.msra.mxu0 %v2611
        %2635 = vmatprep.subr.bf16.mxu0 0
        %2636 = vmatpush1.bf16.msra.mxu0 %v2612
        %2637 = vmatprep.subr.bf16.mxu0 0
        %2638 = vmatpush1.bf16.msra.mxu0 0
        %2639 = vmatprep.subr.bf16.mxu0 0
        %2640 = vmatpush1.bf16.msra.mxu0 0
        %2641 = vmatprep.subr.bf16.mxu0 0
        %2642 = vmatpush1.bf16.msra.mxu0 0
        %2643 = vmatprep.subr.bf16.mxu0 0
        %2644 = vmatpush1.bf16.msra.mxu0 0
        %2645 = vmatprep.subr.bf16.mxu0 0
        %2646 = vmatpush1.bf16.msra.mxu0 0
        %2647 = vmatprep.subr.bf16.mxu0 0
        %2648 = vmatpush1.bf16.msra.mxu0 0
        %2649 = vmatprep.subr.bf16.mxu0 0
        %2650 = vmatpush1.bf16.msra.mxu0 0
        %2651 = vmatprep.subr.bf16.mxu0 0
        %2652 = vmatpush1.bf16.msra.mxu0 0
        %2653 = vmatprep.mubr.bf16.mxu0 0
        %2654 = vmatmul.mubr.bf16.gmra.mrb[0].mxu0 %v2532
        %v2655 = vpop.f32.mrb[0].mxu0
        %v2656 = vadd.f32 0.0, %v2655
        %v2657 = vpop.f32.mrb[0].mxu0
        %v2658 = vpop.f32.mrb[0].mxu0
        %v2659 = vadd.f32 0.0, %v2658
        %v2660 = vpop.f32.mrb[0].mxu0
        %2661 = vmatprep.mubr.bf16.mxu0 0
        %2662 = vmatmul.mubr.bf16.gmra.mrb[0].mxu0 %v2534
        %v2663 = vpop.f32.mrb[0].mxu0
        %v2664 = vadd.f32 0.0, %v2663
        %v2665 = vpop.f32.mrb[0].mxu0
        %v2666 = vpop.f32.mrb[0].mxu0
        %v2667 = vadd.f32 0.0, %v2666
        %v2668 = vpop.f32.mrb[0].mxu0
        %2669 = vmatprep.mubr.bf16.mxu0 0
        %2670 = vmatmul.mubr.bf16.gmra.mrb[0].mxu0 %v2536
        %v2671 = vpop.f32.mrb[0].mxu0
        %v2672 = vadd.f32 0.0, %v2671
        %v2673 = vpop.f32.mrb[0].mxu0
        %v2674 = vpop.f32.mrb[0].mxu0
        %v2675 = vadd.f32 0.0, %v2674
        %v2676 = vpop.f32.mrb[0].mxu0
        %2677 = vmatprep.mubr.bf16.mxu0 0
        %2678 = vmatmul.mubr.bf16.gmra.mrb[0].mxu0 %v2538
        %v2679 = vpop.f32.mrb[0].mxu0
        %v2680 = vadd.f32 0.0, %v2679
        %v2681 = vpop.f32.mrb[0].mxu0
        %v2682 = vpop.f32.mrb[0].mxu0
        %v2683 = vadd.f32 0.0, %v2682
        %v2684 = vpop.f32.mrb[0].mxu0
        %2685 = vmatprep.mubr.bf16.mxu0 0
        %2686 = vmatmul.mubr.bf16.gmra.mrb[0].mxu0 %v2540
        %v2687 = vpop.f32.mrb[0].mxu0
        %v2688 = vadd.f32 0.0, %v2687
        %v2689 = vpop.f32.mrb[0].mxu0
        %v2690 = vpop.f32.mrb[0].mxu0
        %v2691 = vadd.f32 0.0, %v2690
        %v2692 = vpop.f32.mrb[0].mxu0
        %2693 = vmatprep.mubr.bf16.mxu0 0
        %2694 = vmatmul.mubr.bf16.gmra.mrb[0].mxu0 %v2542
        %v2695 = vpop.f32.mrb[0].mxu0
        %v2696 = vadd.f32 0.0, %v2695
        %v2697 = vpop.f32.mrb[0].mxu0
        %v2698 = vpop.f32.mrb[0].mxu0
        %v2699 = vadd.f32 0.0, %v2698
        %v2700 = vpop.f32.mrb[0].mxu0
        %2701 = vmatprep.mubr.bf16.mxu0 0
        %2702 = vmatmul.mubr.bf16.gmra.mrb[0].mxu0 %v2544
        %v2703 = vpop.f32.mrb[0].mxu0
        %v2704 = vadd.f32 0.0, %v2703
        %v2705 = vpop.f32.mrb[0].mxu0
        %v2706 = vpop.f32.mrb[0].mxu0
        %v2707 = vadd.f32 0.0, %v2706
        %v2708 = vpop.f32.mrb[0].mxu0
        %2709 = vmatprep.mubr.bf16.mxu0 0
        %2710 = vmatmul.mubr.bf16.gmra.mrb[0].mxu0 %v2546
        %v2711 = vpop.f32.mrb[0].mxu0
        %v2712 = vadd.f32 0.0, %v2711
        %v2713 = vpop.f32.mrb[0].mxu0
        %v2714 = vpop.f32.mrb[0].mxu0
        %v2715 = vadd.f32 0.0, %v2714
        %v2716 = vpop.f32.mrb[0].mxu0
        %2717 = vmatprep.mubr.bf16.mxu0 0
        %2718 = vmatmul.mubr.bf16.gmra.mrb[0].mxu0 %v2548
        %v2719 = vpop.f32.mrb[0].mxu0
        %v2720 = vadd.f32 0.0, %v2719
        %v2721 = vpop.f32.mrb[0].mxu0
        %v2722 = vpop.f32.mrb[0].mxu0
        %v2723 = vadd.f32 0.0, %v2722
        %v2724 = vpop.f32.mrb[0].mxu0
        %2725 = vmatprep.mubr.bf16.mxu0 0
        %2726 = vmatmul.mubr.bf16.gmra.mrb[0].mxu0 %v2550
        %v2727 = vpop.f32.mrb[0].mxu0
        %v2728 = vadd.f32 0.0, %v2727
        %v2729 = vpop.f32.mrb[0].mxu0
        %v2730 = vpop.f32.mrb[0].mxu0
        %v2731 = vadd.f32 0.0, %v2730
        %v2732 = vpop.f32.mrb[0].mxu0
        %2733 = vmatprep.mubr.bf16.mxu0 0
        %2734 = vmatmul.mubr.bf16.gmra.mrb[0].mxu0 %v2552
        %v2735 = vpop.f32.mrb[0].mxu0
        %v2736 = vadd.f32 0.0, %v2735
        %v2737 = vpop.f32.mrb[0].mxu0
        %v2738 = vpop.f32.mrb[0].mxu0
        %v2739 = vadd.f32 0.0, %v2738
        %v2740 = vpop.f32.mrb[0].mxu0
        %2741 = vmatprep.mubr.bf16.mxu0 0
        %2742 = vmatmul.mubr.bf16.gmra.mrb[0].mxu0 %v2554
        %v2743 = vpop.f32.mrb[0].mxu0
        %v2744 = vadd.f32 0.0, %v2743
        %v2745 = vpop.f32.mrb[0].mxu0
        %v2746 = vpop.f32.mrb[0].mxu0
        %v2747 = vadd.f32 0.0, %v2746
        %v2748 = vpop.f32.mrb[0].mxu0
        %2749 = vmatprep.mubr.bf16.mxu0 0
        %2750 = vmatmul.mubr.bf16.gmra.mrb[0].mxu0 %v2556
        %v2751 = vpop.f32.mrb[0].mxu0
        %v2752 = vadd.f32 0.0, %v2751
        %v2753 = vpop.f32.mrb[0].mxu0
        %v2754 = vpop.f32.mrb[0].mxu0
        %v2755 = vadd.f32 0.0, %v2754
        %v2756 = vpop.f32.mrb[0].mxu0
        %2757 = vmatprep.mubr.bf16.mxu0 0
        %2758 = vmatmul.mubr.bf16.gmra.mrb[0].mxu0 %v2558
        %v2759 = vpop.f32.mrb[0].mxu0
        %v2760 = vadd.f32 0.0, %v2759
        %v2761 = vpop.f32.mrb[0].mxu0
        %v2762 = vpop.f32.mrb[0].mxu0
        %v2763 = vadd.f32 0.0, %v2762
        %v2764 = vpop.f32.mrb[0].mxu0
        %2765 = vdwg.mxu0
        %v2766 = vadd.f32 %v2455, %v2656
        %v2767 = vadd.f32 %v2456, %v2659
        %v2768 = vadd.f32 %v2457, %v2664
        %v2769 = vadd.f32 %v2458, %v2667
        %v2770 = vadd.f32 %v2459, %v2672
        %v2771 = vadd.f32 %v2460, %v2675
        %v2772 = vadd.f32 %v2461, %v2680
        %v2773 = vadd.f32 %v2462, %v2683
        %v2774 = vadd.f32 %v2463, %v2688
        %v2775 = vadd.f32 %v2464, %v2691
        %v2776 = vadd.f32 %v2465, %v2696
        %v2777 = vadd.f32 %v2466, %v2699
        %v2778 = vadd.f32 %v2467, %v2704
        %v2779 = vadd.f32 %v2468, %v2707
        %v2780 = vadd.f32 %v2469, %v2712
        %v2781 = vadd.f32 %v2470, %v2715
        %v2782 = vadd.f32 %v2471, %v2720
        %v2783 = vadd.f32 %v2472, %v2723
        %v2784 = vadd.f32 %v2473, %v2728
        %v2785 = vadd.f32 %v2474, %v2731
        %v2786 = vadd.f32 %v2475, %v2736
        %v2787 = vadd.f32 %v2476, %v2739
        %v2788 = vadd.f32 %v2477, %v2744
        %v2789 = vadd.f32 %v2478, %v2747
        %v2790 = vadd.f32 %v2479, %v2752
        %v2791 = vadd.f32 %v2480, %v2755
        %v2792 = vadd.f32 %v2481, %v2760
        %v2793 = vadd.f32 %v2482, %v2763
        %2794 = vst [vmem:[#allocation3] sm:$0xff] %v2766
        %2795 = vst [vmem:[#allocation3 + $0x8] sm:$0xff] %v2767
        %2796 = vst [vmem:[#allocation3 + $0x10] sm:$0xff] %v2768
        %2797 = vst [vmem:[#allocation3 + $0x18] sm:$0xff] %v2769
        %2798 = vst [vmem:[#allocation3 + $0x20] sm:$0xff] %v2770
        %2799 = vst [vmem:[#allocation3 + $0x28] sm:$0xff] %v2771
        %2800 = vst [vmem:[#allocation3 + $0x30] sm:$0xff] %v2772
        %2801 = vst [vmem:[#allocation3 + $0x38] sm:$0xff] %v2773
        %2802 = vst [vmem:[#allocation3 + $0x40] sm:$0xff] %v2774
        %2803 = vst [vmem:[#allocation3 + $0x48] sm:$0xff] %v2775
        %2804 = vst [vmem:[#allocation3 + $0x50] sm:$0xff] %v2776
        %2805 = vst [vmem:[#allocation3 + $0x58] sm:$0xff] %v2777
        %2806 = vst [vmem:[#allocation3 + $0x60] sm:$0xff] %v2778
        %2807 = vst [vmem:[#allocation3 + $0x68] sm:$0xff] %v2779
        %2808 = vst [vmem:[#allocation3 + $0x70] sm:$0xff] %v2780
        %2809 = vst [vmem:[#allocation3 + $0x78] sm:$0xff] %v2781
        %2810 = vst [vmem:[#allocation3 + $0x80] sm:$0xff] %v2782
        %2811 = vst [vmem:[#allocation3 + $0x88] sm:$0xff] %v2783
        %2812 = vst [vmem:[#allocation3 + $0x90] sm:$0xff] %v2784
        %2813 = vst [vmem:[#allocation3 + $0x98] sm:$0xff] %v2785
        %2814 = vst [vmem:[#allocation3 + $0xa0] sm:$0xff] %v2786
        %2815 = vst [vmem:[#allocation3 + $0xa8] sm:$0xff] %v2787
        %2816 = vst [vmem:[#allocation3 + $0xb0] sm:$0xff] %v2788
        %2817 = vst [vmem:[#allocation3 + $0xb8] sm:$0xff] %v2789
        %2818 = vst [vmem:[#allocation3 + $0xc0] sm:$0xff] %v2790
        %2819 = vst [vmem:[#allocation3 + $0xc8] sm:$0xff] %v2791
        %2820 = vst [vmem:[#allocation3 + $0xd0] sm:$0xff] %v2792
        %2821 = vst [vmem:[#allocation3 + $0xd8] sm:$0xff] %v2793
        %v2822 = vld [vmem:[#allocation3] sm:$0xff]
        %v2823 = vld [vmem:[#allocation3 + $0x8] sm:$0xff]
        %v2824 = vld [vmem:[#allocation3 + $0x10] sm:$0xff]
        %v2825 = vld [vmem:[#allocation3 + $0x18] sm:$0xff]
        %v2826 = vld [vmem:[#allocation3 + $0x20] sm:$0xff]
        %v2827 = vld [vmem:[#allocation3 + $0x28] sm:$0xff]
        %v2828 = vld [vmem:[#allocation3 + $0x30] sm:$0xff]
        %v2829 = vld [vmem:[#allocation3 + $0x38] sm:$0xff]
        %v2830 = vld [vmem:[#allocation3 + $0x40] sm:$0xff]
        %v2831 = vld [vmem:[#allocation3 + $0x48] sm:$0xff]
        %v2832 = vld [vmem:[#allocation3 + $0x50] sm:$0xff]
        %v2833 = vld [vmem:[#allocation3 + $0x58] sm:$0xff]
        %v2834 = vld [vmem:[#allocation3 + $0x60] sm:$0xff]
        %v2835 = vld [vmem:[#allocation3 + $0x68] sm:$0xff]
        %v2836 = vld [vmem:[#allocation3 + $0x70] sm:$0xff]
        %v2837 = vld [vmem:[#allocation3 + $0x78] sm:$0xff]
        %v2838 = vld [vmem:[#allocation3 + $0x80] sm:$0xff]
        %v2839 = vld [vmem:[#allocation3 + $0x88] sm:$0xff]
        %v2840 = vld [vmem:[#allocation3 + $0x90] sm:$0xff]
        %v2841 = vld [vmem:[#allocation3 + $0x98] sm:$0xff]
        %v2842 = vld [vmem:[#allocation3 + $0xa0] sm:$0xff]
        %v2843 = vld [vmem:[#allocation3 + $0xa8] sm:$0xff]
        %v2844 = vld [vmem:[#allocation3 + $0xb0] sm:$0xff]
        %v2845 = vld [vmem:[#allocation3 + $0xb8] sm:$0xff]
        %v2846 = vld [vmem:[#allocation3 + $0xc0] sm:$0xff]
        %v2847 = vld [vmem:[#allocation3 + $0xc8] sm:$0xff]
        %v2848 = vld [vmem:[#allocation3 + $0xd0] sm:$0xff]
        %v2849 = vld [vmem:[#allocation3 + $0xd8] sm:$0xff]
        %v2850 = vld [vmem:[#allocation2 + $0x10] sm:$0xff]
        %v2851 = vld [vmem:[#allocation2 + $0x18] sm:$0xff]
        %v2852 = vld [vmem:[#allocation2 + $0x20] sm:$0xff]
        %v2853 = vld [vmem:[#allocation2 + $0x28] sm:$0xff]
        %v2854 = vld [vmem:[#allocation2 + $0x30] sm:$0xff]
        %v2855 = vld [vmem:[#allocation2 + $0x38] sm:$0xff]
        %v2856 = vld [vmem:[#allocation2 + $0x40] sm:$0xff]
        %v2857 = vld [vmem:[#allocation2 + $0x48] sm:$0xff]
        %v2858 = vld [vmem:[#allocation2 + $0x50] sm:$0xff]
        %v2859 = vld [vmem:[#allocation2 + $0x58] sm:$0xff]
        %v2860 = vld [vmem:[#allocation2 + $0x60] sm:$0xff]
        %v2861 = vld [vmem:[#allocation2 + $0x68] sm:$0xff]
        %v2862 = vld [vmem:[#allocation2 + $0x70] sm:$0xff]
        %v2863 = vld [vmem:[#allocation2 + $0x78] sm:$0xff]
        %s2864 = scalar_lea.vmem [#allocation9], 384
        %v2865 = vld [vmem:[%s2864] sm:$0xf]
        %v2866 = vld [vmem:[%s2864 + $0x4] sm:$0xf]
        %v2867 = vld [vmem:[%s2864 + $0x8] sm:$0xf]
        %v2868 = vld [vmem:[%s2864 + $0xc] sm:$0xf]
        %v2869 = vld [vmem:[%s2864 + $0x10] sm:$0xf]
        %v2870 = vld [vmem:[%s2864 + $0x14] sm:$0xf]
        %v2871 = vld [vmem:[%s2864 + $0x18] sm:$0xf]
        %v2872 = vld [vmem:[%s2864 + $0x1c] sm:$0xf]
        %v2873 = vld [vmem:[%s2864 + $0x20] sm:$0xf]
        %v2874 = vld [vmem:[%s2864 + $0x24] sm:$0xf]
        %v2875 = vld [vmem:[%s2864 + $0x28] sm:$0xf]
        %v2876 = vld [vmem:[%s2864 + $0x2c] sm:$0xf]
        %v2877 = vld [vmem:[%s2864 + $0x30] sm:$0xf]
        %v2878 = vld [vmem:[%s2864 + $0x34] sm:$0xf]
        %v2879 = vld [vmem:[%s2864 + $0x38] sm:$0xf]
        %v2880 = vld [vmem:[%s2864 + $0x3c] sm:$0xf]
        %v2897 = vunpack.c.l.b16 %v2865
        %v2898 = vunpack.c.l.b16 %v2866
        %v2899 = vunpack.c.l.b16 %v2867
        %v2900 = vunpack.c.l.b16 %v2868
        %v2901 = vunpack.c.l.b16 %v2869
        %v2902 = vunpack.c.l.b16 %v2870
        %v2903 = vunpack.c.l.b16 %v2871
        %v2904 = vunpack.c.l.b16 %v2872
        %v2905 = vunpack.c.l.b16 %v2873
        %v2906 = vunpack.c.l.b16 %v2874
        %v2907 = vunpack.c.l.b16 %v2875
        %v2908 = vunpack.c.l.b16 %v2876
        %v2909 = vunpack.c.l.b16 %v2877
        %v2910 = vunpack.c.l.b16 %v2878
        %v2911 = vunpack.c.l.b16 %v2879
        %v2912 = vunpack.c.l.b16 %v2880
        %v2913 = vpack.c.b16 %v2898, %v2897
        %v2914 = vpack.c.b16 %v2900, %v2899
        %v2915 = vpack.c.b16 %v2902, %v2901
        %v2916 = vpack.c.b16 %v2904, %v2903
        %v2917 = vpack.c.b16 %v2906, %v2905
        %v2918 = vpack.c.b16 %v2908, %v2907
        %v2919 = vpack.c.b16 %v2910, %v2909
        %v2920 = vpack.c.b16 %v2912, %v2911
        %2929 = vmatprep.subr.bf16.mxu0 0
        %2930 = vmatpush1.bf16.msra.mxu0 %v2913
        %2931 = vmatprep.subr.bf16.mxu0 0
        %2932 = vmatpush1.bf16.msra.mxu0 %v2914
        %2933 = vmatprep.subr.bf16.mxu0 0
        %2934 = vmatpush1.bf16.msra.mxu0 %v2915
        %2935 = vmatprep.subr.bf16.mxu0 0
        %2936 = vmatpush1.bf16.msra.mxu0 %v2916
        %2937 = vmatprep.subr.bf16.mxu0 0
        %2938 = vmatpush1.bf16.msra.mxu0 %v2917
        %2939 = vmatprep.subr.bf16.mxu0 0
        %2940 = vmatpush1.bf16.msra.mxu0 %v2918
        %2941 = vmatprep.subr.bf16.mxu0 0
        %2942 = vmatpush1.bf16.msra.mxu0 %v2919
        %2943 = vmatprep.subr.bf16.mxu0 0
        %2944 = vmatpush1.bf16.msra.mxu0 %v2920
        %2945 = vmatprep.subr.bf16.mxu0 0
        %2946 = vmatpush1.bf16.msra.mxu0 0
        %2947 = vmatprep.subr.bf16.mxu0 0
        %2948 = vmatpush1.bf16.msra.mxu0 0
        %2949 = vmatprep.subr.bf16.mxu0 0
        %2950 = vmatpush1.bf16.msra.mxu0 0
        %2951 = vmatprep.subr.bf16.mxu0 0
        %2952 = vmatpush1.bf16.msra.mxu0 0
        %2953 = vmatprep.subr.bf16.mxu0 0
        %2954 = vmatpush1.bf16.msra.mxu0 0
        %2955 = vmatprep.subr.bf16.mxu0 0
        %2956 = vmatpush1.bf16.msra.mxu0 0
        %2957 = vmatprep.subr.bf16.mxu0 0
        %2958 = vmatpush1.bf16.msra.mxu0 0
        %2959 = vmatprep.subr.bf16.mxu0 0
        %2960 = vmatpush1.bf16.msra.mxu0 0
        %2961 = vmatprep.mubr.bf16.mxu0 0
        %2962 = vmatmul.mubr.bf16.gmra.mrb[0].mxu0 %v2850
        %v2963 = vpop.f32.mrb[0].mxu0
        %v2964 = vadd.f32 0.0, %v2963
        %v2965 = vpop.f32.mrb[0].mxu0
        %v2966 = vpop.f32.mrb[0].mxu0
        %v2967 = vadd.f32 0.0, %v2966
        %v2968 = vpop.f32.mrb[0].mxu0
        %2969 = vmatprep.mubr.bf16.mxu0 0
        %2970 = vmatmul.mubr.bf16.gmra.mrb[0].mxu0 %v2851
        %v2971 = vpop.f32.mrb[0].mxu0
        %v2972 = vadd.f32 0.0, %v2971
        %v2973 = vpop.f32.mrb[0].mxu0
        %v2974 = vpop.f32.mrb[0].mxu0
        %v2975 = vadd.f32 0.0, %v2974
        %v2976 = vpop.f32.mrb[0].mxu0
        %2977 = vmatprep.mubr.bf16.mxu0 0
        %2978 = vmatmul.mubr.bf16.gmra.mrb[0].mxu0 %v2852
        %v2979 = vpop.f32.mrb[0].mxu0
        %v2980 = vadd.f32 0.0, %v2979
        %v2981 = vpop.f32.mrb[0].mxu0
        %v2982 = vpop.f32.mrb[0].mxu0
        %v2983 = vadd.f32 0.0, %v2982
        %v2984 = vpop.f32.mrb[0].mxu0
        %2985 = vmatprep.mubr.bf16.mxu0 0
        %2986 = vmatmul.mubr.bf16.gmra.mrb[0].mxu0 %v2853
        %v2987 = vpop.f32.mrb[0].mxu0
        %v2988 = vadd.f32 0.0, %v2987
        %v2989 = vpop.f32.mrb[0].mxu0
        %v2990 = vpop.f32.mrb[0].mxu0
        %v2991 = vadd.f32 0.0, %v2990
        %v2992 = vpop.f32.mrb[0].mxu0
        %2993 = vmatprep.mubr.bf16.mxu0 0
        %2994 = vmatmul.mubr.bf16.gmra.mrb[0].mxu0 %v2854
        %v2995 = vpop.f32.mrb[0].mxu0
        %v2996 = vadd.f32 0.0, %v2995
        %v2997 = vpop.f32.mrb[0].mxu0
        %v2998 = vpop.f32.mrb[0].mxu0
        %v2999 = vadd.f32 0.0, %v2998
        %v3000 = vpop.f32.mrb[0].mxu0
        %3001 = vmatprep.mubr.bf16.mxu0 0
        %3002 = vmatmul.mubr.bf16.gmra.mrb[0].mxu0 %v2855
        %v3003 = vpop.f32.mrb[0].mxu0
        %v3004 = vadd.f32 0.0, %v3003
        %v3005 = vpop.f32.mrb[0].mxu0
        %v3006 = vpop.f32.mrb[0].mxu0
        %v3007 = vadd.f32 0.0, %v3006
        %v3008 = vpop.f32.mrb[0].mxu0
        %3009 = vmatprep.mubr.bf16.mxu0 0
        %3010 = vmatmul.mubr.bf16.gmra.mrb[0].mxu0 %v2856
        %v3011 = vpop.f32.mrb[0].mxu0
        %v3012 = vadd.f32 0.0, %v3011
        %v3013 = vpop.f32.mrb[0].mxu0
        %v3014 = vpop.f32.mrb[0].mxu0
        %v3015 = vadd.f32 0.0, %v3014
        %v3016 = vpop.f32.mrb[0].mxu0
        %3017 = vmatprep.mubr.bf16.mxu0 0
        %3018 = vmatmul.mubr.bf16.gmra.mrb[0].mxu0 %v2857
        %v3019 = vpop.f32.mrb[0].mxu0
        %v3020 = vadd.f32 0.0, %v3019
        %v3021 = vpop.f32.mrb[0].mxu0
        %v3022 = vpop.f32.mrb[0].mxu0
        %v3023 = vadd.f32 0.0, %v3022
        %v3024 = vpop.f32.mrb[0].mxu0
        %3025 = vmatprep.mubr.bf16.mxu0 0
        %3026 = vmatmul.mubr.bf16.gmra.mrb[0].mxu0 %v2858
        %v3027 = vpop.f32.mrb[0].mxu0
        %v3028 = vadd.f32 0.0, %v3027
        %v3029 = vpop.f32.mrb[0].mxu0
        %v3030 = vpop.f32.mrb[0].mxu0
        %v3031 = vadd.f32 0.0, %v3030
        %v3032 = vpop.f32.mrb[0].mxu0
        %3033 = vmatprep.mubr.bf16.mxu0 0
        %3034 = vmatmul.mubr.bf16.gmra.mrb[0].mxu0 %v2859
        %v3035 = vpop.f32.mrb[0].mxu0
        %v3036 = vadd.f32 0.0, %v3035
        %v3037 = vpop.f32.mrb[0].mxu0
        %v3038 = vpop.f32.mrb[0].mxu0
        %v3039 = vadd.f32 0.0, %v3038
        %v3040 = vpop.f32.mrb[0].mxu0
        %3041 = vmatprep.mubr.bf16.mxu0 0
        %3042 = vmatmul.mubr.bf16.gmra.mrb[0].mxu0 %v2860
        %v3043 = vpop.f32.mrb[0].mxu0
        %v3044 = vadd.f32 0.0, %v3043
        %v3045 = vpop.f32.mrb[0].mxu0
        %v3046 = vpop.f32.mrb[0].mxu0
        %v3047 = vadd.f32 0.0, %v3046
        %v3048 = vpop.f32.mrb[0].mxu0
        %3049 = vmatprep.mubr.bf16.mxu0 0
        %3050 = vmatmul.mubr.bf16.gmra.mrb[0].mxu0 %v2861
        %v3051 = vpop.f32.mrb[0].mxu0
        %v3052 = vadd.f32 0.0, %v3051
        %v3053 = vpop.f32.mrb[0].mxu0
        %v3054 = vpop.f32.mrb[0].mxu0
        %v3055 = vadd.f32 0.0, %v3054
        %v3056 = vpop.f32.mrb[0].mxu0
        %3057 = vmatprep.mubr.bf16.mxu0 0
        %3058 = vmatmul.mubr.bf16.gmra.mrb[0].mxu0 %v2862
        %v3059 = vpop.f32.mrb[0].mxu0
        %v3060 = vadd.f32 0.0, %v3059
        %v3061 = vpop.f32.mrb[0].mxu0
        %v3062 = vpop.f32.mrb[0].mxu0
        %v3063 = vadd.f32 0.0, %v3062
        %v3064 = vpop.f32.mrb[0].mxu0
        %3065 = vmatprep.mubr.bf16.mxu0 0
        %3066 = vmatmul.mubr.bf16.gmra.mrb[0].mxu0 %v2863
        %v3067 = vpop.f32.mrb[0].mxu0
        %v3068 = vadd.f32 0.0, %v3067
        %v3069 = vpop.f32.mrb[0].mxu0
        %v3070 = vpop.f32.mrb[0].mxu0
        %v3071 = vadd.f32 0.0, %v3070
        %v3072 = vpop.f32.mrb[0].mxu0
        %3073 = vdwg.mxu0
        %v3074 = vadd.f32 %v2822, %v2964
        %v3075 = vadd.f32 %v2823, %v2967
        %v3076 = vadd.f32 %v2824, %v2972
        %v3077 = vadd.f32 %v2825, %v2975
        %v3078 = vadd.f32 %v2826, %v2980
        %v3079 = vadd.f32 %v2827, %v2983
        %v3080 = vadd.f32 %v2828, %v2988
        %v3081 = vadd.f32 %v2829, %v2991
        %v3082 = vadd.f32 %v2830, %v2996
        %v3083 = vadd.f32 %v2831, %v2999
        %v3084 = vadd.f32 %v2832, %v3004
        %v3085 = vadd.f32 %v2833, %v3007
        %v3086 = vadd.f32 %v2834, %v3012
        %v3087 = vadd.f32 %v2835, %v3015
        %v3088 = vadd.f32 %v2836, %v3020
        %v3089 = vadd.f32 %v2837, %v3023
        %v3090 = vadd.f32 %v2838, %v3028
        %v3091 = vadd.f32 %v2839, %v3031
        %v3092 = vadd.f32 %v2840, %v3036
        %v3093 = vadd.f32 %v2841, %v3039
        %v3094 = vadd.f32 %v2842, %v3044
        %v3095 = vadd.f32 %v2843, %v3047
        %v3096 = vadd.f32 %v2844, %v3052
        %v3097 = vadd.f32 %v2845, %v3055
        %v3098 = vadd.f32 %v2846, %v3060
        %v3099 = vadd.f32 %v2847, %v3063
        %v3100 = vadd.f32 %v2848, %v3068
        %v3101 = vadd.f32 %v2849, %v3071
        %3102 = vst [vmem:[#allocation3] sm:$0xff] %v3074
        %3103 = vst [vmem:[#allocation3 + $0x8] sm:$0xff] %v3075
        %3104 = vst [vmem:[#allocation3 + $0x10] sm:$0xff] %v3076
        %3105 = vst [vmem:[#allocation3 + $0x18] sm:$0xff] %v3077
        %3106 = vst [vmem:[#allocation3 + $0x20] sm:$0xff] %v3078
        %3107 = vst [vmem:[#allocation3 + $0x28] sm:$0xff] %v3079
        %3108 = vst [vmem:[#allocation3 + $0x30] sm:$0xff] %v3080
        %3109 = vst [vmem:[#allocation3 + $0x38] sm:$0xff] %v3081
        %3110 = vst [vmem:[#allocation3 + $0x40] sm:$0xff] %v3082
        %3111 = vst [vmem:[#allocation3 + $0x48] sm:$0xff] %v3083
        %3112 = vst [vmem:[#allocation3 + $0x50] sm:$0xff] %v3084
        %3113 = vst [vmem:[#allocation3 + $0x58] sm:$0xff] %v3085
        %3114 = vst [vmem:[#allocation3 + $0x60] sm:$0xff] %v3086
        %3115 = vst [vmem:[#allocation3 + $0x68] sm:$0xff] %v3087
        %3116 = vst [vmem:[#allocation3 + $0x70] sm:$0xff] %v3088
        %3117 = vst [vmem:[#allocation3 + $0x78] sm:$0xff] %v3089
        %3118 = vst [vmem:[#allocation3 + $0x80] sm:$0xff] %v3090
        %3119 = vst [vmem:[#allocation3 + $0x88] sm:$0xff] %v3091
        %3120 = vst [vmem:[#allocation3 + $0x90] sm:$0xff] %v3092
        %3121 = vst [vmem:[#allocation3 + $0x98] sm:$0xff] %v3093
        %3122 = vst [vmem:[#allocation3 + $0xa0] sm:$0xff] %v3094
        %3123 = vst [vmem:[#allocation3 + $0xa8] sm:$0xff] %v3095
        %3124 = vst [vmem:[#allocation3 + $0xb0] sm:$0xff] %v3096
        %3125 = vst [vmem:[#allocation3 + $0xb8] sm:$0xff] %v3097
        %3126 = vst [vmem:[#allocation3 + $0xc0] sm:$0xff] %v3098
        %3127 = vst [vmem:[#allocation3 + $0xc8] sm:$0xff] %v3099
        %3128 = vst [vmem:[#allocation3 + $0xd0] sm:$0xff] %v3100
        %3129 = vst [vmem:[#allocation3 + $0xd8] sm:$0xff] %v3101
        %v3130 = vld [vmem:[#allocation3] sm:$0xff]
        %v3131 = vld [vmem:[#allocation3 + $0x8] sm:$0xff]
        %v3132 = vld [vmem:[#allocation3 + $0x10] sm:$0xff]
        %v3133 = vld [vmem:[#allocation3 + $0x18] sm:$0xff]
        %v3134 = vld [vmem:[#allocation3 + $0x20] sm:$0xff]
        %v3135 = vld [vmem:[#allocation3 + $0x28] sm:$0xff]
        %v3136 = vld [vmem:[#allocation3 + $0x30] sm:$0xff]
        %v3137 = vld [vmem:[#allocation3 + $0x38] sm:$0xff]
        %v3138 = vld [vmem:[#allocation3 + $0x40] sm:$0xff]
        %v3139 = vld [vmem:[#allocation3 + $0x48] sm:$0xff]
        %v3140 = vld [vmem:[#allocation3 + $0x50] sm:$0xff]
        %v3141 = vld [vmem:[#allocation3 + $0x58] sm:$0xff]
        %v3142 = vld [vmem:[#allocation3 + $0x60] sm:$0xff]
        %v3143 = vld [vmem:[#allocation3 + $0x68] sm:$0xff]
        %v3144 = vld [vmem:[#allocation3 + $0x70] sm:$0xff]
        %v3145 = vld [vmem:[#allocation3 + $0x78] sm:$0xff]
        %v3146 = vld [vmem:[#allocation3 + $0x80] sm:$0xff]
        %v3147 = vld [vmem:[#allocation3 + $0x88] sm:$0xff]
        %v3148 = vld [vmem:[#allocation3 + $0x90] sm:$0xff]
        %v3149 = vld [vmem:[#allocation3 + $0x98] sm:$0xff]
        %v3150 = vld [vmem:[#allocation3 + $0xa0] sm:$0xff]
        %v3151 = vld [vmem:[#allocation3 + $0xa8] sm:$0xff]
        %v3152 = vld [vmem:[#allocation3 + $0xb0] sm:$0xff]
        %v3153 = vld [vmem:[#allocation3 + $0xb8] sm:$0xff]
        %v3154 = vld [vmem:[#allocation3 + $0xc0] sm:$0xff]
        %v3155 = vld [vmem:[#allocation3 + $0xc8] sm:$0xff]
        %v3156 = vld [vmem:[#allocation3 + $0xd0] sm:$0xff]
        %v3157 = vld [vmem:[#allocation3 + $0xd8] sm:$0xff]
        %v3158 = vld [vmem:[#allocation2 + $0x10] sm:$0xff]
        %v3159 = vld [vmem:[#allocation2 + $0x18] sm:$0xff]
        %v3160 = vld [vmem:[#allocation2 + $0x20] sm:$0xff]
        %v3161 = vld [vmem:[#allocation2 + $0x28] sm:$0xff]
        %v3162 = vld [vmem:[#allocation2 + $0x30] sm:$0xff]
        %v3163 = vld [vmem:[#allocation2 + $0x38] sm:$0xff]
        %v3164 = vld [vmem:[#allocation2 + $0x40] sm:$0xff]
        %v3165 = vld [vmem:[#allocation2 + $0x48] sm:$0xff]
        %v3166 = vld [vmem:[#allocation2 + $0x50] sm:$0xff]
        %v3167 = vld [vmem:[#allocation2 + $0x58] sm:$0xff]
        %v3168 = vld [vmem:[#allocation2 + $0x60] sm:$0xff]
        %v3169 = vld [vmem:[#allocation2 + $0x68] sm:$0xff]
        %v3170 = vld [vmem:[#allocation2 + $0x70] sm:$0xff]
        %v3171 = vld [vmem:[#allocation2 + $0x78] sm:$0xff]
        %v3172 = vld [vmem:[#allocation2 + $0x80] sm:$0x1]
        %s3173 = scalar_lea.vmem [#allocation9], 448
        %v3174 = vld [vmem:[%s3173] sm:$0xf]
        %v3175 = vld [vmem:[%s3173 + $0x4] sm:$0xf]
        %v3176 = vld [vmem:[%s3173 + $0x8] sm:$0xf]
        %v3177 = vld [vmem:[%s3173 + $0xc] sm:$0xf]
        %v3178 = vld [vmem:[%s3173 + $0x10] sm:$0xf]
        %v3179 = vld [vmem:[%s3173 + $0x14] sm:$0xf]
        %v3180 = vld [vmem:[%s3173 + $0x18] sm:$0xf]
        %v3181 = vld [vmem:[%s3173 + $0x1c] sm:$0xf]
        %v3182 = vld [vmem:[%s3173 + $0x20] sm:$0xf]
        %v3183 = vld [vmem:[%s3173 + $0x24] sm:$0xf]
        %v3184 = vld [vmem:[%s3173 + $0x28] sm:$0xf]
        %v3185 = vld [vmem:[%s3173 + $0x2c] sm:$0xf]
        %v3186 = vld [vmem:[%s3173 + $0x30] sm:$0xf]
        %v3187 = vld [vmem:[%s3173 + $0x34] sm:$0xf]
        %v3188 = vld [vmem:[%s3173 + $0x38] sm:$0xf]
        %v3189 = vld [vmem:[%s3173 + $0x3c] sm:$0xf]
        %v3191 = vshrl.u32 %v3158, 16
        %v3193 = vshll.u32 %v3158, 16
        %v3195 = vrot.slane %v3193, 1
        %v3196 = vor.u32 %v3191, %v3195
        %v3198 = vshll.u32 %v3159, 16
        %v3200 = vrot.slane %v3198, 1
        %v3201 = vsel %vm960, %v3196, %v3200
        %v3202 = vshrl.u32 %v3159, 16
        %v3204 = vor.u32 %v3202, %v3200
        %v3206 = vshll.u32 %v3160, 16
        %v3208 = vrot.slane %v3206, 1
        %v3209 = vsel %vm960, %v3204, %v3208
        %v3210 = vshrl.u32 %v3160, 16
        %v3212 = vor.u32 %v3210, %v3208
        %v3214 = vshll.u32 %v3161, 16
        %v3216 = vrot.slane %v3214, 1
        %v3217 = vsel %vm960, %v3212, %v3216
        %v3218 = vshrl.u32 %v3161, 16
        %v3220 = vor.u32 %v3218, %v3216
        %v3222 = vshll.u32 %v3162, 16
        %v3224 = vrot.slane %v3222, 1
        %v3225 = vsel %vm960, %v3220, %v3224
        %v3226 = vshrl.u32 %v3162, 16
        %v3228 = vor.u32 %v3226, %v3224
        %v3230 = vshll.u32 %v3163, 16
        %v3232 = vrot.slane %v3230, 1
        %v3233 = vsel %vm960, %v3228, %v3232
        %v3234 = vshrl.u32 %v3163, 16
        %v3236 = vor.u32 %v3234, %v3232
        %v3238 = vshll.u32 %v3164, 16
        %v3240 = vrot.slane %v3238, 1
        %v3241 = vsel %vm960, %v3236, %v3240
        %v3242 = vshrl.u32 %v3164, 16
        %v3244 = vor.u32 %v3242, %v3240
        %v3246 = vshll.u32 %v3165, 16
        %v3248 = vrot.slane %v3246, 1
        %v3249 = vsel %vm960, %v3244, %v3248
        %v3250 = vshrl.u32 %v3165, 16
        %v3252 = vor.u32 %v3250, %v3248
        %v3254 = vshll.u32 %v3166, 16
        %v3256 = vrot.slane %v3254, 1
        %v3257 = vsel %vm960, %v3252, %v3256
        %v3258 = vshrl.u32 %v3166, 16
        %v3260 = vor.u32 %v3258, %v3256
        %v3262 = vshll.u32 %v3167, 16
        %v3264 = vrot.slane %v3262, 1
        %v3265 = vsel %vm960, %v3260, %v3264
        %v3266 = vshrl.u32 %v3167, 16
        %v3268 = vor.u32 %v3266, %v3264
        %v3270 = vshll.u32 %v3168, 16
        %v3272 = vrot.slane %v3270, 1
        %v3273 = vsel %vm960, %v3268, %v3272
        %v3274 = vshrl.u32 %v3168, 16
        %v3276 = vor.u32 %v3274, %v3272
        %v3278 = vshll.u32 %v3169, 16
        %v3280 = vrot.slane %v3278, 1
        %v3281 = vsel %vm960, %v3276, %v3280
        %v3282 = vshrl.u32 %v3169, 16
        %v3284 = vor.u32 %v3282, %v3280
        %v3286 = vshll.u32 %v3170, 16
        %v3288 = vrot.slane %v3286, 1
        %v3289 = vsel %vm960, %v3284, %v3288
        %v3290 = vshrl.u32 %v3170, 16
        %v3292 = vor.u32 %v3290, %v3288
        %v3294 = vshll.u32 %v3171, 16
        %v3296 = vrot.slane %v3294, 1
        %v3297 = vsel %vm960, %v3292, %v3296
        %v3298 = vshrl.u32 %v3171, 16
        %v3300 = vor.u32 %v3298, %v3296
        %v3302 = vshll.u32 %v3172, 16
        %v3304 = vrot.slane %v3302, 1
        %v3305 = vsel %vm960, %v3300, %v3304
        %v3336 = vunpack.c.l.b16 %v3174
        %v3337 = vunpack.c.l.b16 %v3175
        %v3338 = vunpack.c.l.b16 %v3176
        %v3339 = vunpack.c.l.b16 %v3177
        %v3340 = vunpack.c.l.b16 %v3178
        %v3341 = vunpack.c.l.b16 %v3179
        %v3342 = vunpack.c.l.b16 %v3180
        %v3343 = vunpack.c.l.b16 %v3181
        %v3344 = vunpack.c.l.b16 %v3182
        %v3345 = vunpack.c.l.b16 %v3183
        %v3346 = vunpack.c.l.b16 %v3184
        %v3347 = vunpack.c.l.b16 %v3185
        %v3348 = vunpack.c.l.b16 %v3186
        %v3349 = vunpack.c.l.b16 %v3187
        %v3350 = vunpack.c.l.b16 %v3188
        %v3351 = vunpack.c.l.b16 %v3189
        %v3352 = vpack.c.b16 %v3337, %v3336
        %v3353 = vpack.c.b16 %v3339, %v3338
        %v3354 = vpack.c.b16 %v3341, %v3340
        %v3355 = vpack.c.b16 %v3343, %v3342
        %v3356 = vpack.c.b16 %v3345, %v3344
        %v3357 = vpack.c.b16 %v3347, %v3346
        %v3358 = vpack.c.b16 %v3349, %v3348
        %v3359 = vpack.c.b16 %v3351, %v3350
        %3368 = vmatprep.subr.bf16.mxu0 0
        %3369 = vmatpush1.bf16.msra.mxu0 %v3352
        %3370 = vmatprep.subr.bf16.mxu0 0
        %3371 = vmatpush1.bf16.msra.mxu0 %v3353
        %3372 = vmatprep.subr.bf16.mxu0 0
        %3373 = vmatpush1.bf16.msra.mxu0 %v3354
        %3374 = vmatprep.subr.bf16.mxu0 0
        %3375 = vmatpush1.bf16.msra.mxu0 %v3355
        %3376 = vmatprep.subr.bf16.mxu0 0
        %3377 = vmatpush1.bf16.msra.mxu0 %v3356
        %3378 = vmatprep.subr.bf16.mxu0 0
        %3379 = vmatpush1.bf16.msra.mxu0 %v3357
        %3380 = vmatprep.subr.bf16.mxu0 0
        %3381 = vmatpush1.bf16.msra.mxu0 %v3358
        %3382 = vmatprep.subr.bf16.mxu0 0
        %3383 = vmatpush1.bf16.msra.mxu0 %v3359
        %3384 = vmatprep.subr.bf16.mxu0 0
        %3385 = vmatpush1.bf16.msra.mxu0 0
        %3386 = vmatprep.subr.bf16.mxu0 0
        %3387 = vmatpush1.bf16.msra.mxu0 0
        %3388 = vmatprep.subr.bf16.mxu0 0
        %3389 = vmatpush1.bf16.msra.mxu0 0
        %3390 = vmatprep.subr.bf16.mxu0 0
        %3391 = vmatpush1.bf16.msra.mxu0 0
        %3392 = vmatprep.subr.bf16.mxu0 0
        %3393 = vmatpush1.bf16.msra.mxu0 0
        %3394 = vmatprep.subr.bf16.mxu0 0
        %3395 = vmatpush1.bf16.msra.mxu0 0
        %3396 = vmatprep.subr.bf16.mxu0 0
        %3397 = vmatpush1.bf16.msra.mxu0 0
        %3398 = vmatprep.subr.bf16.mxu0 0
        %3399 = vmatpush1.bf16.msra.mxu0 0
        %3400 = vmatprep.mubr.bf16.mxu0 0
        %3401 = vmatmul.mubr.bf16.gmra.mrb[0].mxu0 %v3201
        %v3402 = vpop.f32.mrb[0].mxu0
        %v3403 = vadd.f32 0.0, %v3402
        %v3404 = vpop.f32.mrb[0].mxu0
        %v3405 = vpop.f32.mrb[0].mxu0
        %v3406 = vadd.f32 0.0, %v3405
        %v3407 = vpop.f32.mrb[0].mxu0
        %3408 = vmatprep.mubr.bf16.mxu0 0
        %3409 = vmatmul.mubr.bf16.gmra.mrb[0].mxu0 %v3209
        %v3410 = vpop.f32.mrb[0].mxu0
        %v3411 = vadd.f32 0.0, %v3410
        %v3412 = vpop.f32.mrb[0].mxu0
        %v3413 = vpop.f32.mrb[0].mxu0
        %v3414 = vadd.f32 0.0, %v3413
        %v3415 = vpop.f32.mrb[0].mxu0
        %3416 = vmatprep.mubr.bf16.mxu0 0
        %3417 = vmatmul.mubr.bf16.gmra.mrb[0].mxu0 %v3217
        %v3418 = vpop.f32.mrb[0].mxu0
        %v3419 = vadd.f32 0.0, %v3418
        %v3420 = vpop.f32.mrb[0].mxu0
        %v3421 = vpop.f32.mrb[0].mxu0
        %v3422 = vadd.f32 0.0, %v3421
        %v3423 = vpop.f32.mrb[0].mxu0
        %3424 = vmatprep.mubr.bf16.mxu0 0
        %3425 = vmatmul.mubr.bf16.gmra.mrb[0].mxu0 %v3225
        %v3426 = vpop.f32.mrb[0].mxu0
        %v3427 = vadd.f32 0.0, %v3426
        %v3428 = vpop.f32.mrb[0].mxu0
        %v3429 = vpop.f32.mrb[0].mxu0
        %v3430 = vadd.f32 0.0, %v3429
        %v3431 = vpop.f32.mrb[0].mxu0
        %3432 = vmatprep.mubr.bf16.mxu0 0
        %3433 = vmatmul.mubr.bf16.gmra.mrb[0].mxu0 %v3233
        %v3434 = vpop.f32.mrb[0].mxu0
        %v3435 = vadd.f32 0.0, %v3434
        %v3436 = vpop.f32.mrb[0].mxu0
        %v3437 = vpop.f32.mrb[0].mxu0
        %v3438 = vadd.f32 0.0, %v3437
        %v3439 = vpop.f32.mrb[0].mxu0
        %3440 = vmatprep.mubr.bf16.mxu0 0
        %3441 = vmatmul.mubr.bf16.gmra.mrb[0].mxu0 %v3241
        %v3442 = vpop.f32.mrb[0].mxu0
        %v3443 = vadd.f32 0.0, %v3442
        %v3444 = vpop.f32.mrb[0].mxu0
        %v3445 = vpop.f32.mrb[0].mxu0
        %v3446 = vadd.f32 0.0, %v3445
        %v3447 = vpop.f32.mrb[0].mxu0
        %3448 = vmatprep.mubr.bf16.mxu0 0
        %3449 = vmatmul.mubr.bf16.gmra.mrb[0].mxu0 %v3249
        %v3450 = vpop.f32.mrb[0].mxu0
        %v3451 = vadd.f32 0.0, %v3450
        %v3452 = vpop.f32.mrb[0].mxu0
        %v3453 = vpop.f32.mrb[0].mxu0
        %v3454 = vadd.f32 0.0, %v3453
        %v3455 = vpop.f32.mrb[0].mxu0
        %3456 = vmatprep.mubr.bf16.mxu0 0
        %3457 = vmatmul.mubr.bf16.gmra.mrb[0].mxu0 %v3257
        %v3458 = vpop.f32.mrb[0].mxu0
        %v3459 = vadd.f32 0.0, %v3458
        %v3460 = vpop.f32.mrb[0].mxu0
        %v3461 = vpop.f32.mrb[0].mxu0
        %v3462 = vadd.f32 0.0, %v3461
        %v3463 = vpop.f32.mrb[0].mxu0
        %3464 = vmatprep.mubr.bf16.mxu0 0
        %3465 = vmatmul.mubr.bf16.gmra.mrb[0].mxu0 %v3265
        %v3466 = vpop.f32.mrb[0].mxu0
        %v3467 = vadd.f32 0.0, %v3466
        %v3468 = vpop.f32.mrb[0].mxu0
        %v3469 = vpop.f32.mrb[0].mxu0
        %v3470 = vadd.f32 0.0, %v3469
        %v3471 = vpop.f32.mrb[0].mxu0
        %3472 = vmatprep.mubr.bf16.mxu0 0
        %3473 = vmatmul.mubr.bf16.gmra.mrb[0].mxu0 %v3273
        %v3474 = vpop.f32.mrb[0].mxu0
        %v3475 = vadd.f32 0.0, %v3474
        %v3476 = vpop.f32.mrb[0].mxu0
        %v3477 = vpop.f32.mrb[0].mxu0
        %v3478 = vadd.f32 0.0, %v3477
        %v3479 = vpop.f32.mrb[0].mxu0
        %3480 = vmatprep.mubr.bf16.mxu0 0
        %3481 = vmatmul.mubr.bf16.gmra.mrb[0].mxu0 %v3281
        %v3482 = vpop.f32.mrb[0].mxu0
        %v3483 = vadd.f32 0.0, %v3482
        %v3484 = vpop.f32.mrb[0].mxu0
        %v3485 = vpop.f32.mrb[0].mxu0
        %v3486 = vadd.f32 0.0, %v3485
        %v3487 = vpop.f32.mrb[0].mxu0
        %3488 = vmatprep.mubr.bf16.mxu0 0
        %3489 = vmatmul.mubr.bf16.gmra.mrb[0].mxu0 %v3289
        %v3490 = vpop.f32.mrb[0].mxu0
        %v3491 = vadd.f32 0.0, %v3490
        %v3492 = vpop.f32.mrb[0].mxu0
        %v3493 = vpop.f32.mrb[0].mxu0
        %v3494 = vadd.f32 0.0, %v3493
        %v3495 = vpop.f32.mrb[0].mxu0
        %3496 = vmatprep.mubr.bf16.mxu0 0
        %3497 = vmatmul.mubr.bf16.gmra.mrb[0].mxu0 %v3297
        %v3498 = vpop.f32.mrb[0].mxu0
        %v3499 = vadd.f32 0.0, %v3498
        %v3500 = vpop.f32.mrb[0].mxu0
        %v3501 = vpop.f32.mrb[0].mxu0
        %v3502 = vadd.f32 0.0, %v3501
        %v3503 = vpop.f32.mrb[0].mxu0
        %3504 = vmatprep.mubr.bf16.mxu0 0
        %3505 = vmatmul.mubr.bf16.gmra.mrb[0].mxu0 %v3305
        %v3506 = vpop.f32.mrb[0].mxu0
        %v3507 = vadd.f32 0.0, %v3506
        %v3508 = vpop.f32.mrb[0].mxu0
        %v3509 = vpop.f32.mrb[0].mxu0
        %v3510 = vadd.f32 0.0, %v3509
        %v3511 = vpop.f32.mrb[0].mxu0
        %3512 = vdwg.mxu0
        %v3513 = vadd.f32 %v3130, %v3403
        %v3514 = vadd.f32 %v3131, %v3406
        %v3515 = vadd.f32 %v3132, %v3411
        %v3516 = vadd.f32 %v3133, %v3414
        %v3517 = vadd.f32 %v3134, %v3419
        %v3518 = vadd.f32 %v3135, %v3422
        %v3519 = vadd.f32 %v3136, %v3427
        %v3520 = vadd.f32 %v3137, %v3430
        %v3521 = vadd.f32 %v3138, %v3435
        %v3522 = vadd.f32 %v3139, %v3438
        %v3523 = vadd.f32 %v3140, %v3443
        %v3524 = vadd.f32 %v3141, %v3446
        %v3525 = vadd.f32 %v3142, %v3451
        %v3526 = vadd.f32 %v3143, %v3454
        %v3527 = vadd.f32 %v3144, %v3459
        %v3528 = vadd.f32 %v3145, %v3462
        %v3529 = vadd.f32 %v3146, %v3467
        %v3530 = vadd.f32 %v3147, %v3470
        %v3531 = vadd.f32 %v3148, %v3475
        %v3532 = vadd.f32 %v3149, %v3478
        %v3533 = vadd.f32 %v3150, %v3483
        %v3534 = vadd.f32 %v3151, %v3486
        %v3535 = vadd.f32 %v3152, %v3491
        %v3536 = vadd.f32 %v3153, %v3494
        %v3537 = vadd.f32 %v3154, %v3499
        %v3538 = vadd.f32 %v3155, %v3502
        %v3539 = vadd.f32 %v3156, %v3507
        %v3540 = vadd.f32 %v3157, %v3510
        %3541 = vst [vmem:[#allocation3] sm:$0xff] %v3513
        %3542 = vst [vmem:[#allocation3 + $0x8] sm:$0xff] %v3514
        %3543 = vst [vmem:[#allocation3 + $0x10] sm:$0xff] %v3515
        %3544 = vst [vmem:[#allocation3 + $0x18] sm:$0xff] %v3516
        %3545 = vst [vmem:[#allocation3 + $0x20] sm:$0xff] %v3517
        %3546 = vst [vmem:[#allocation3 + $0x28] sm:$0xff] %v3518
        %3547 = vst [vmem:[#allocation3 + $0x30] sm:$0xff] %v3519
        %3548 = vst [vmem:[#allocation3 + $0x38] sm:$0xff] %v3520
        %3549 = vst [vmem:[#allocation3 + $0x40] sm:$0xff] %v3521
        %3550 = vst [vmem:[#allocation3 + $0x48] sm:$0xff] %v3522
        %3551 = vst [vmem:[#allocation3 + $0x50] sm:$0xff] %v3523
        %3552 = vst [vmem:[#allocation3 + $0x58] sm:$0xff] %v3524
        %3553 = vst [vmem:[#allocation3 + $0x60] sm:$0xff] %v3525
        %3554 = vst [vmem:[#allocation3 + $0x68] sm:$0xff] %v3526
        %3555 = vst [vmem:[#allocation3 + $0x70] sm:$0xff] %v3527
        %3556 = vst [vmem:[#allocation3 + $0x78] sm:$0xff] %v3528
        %3557 = vst [vmem:[#allocation3 + $0x80] sm:$0xff] %v3529
        %3558 = vst [vmem:[#allocation3 + $0x88] sm:$0xff] %v3530
        %3559 = vst [vmem:[#allocation3 + $0x90] sm:$0xff] %v3531
        %3560 = vst [vmem:[#allocation3 + $0x98] sm:$0xff] %v3532
        %3561 = vst [vmem:[#allocation3 + $0xa0] sm:$0xff] %v3533
        %3562 = vst [vmem:[#allocation3 + $0xa8] sm:$0xff] %v3534
        %3563 = vst [vmem:[#allocation3 + $0xb0] sm:$0xff] %v3535
        %3564 = vst [vmem:[#allocation3 + $0xb8] sm:$0xff] %v3536
        %3565 = vst [vmem:[#allocation3 + $0xc0] sm:$0xff] %v3537
        %3566 = vst [vmem:[#allocation3 + $0xc8] sm:$0xff] %v3538
        %3567 = vst [vmem:[#allocation3 + $0xd0] sm:$0xff] %v3539
        %3568 = vst [vmem:[#allocation3 + $0xd8] sm:$0xff] %v3540
        %v3569 = vld [vmem:[#allocation3] sm:$0xff]
        %v3570 = vld [vmem:[#allocation3 + $0x8] sm:$0xff]
        %v3571 = vld [vmem:[#allocation3 + $0x10] sm:$0xff]
        %v3572 = vld [vmem:[#allocation3 + $0x18] sm:$0xff]
        %v3573 = vld [vmem:[#allocation3 + $0x20] sm:$0xff]
        %v3574 = vld [vmem:[#allocation3 + $0x28] sm:$0xff]
        %v3575 = vld [vmem:[#allocation3 + $0x30] sm:$0xff]
        %v3576 = vld [vmem:[#allocation3 + $0x38] sm:$0xff]
        %v3577 = vld [vmem:[#allocation3 + $0x40] sm:$0xff]
        %v3578 = vld [vmem:[#allocation3 + $0x48] sm:$0xff]
        %v3579 = vld [vmem:[#allocation3 + $0x50] sm:$0xff]
        %v3580 = vld [vmem:[#allocation3 + $0x58] sm:$0xff]
        %v3581 = vld [vmem:[#allocation3 + $0x60] sm:$0xff]
        %v3582 = vld [vmem:[#allocation3 + $0x68] sm:$0xff]
        %v3583 = vld [vmem:[#allocation3 + $0x70] sm:$0xff]
        %v3584 = vld [vmem:[#allocation3 + $0x78] sm:$0xff]
        %v3585 = vld [vmem:[#allocation3 + $0x80] sm:$0xff]
        %v3586 = vld [vmem:[#allocation3 + $0x88] sm:$0xff]
        %v3587 = vld [vmem:[#allocation3 + $0x90] sm:$0xff]
        %v3588 = vld [vmem:[#allocation3 + $0x98] sm:$0xff]
        %v3589 = vld [vmem:[#allocation3 + $0xa0] sm:$0xff]
        %v3590 = vld [vmem:[#allocation3 + $0xa8] sm:$0xff]
        %v3591 = vld [vmem:[#allocation3 + $0xb0] sm:$0xff]
        %v3592 = vld [vmem:[#allocation3 + $0xb8] sm:$0xff]
        %v3593 = vld [vmem:[#allocation3 + $0xc0] sm:$0xff]
        %v3594 = vld [vmem:[#allocation3 + $0xc8] sm:$0xff]
        %v3595 = vld [vmem:[#allocation3 + $0xd0] sm:$0xff]
        %v3596 = vld [vmem:[#allocation3 + $0xd8] sm:$0xff]
        %v3597 = vld [vmem:[#allocation2 + $0x10] sm:$0xfe]
        %v3598 = vld [vmem:[#allocation2 + $0x18] sm:$0xff]
        %v3599 = vld [vmem:[#allocation2 + $0x20] sm:$0xff]
        %v3600 = vld [vmem:[#allocation2 + $0x28] sm:$0xff]
        %v3601 = vld [vmem:[#allocation2 + $0x30] sm:$0xff]
        %v3602 = vld [vmem:[#allocation2 + $0x38] sm:$0xff]
        %v3603 = vld [vmem:[#allocation2 + $0x40] sm:$0xff]
        %v3604 = vld [vmem:[#allocation2 + $0x48] sm:$0xff]
        %v3605 = vld [vmem:[#allocation2 + $0x50] sm:$0xff]
        %v3606 = vld [vmem:[#allocation2 + $0x58] sm:$0xff]
        %v3607 = vld [vmem:[#allocation2 + $0x60] sm:$0xff]
        %v3608 = vld [vmem:[#allocation2 + $0x68] sm:$0xff]
        %v3609 = vld [vmem:[#allocation2 + $0x70] sm:$0xff]
        %v3610 = vld [vmem:[#allocation2 + $0x78] sm:$0xff]
        %v3611 = vld [vmem:[#allocation2 + $0x80] sm:$0x1]
        %s3612 = scalar_lea.vmem [#allocation9], 512
        %v3613 = vld [vmem:[%s3612] sm:$0xf]
        %v3614 = vld [vmem:[%s3612 + $0x4] sm:$0xf]
        %v3615 = vld [vmem:[%s3612 + $0x8] sm:$0xf]
        %v3616 = vld [vmem:[%s3612 + $0xc] sm:$0xf]
        %v3617 = vld [vmem:[%s3612 + $0x10] sm:$0xf]
        %v3618 = vld [vmem:[%s3612 + $0x14] sm:$0xf]
        %v3619 = vld [vmem:[%s3612 + $0x18] sm:$0xf]
        %v3620 = vld [vmem:[%s3612 + $0x1c] sm:$0xf]
        %v3621 = vld [vmem:[%s3612 + $0x20] sm:$0xf]
        %v3622 = vld [vmem:[%s3612 + $0x24] sm:$0xf]
        %v3623 = vld [vmem:[%s3612 + $0x28] sm:$0xf]
        %v3624 = vld [vmem:[%s3612 + $0x2c] sm:$0xf]
        %v3625 = vld [vmem:[%s3612 + $0x30] sm:$0xf]
        %v3626 = vld [vmem:[%s3612 + $0x34] sm:$0xf]
        %v3627 = vld [vmem:[%s3612 + $0x38] sm:$0xf]
        %v3628 = vld [vmem:[%s3612 + $0x3c] sm:$0xf]
        %v3644 = vrot.slane %v3597, 1
        %v3645 = vrot.slane %v3598, 1
        %v3646 = vsel %vm1415, %v3644, %v3645
        %v3647 = vrot.slane %v3599, 1
        %v3648 = vsel %vm1415, %v3645, %v3647
        %v3649 = vrot.slane %v3600, 1
        %v3650 = vsel %vm1415, %v3647, %v3649
        %v3651 = vrot.slane %v3601, 1
        %v3652 = vsel %vm1415, %v3649, %v3651
        %v3653 = vrot.slane %v3602, 1
        %v3654 = vsel %vm1415, %v3651, %v3653
        %v3655 = vrot.slane %v3603, 1
        %v3656 = vsel %vm1415, %v3653, %v3655
        %v3657 = vrot.slane %v3604, 1
        %v3658 = vsel %vm1415, %v3655, %v3657
        %v3659 = vrot.slane %v3605, 1
        %v3660 = vsel %vm1415, %v3657, %v3659
        %v3661 = vrot.slane %v3606, 1
        %v3662 = vsel %vm1415, %v3659, %v3661
        %v3663 = vrot.slane %v3607, 1
        %v3664 = vsel %vm1415, %v3661, %v3663
        %v3665 = vrot.slane %v3608, 1
        %v3666 = vsel %vm1415, %v3663, %v3665
        %v3667 = vrot.slane %v3609, 1
        %v3668 = vsel %vm1415, %v3665, %v3667
        %v3669 = vrot.slane %v3610, 1
        %v3670 = vsel %vm1415, %v3667, %v3669
        %v3671 = vrot.slane %v3611, 1
        %v3672 = vsel %vm1415, %v3669, %v3671
        %v3703 = vunpack.c.l.b16 %v3613
        %v3704 = vunpack.c.l.b16 %v3614
        %v3705 = vunpack.c.l.b16 %v3615
        %v3706 = vunpack.c.l.b16 %v3616
        %v3707 = vunpack.c.l.b16 %v3617
        %v3708 = vunpack.c.l.b16 %v3618
        %v3709 = vunpack.c.l.b16 %v3619
        %v3710 = vunpack.c.l.b16 %v3620
        %v3711 = vunpack.c.l.b16 %v3621
        %v3712 = vunpack.c.l.b16 %v3622
        %v3713 = vunpack.c.l.b16 %v3623
        %v3714 = vunpack.c.l.b16 %v3624
        %v3715 = vunpack.c.l.b16 %v3625
        %v3716 = vunpack.c.l.b16 %v3626
        %v3717 = vunpack.c.l.b16 %v3627
        %v3718 = vunpack.c.l.b16 %v3628
        %v3719 = vpack.c.b16 %v3704, %v3703
        %v3720 = vpack.c.b16 %v3706, %v3705
        %v3721 = vpack.c.b16 %v3708, %v3707
        %v3722 = vpack.c.b16 %v3710, %v3709
        %v3723 = vpack.c.b16 %v3712, %v3711
        %v3724 = vpack.c.b16 %v3714, %v3713
        %v3725 = vpack.c.b16 %v3716, %v3715
        %v3726 = vpack.c.b16 %v3718, %v3717
        %3735 = vmatprep.subr.bf16.mxu0 0
        %3736 = vmatpush1.bf16.msra.mxu0 %v3719
        %3737 = vmatprep.subr.bf16.mxu0 0
        %3738 = vmatpush1.bf16.msra.mxu0 %v3720
        %3739 = vmatprep.subr.bf16.mxu0 0
        %3740 = vmatpush1.bf16.msra.mxu0 %v3721
        %3741 = vmatprep.subr.bf16.mxu0 0
        %3742 = vmatpush1.bf16.msra.mxu0 %v3722
        %3743 = vmatprep.subr.bf16.mxu0 0
        %3744 = vmatpush1.bf16.msra.mxu0 %v3723
        %3745 = vmatprep.subr.bf16.mxu0 0
        %3746 = vmatpush1.bf16.msra.mxu0 %v3724
        %3747 = vmatprep.subr.bf16.mxu0 0
        %3748 = vmatpush1.bf16.msra.mxu0 %v3725
        %3749 = vmatprep.subr.bf16.mxu0 0
        %3750 = vmatpush1.bf16.msra.mxu0 %v3726
        %3751 = vmatprep.subr.bf16.mxu0 0
        %3752 = vmatpush1.bf16.msra.mxu0 0
        %3753 = vmatprep.subr.bf16.mxu0 0
        %3754 = vmatpush1.bf16.msra.mxu0 0
        %3755 = vmatprep.subr.bf16.mxu0 0
        %3756 = vmatpush1.bf16.msra.mxu0 0
        %3757 = vmatprep.subr.bf16.mxu0 0
        %3758 = vmatpush1.bf16.msra.mxu0 0
        %3759 = vmatprep.subr.bf16.mxu0 0
        %3760 = vmatpush1.bf16.msra.mxu0 0
        %3761 = vmatprep.subr.bf16.mxu0 0
        %3762 = vmatpush1.bf16.msra.mxu0 0
        %3763 = vmatprep.subr.bf16.mxu0 0
        %3764 = vmatpush1.bf16.msra.mxu0 0
        %3765 = vmatprep.subr.bf16.mxu0 0
        %3766 = vmatpush1.bf16.msra.mxu0 0
        %3767 = vmatprep.mubr.bf16.mxu0 0
        %3768 = vmatmul.mubr.bf16.gmra.mrb[0].mxu0 %v3646
        %v3769 = vpop.f32.mrb[0].mxu0
        %v3770 = vadd.f32 0.0, %v3769
        %v3771 = vpop.f32.mrb[0].mxu0
        %v3772 = vpop.f32.mrb[0].mxu0
        %v3773 = vadd.f32 0.0, %v3772
        %v3774 = vpop.f32.mrb[0].mxu0
        %3775 = vmatprep.mubr.bf16.mxu0 0
        %3776 = vmatmul.mubr.bf16.gmra.mrb[0].mxu0 %v3648
        %v3777 = vpop.f32.mrb[0].mxu0
        %v3778 = vadd.f32 0.0, %v3777
        %v3779 = vpop.f32.mrb[0].mxu0
        %v3780 = vpop.f32.mrb[0].mxu0
        %v3781 = vadd.f32 0.0, %v3780
        %v3782 = vpop.f32.mrb[0].mxu0
        %3783 = vmatprep.mubr.bf16.mxu0 0
        %3784 = vmatmul.mubr.bf16.gmra.mrb[0].mxu0 %v3650
        %v3785 = vpop.f32.mrb[0].mxu0
        %v3786 = vadd.f32 0.0, %v3785
        %v3787 = vpop.f32.mrb[0].mxu0
        %v3788 = vpop.f32.mrb[0].mxu0
        %v3789 = vadd.f32 0.0, %v3788
        %v3790 = vpop.f32.mrb[0].mxu0
        %3791 = vmatprep.mubr.bf16.mxu0 0
        %3792 = vmatmul.mubr.bf16.gmra.mrb[0].mxu0 %v3652
        %v3793 = vpop.f32.mrb[0].mxu0
        %v3794 = vadd.f32 0.0, %v3793
        %v3795 = vpop.f32.mrb[0].mxu0
        %v3796 = vpop.f32.mrb[0].mxu0
        %v3797 = vadd.f32 0.0, %v3796
        %v3798 = vpop.f32.mrb[0].mxu0
        %3799 = vmatprep.mubr.bf16.mxu0 0
        %3800 = vmatmul.mubr.bf16.gmra.mrb[0].mxu0 %v3654
        %v3801 = vpop.f32.mrb[0].mxu0
        %v3802 = vadd.f32 0.0, %v3801
        %v3803 = vpop.f32.mrb[0].mxu0
        %v3804 = vpop.f32.mrb[0].mxu0
        %v3805 = vadd.f32 0.0, %v3804
        %v3806 = vpop.f32.mrb[0].mxu0
        %3807 = vmatprep.mubr.bf16.mxu0 0
        %3808 = vmatmul.mubr.bf16.gmra.mrb[0].mxu0 %v3656
        %v3809 = vpop.f32.mrb[0].mxu0
        %v3810 = vadd.f32 0.0, %v3809
        %v3811 = vpop.f32.mrb[0].mxu0
        %v3812 = vpop.f32.mrb[0].mxu0
        %v3813 = vadd.f32 0.0, %v3812
        %v3814 = vpop.f32.mrb[0].mxu0
        %3815 = vmatprep.mubr.bf16.mxu0 0
        %3816 = vmatmul.mubr.bf16.gmra.mrb[0].mxu0 %v3658
        %v3817 = vpop.f32.mrb[0].mxu0
        %v3818 = vadd.f32 0.0, %v3817
        %v3819 = vpop.f32.mrb[0].mxu0
        %v3820 = vpop.f32.mrb[0].mxu0
        %v3821 = vadd.f32 0.0, %v3820
        %v3822 = vpop.f32.mrb[0].mxu0
        %3823 = vmatprep.mubr.bf16.mxu0 0
        %3824 = vmatmul.mubr.bf16.gmra.mrb[0].mxu0 %v3660
        %v3825 = vpop.f32.mrb[0].mxu0
        %v3826 = vadd.f32 0.0, %v3825
        %v3827 = vpop.f32.mrb[0].mxu0
        %v3828 = vpop.f32.mrb[0].mxu0
        %v3829 = vadd.f32 0.0, %v3828
        %v3830 = vpop.f32.mrb[0].mxu0
        %3831 = vmatprep.mubr.bf16.mxu0 0
        %3832 = vmatmul.mubr.bf16.gmra.mrb[0].mxu0 %v3662
        %v3833 = vpop.f32.mrb[0].mxu0
        %v3834 = vadd.f32 0.0, %v3833
        %v3835 = vpop.f32.mrb[0].mxu0
        %v3836 = vpop.f32.mrb[0].mxu0
        %v3837 = vadd.f32 0.0, %v3836
        %v3838 = vpop.f32.mrb[0].mxu0
        %3839 = vmatprep.mubr.bf16.mxu0 0
        %3840 = vmatmul.mubr.bf16.gmra.mrb[0].mxu0 %v3664
        %v3841 = vpop.f32.mrb[0].mxu0
        %v3842 = vadd.f32 0.0, %v3841
        %v3843 = vpop.f32.mrb[0].mxu0
        %v3844 = vpop.f32.mrb[0].mxu0
        %v3845 = vadd.f32 0.0, %v3844
        %v3846 = vpop.f32.mrb[0].mxu0
        %3847 = vmatprep.mubr.bf16.mxu0 0
        %3848 = vmatmul.mubr.bf16.gmra.mrb[0].mxu0 %v3666
        %v3849 = vpop.f32.mrb[0].mxu0
        %v3850 = vadd.f32 0.0, %v3849
        %v3851 = vpop.f32.mrb[0].mxu0
        %v3852 = vpop.f32.mrb[0].mxu0
        %v3853 = vadd.f32 0.0, %v3852
        %v3854 = vpop.f32.mrb[0].mxu0
        %3855 = vmatprep.mubr.bf16.mxu0 0
        %3856 = vmatmul.mubr.bf16.gmra.mrb[0].mxu0 %v3668
        %v3857 = vpop.f32.mrb[0].mxu0
        %v3858 = vadd.f32 0.0, %v3857
        %v3859 = vpop.f32.mrb[0].mxu0
        %v3860 = vpop.f32.mrb[0].mxu0
        %v3861 = vadd.f32 0.0, %v3860
        %v3862 = vpop.f32.mrb[0].mxu0
        %3863 = vmatprep.mubr.bf16.mxu0 0
        %3864 = vmatmul.mubr.bf16.gmra.mrb[0].mxu0 %v3670
        %v3865 = vpop.f32.mrb[0].mxu0
        %v3866 = vadd.f32 0.0, %v3865
        %v3867 = vpop.f32.mrb[0].mxu0
        %v3868 = vpop.f32.mrb[0].mxu0
        %v3869 = vadd.f32 0.0, %v3868
        %v3870 = vpop.f32.mrb[0].mxu0
        %3871 = vmatprep.mubr.bf16.mxu0 0
        %3872 = vmatmul.mubr.bf16.gmra.mrb[0].mxu0 %v3672
        %v3873 = vpop.f32.mrb[0].mxu0
        %v3874 = vadd.f32 0.0, %v3873
        %v3875 = vpop.f32.mrb[0].mxu0
        %v3876 = vpop.f32.mrb[0].mxu0
        %v3877 = vadd.f32 0.0, %v3876
        %v3878 = vpop.f32.mrb[0].mxu0
        %3879 = vdwg.mxu0
        %v3880 = vadd.f32 %v3569, %v3770
        %v3881 = vadd.f32 %v3570, %v3773
        %v3882 = vadd.f32 %v3571, %v3778
        %v3883 = vadd.f32 %v3572, %v3781
        %v3884 = vadd.f32 %v3573, %v3786
        %v3885 = vadd.f32 %v3574, %v3789
        %v3886 = vadd.f32 %v3575, %v3794
        %v3887 = vadd.f32 %v3576, %v3797
        %v3888 = vadd.f32 %v3577, %v3802
        %v3889 = vadd.f32 %v3578, %v3805
        %v3890 = vadd.f32 %v3579, %v3810
        %v3891 = vadd.f32 %v3580, %v3813
        %v3892 = vadd.f32 %v3581, %v3818
        %v3893 = vadd.f32 %v3582, %v3821
        %v3894 = vadd.f32 %v3583, %v3826
        %v3895 = vadd.f32 %v3584, %v3829
        %v3896 = vadd.f32 %v3585, %v3834
        %v3897 = vadd.f32 %v3586, %v3837
        %v3898 = vadd.f32 %v3587, %v3842
        %v3899 = vadd.f32 %v3588, %v3845
        %v3900 = vadd.f32 %v3589, %v3850
        %v3901 = vadd.f32 %v3590, %v3853
        %v3902 = vadd.f32 %v3591, %v3858
        %v3903 = vadd.f32 %v3592, %v3861
        %v3904 = vadd.f32 %v3593, %v3866
        %v3905 = vadd.f32 %v3594, %v3869
        %v3906 = vadd.f32 %v3595, %v3874
        %v3907 = vadd.f32 %v3596, %v3877
        %3908 = vst [vmem:[#allocation3] sm:$0xff] %v3880
        %3909 = vst [vmem:[#allocation3 + $0x8] sm:$0xff] %v3881
        %3910 = vst [vmem:[#allocation3 + $0x10] sm:$0xff] %v3882
        %3911 = vst [vmem:[#allocation3 + $0x18] sm:$0xff] %v3883
        %3912 = vst [vmem:[#allocation3 + $0x20] sm:$0xff] %v3884
        %3913 = vst [vmem:[#allocation3 + $0x28] sm:$0xff] %v3885
        %3914 = vst [vmem:[#allocation3 + $0x30] sm:$0xff] %v3886
        %3915 = vst [vmem:[#allocation3 + $0x38] sm:$0xff] %v3887
        %3916 = vst [vmem:[#allocation3 + $0x40] sm:$0xff] %v3888
        %3917 = vst [vmem:[#allocation3 + $0x48] sm:$0xff] %v3889
        %3918 = vst [vmem:[#allocation3 + $0x50] sm:$0xff] %v3890
        %3919 = vst [vmem:[#allocation3 + $0x58] sm:$0xff] %v3891
        %3920 = vst [vmem:[#allocation3 + $0x60] sm:$0xff] %v3892
        %3921 = vst [vmem:[#allocation3 + $0x68] sm:$0xff] %v3893
        %3922 = vst [vmem:[#allocation3 + $0x70] sm:$0xff] %v3894
        %3923 = vst [vmem:[#allocation3 + $0x78] sm:$0xff] %v3895
        %3924 = vst [vmem:[#allocation3 + $0x80] sm:$0xff] %v3896
        %3925 = vst [vmem:[#allocation3 + $0x88] sm:$0xff] %v3897
        %3926 = vst [vmem:[#allocation3 + $0x90] sm:$0xff] %v3898
        %3927 = vst [vmem:[#allocation3 + $0x98] sm:$0xff] %v3899
        %3928 = vst [vmem:[#allocation3 + $0xa0] sm:$0xff] %v3900
        %3929 = vst [vmem:[#allocation3 + $0xa8] sm:$0xff] %v3901
        %3930 = vst [vmem:[#allocation3 + $0xb0] sm:$0xff] %v3902
        %3931 = vst [vmem:[#allocation3 + $0xb8] sm:$0xff] %v3903
        %3932 = vst [vmem:[#allocation3 + $0xc0] sm:$0xff] %v3904
        %3933 = vst [vmem:[#allocation3 + $0xc8] sm:$0xff] %v3905
        %3934 = vst [vmem:[#allocation3 + $0xd0] sm:$0xff] %v3906
        %3935 = vst [vmem:[#allocation3 + $0xd8] sm:$0xff] %v3907
        %v3936 = vld [vmem:[#allocation3] sm:$0xff]
        %v3937 = vld [vmem:[#allocation3 + $0x8] sm:$0xff]
        %v3938 = vld [vmem:[#allocation3 + $0x10] sm:$0xff]
        %v3939 = vld [vmem:[#allocation3 + $0x18] sm:$0xff]
        %v3940 = vld [vmem:[#allocation3 + $0x20] sm:$0xff]
        %v3941 = vld [vmem:[#allocation3 + $0x28] sm:$0xff]
        %v3942 = vld [vmem:[#allocation3 + $0x30] sm:$0xff]
        %v3943 = vld [vmem:[#allocation3 + $0x38] sm:$0xff]
        %v3944 = vld [vmem:[#allocation3 + $0x40] sm:$0xff]
        %v3945 = vld [vmem:[#allocation3 + $0x48] sm:$0xff]
        %v3946 = vld [vmem:[#allocation3 + $0x50] sm:$0xff]
        %v3947 = vld [vmem:[#allocation3 + $0x58] sm:$0xff]
        %v3948 = vld [vmem:[#allocation3 + $0x60] sm:$0xff]
        %v3949 = vld [vmem:[#allocation3 + $0x68] sm:$0xff]
        %v3950 = vld [vmem:[#allocation3 + $0x70] sm:$0xff]
        %v3951 = vld [vmem:[#allocation3 + $0x78] sm:$0xff]
        %v3952 = vld [vmem:[#allocation3 + $0x80] sm:$0xff]
        %v3953 = vld [vmem:[#allocation3 + $0x88] sm:$0xff]
        %v3954 = vld [vmem:[#allocation3 + $0x90] sm:$0xff]
        %v3955 = vld [vmem:[#allocation3 + $0x98] sm:$0xff]
        %v3956 = vld [vmem:[#allocation3 + $0xa0] sm:$0xff]
        %v3957 = vld [vmem:[#allocation3 + $0xa8] sm:$0xff]
        %v3958 = vld [vmem:[#allocation3 + $0xb0] sm:$0xff]
        %v3959 = vld [vmem:[#allocation3 + $0xb8] sm:$0xff]
        %v3960 = vld [vmem:[#allocation3 + $0xc0] sm:$0xff]
        %v3961 = vld [vmem:[#allocation3 + $0xc8] sm:$0xff]
        %v3962 = vld [vmem:[#allocation3 + $0xd0] sm:$0xff]
        %v3963 = vld [vmem:[#allocation3 + $0xd8] sm:$0xff]
        %v3964 = vpack.c.bf16 %v3937, %v3936
        %v3965 = vpack.c.bf16 %v3939, %v3938
        %v3966 = vpack.c.bf16 %v3941, %v3940
        %v3967 = vpack.c.bf16 %v3943, %v3942
        %v3968 = vpack.c.bf16 %v3945, %v3944
        %v3969 = vpack.c.bf16 %v3947, %v3946
        %v3970 = vpack.c.bf16 %v3949, %v3948
        %v3971 = vpack.c.bf16 %v3951, %v3950
        %v3972 = vpack.c.bf16 %v3953, %v3952
        %v3973 = vpack.c.bf16 %v3955, %v3954
        %v3974 = vpack.c.bf16 %v3957, %v3956
        %v3975 = vpack.c.bf16 %v3959, %v3958
        %v3976 = vpack.c.bf16 %v3961, %v3960
        %v3977 = vpack.c.bf16 %v3963, %v3962
        %v3992 = vunpack.c.l.b16 %v3964
        %v3993 = vunpack.c.h.b16 %v3964
        %v3994 = vunpack.c.l.b16 %v3965
        %v3995 = vunpack.c.h.b16 %v3965
        %v3996 = vunpack.c.l.b16 %v3966
        %v3997 = vunpack.c.h.b16 %v3966
        %v3998 = vunpack.c.l.b16 %v3967
        %v3999 = vunpack.c.h.b16 %v3967
        %v4000 = vunpack.c.l.b16 %v3968
        %v4001 = vunpack.c.h.b16 %v3968
        %v4002 = vunpack.c.l.b16 %v3969
        %v4003 = vunpack.c.h.b16 %v3969
        %v4004 = vunpack.c.l.b16 %v3970
        %v4005 = vunpack.c.h.b16 %v3970
        %v4006 = vunpack.c.l.b16 %v3971
        %v4007 = vunpack.c.h.b16 %v3971
        %v4008 = vunpack.c.l.b16 %v3972
        %v4009 = vunpack.c.h.b16 %v3972
        %v4010 = vunpack.c.l.b16 %v3973
        %v4011 = vunpack.c.h.b16 %v3973
        %v4012 = vunpack.c.l.b16 %v3974
        %v4013 = vunpack.c.h.b16 %v3974
        %v4014 = vunpack.c.l.b16 %v3975
        %v4015 = vunpack.c.h.b16 %v3975
        %v4016 = vunpack.c.l.b16 %v3976
        %v4017 = vunpack.c.h.b16 %v3976
        %v4018 = vunpack.c.l.b16 %v3977
        %v4019 = vunpack.c.h.b16 %v3977
        %v4020 = vpack.c.b16 %v3992, %v3992
        %v4021 = vpack.c.b16 %v3993, %v3993
        %v4022 = vpack.c.b16 %v3994, %v3994
        %v4023 = vpack.c.b16 %v3995, %v3995
        %v4024 = vpack.c.b16 %v3996, %v3996
        %v4025 = vpack.c.b16 %v3997, %v3997
        %v4026 = vpack.c.b16 %v3998, %v3998
        %v4027 = vpack.c.b16 %v3999, %v3999
        %v4028 = vpack.c.b16 %v4000, %v4000
        %v4029 = vpack.c.b16 %v4001, %v4001
        %v4030 = vpack.c.b16 %v4002, %v4002
        %v4031 = vpack.c.b16 %v4003, %v4003
        %v4032 = vpack.c.b16 %v4004, %v4004
        %v4033 = vpack.c.b16 %v4005, %v4005
        %v4034 = vpack.c.b16 %v4006, %v4006
        %v4035 = vpack.c.b16 %v4007, %v4007
        %v4036 = vpack.c.b16 %v4008, %v4008
        %v4037 = vpack.c.b16 %v4009, %v4009
        %v4038 = vpack.c.b16 %v4010, %v4010
        %v4039 = vpack.c.b16 %v4011, %v4011
        %v4040 = vpack.c.b16 %v4012, %v4012
        %v4041 = vpack.c.b16 %v4013, %v4013
        %v4042 = vpack.c.b16 %v4014, %v4014
        %v4043 = vpack.c.b16 %v4015, %v4015
        %v4044 = vpack.c.b16 %v4016, %v4016
        %v4045 = vpack.c.b16 %v4017, %v4017
        %v4046 = vpack.c.b16 %v4018, %v4018
        %v4047 = vpack.c.b16 %v4019, %v4019
        %4076 = vst [vmem:[%s300] sm:$0xf] %v4020
        %4077 = vst [vmem:[%s300 + $0x4] sm:$0xf] %v4021
        %4078 = vst [vmem:[%s300 + $0x8] sm:$0xf] %v4022
        %4079 = vst [vmem:[%s300 + $0xc] sm:$0xf] %v4023
        %4080 = vst [vmem:[%s300 + $0x10] sm:$0xf] %v4024
        %4081 = vst [vmem:[%s300 + $0x14] sm:$0xf] %v4025
        %4082 = vst [vmem:[%s300 + $0x18] sm:$0xf] %v4026
        %4083 = vst [vmem:[%s300 + $0x1c] sm:$0xf] %v4027
        %4084 = vst [vmem:[%s300 + $0x20] sm:$0xf] %v4028
        %4085 = vst [vmem:[%s300 + $0x24] sm:$0xf] %v4029
        %4086 = vst [vmem:[%s300 + $0x28] sm:$0xf] %v4030
        %4087 = vst [vmem:[%s300 + $0x2c] sm:$0xf] %v4031
        %4088 = vst [vmem:[%s300 + $0x30] sm:$0xf] %v4032
        %4089 = vst [vmem:[%s300 + $0x34] sm:$0xf] %v4033
        %4090 = vst [vmem:[%s300 + $0x38] sm:$0xf] %v4034
        %4091 = vst [vmem:[%s300 + $0x3c] sm:$0xf] %v4035
        %4092 = vst [vmem:[%s300 + $0x40] sm:$0xf] %v4036
        %4093 = vst [vmem:[%s300 + $0x44] sm:$0xf] %v4037
        %4094 = vst [vmem:[%s300 + $0x48] sm:$0xf] %v4038
        %4095 = vst [vmem:[%s300 + $0x4c] sm:$0xf] %v4039
        %4096 = vst [vmem:[%s300 + $0x50] sm:$0xf] %v4040
        %4097 = vst [vmem:[%s300 + $0x54] sm:$0xf] %v4041
        %4098 = vst [vmem:[%s300 + $0x58] sm:$0xf] %v4042
        %4099 = vst [vmem:[%s300 + $0x5c] sm:$0xf] %v4043
        %4100 = vst [vmem:[%s300 + $0x60] sm:$0xf] %v4044
        %4101 = vst [vmem:[%s300 + $0x64] sm:$0xf] %v4045
        %4102 = vst [vmem:[%s300 + $0x68] sm:$0xf] %v4046
        %4103 = vst [vmem:[%s300 + $0x6c] sm:$0xf] %v4047
        %s4104 = smul.u32 %s33, 224
        %v4105 = vlaneseq
        %v4106 = vshrl.u32 %v4105, 7
        %v4107 = vadd.s32 %v4106, 8
        %v4108 = vadd.s32 %v4106, 16
        %v4109 = vadd.s32 %v4106, 24
        %v4110 = vadd.s32 %v4106, 32
        %v4111 = vadd.s32 %v4106, 40
        %v4112 = vadd.s32 %v4106, 48
        %v4113 = vadd.s32 %v4106, 56
        %v4114 = vadd.s32 %v4106, 64
        %v4115 = vadd.s32 %v4106, 72
        %v4116 = vadd.s32 %v4106, 80
        %v4117 = vadd.s32 %v4106, 88
        %v4118 = vadd.s32 %v4106, 96
        %v4119 = vadd.s32 %v4106, 104
        %v4120 = vadd.s32 %v4106, 112
        %v4121 = vadd.s32 %v4106, 120
        %v4122 = vadd.s32 %v4106, 128
        %v4123 = vadd.s32 %v4106, 136
        %v4124 = vadd.s32 %v4106, 144
        %v4125 = vadd.s32 %v4106, 152
        %v4126 = vadd.s32 %v4106, 160
        %v4127 = vadd.s32 %v4106, 168
        %v4128 = vadd.s32 %v4106, 176
        %v4129 = vadd.s32 %v4106, 184
        %v4130 = vadd.s32 %v4106, 192
        %v4131 = vadd.s32 %v4106, 200
        %v4132 = vadd.s32 %v4106, 208
        %v4133 = vadd.s32 %v4106, 216
        %v4134 = vstv %s4104
        %v4135 = vadd.s32 %v4134, %v4106
        %v4136 = vadd.s32 %v4134, %v4107
        %v4137 = vadd.s32 %v4134, %v4108
        %v4138 = vadd.s32 %v4134, %v4109
        %v4139 = vadd.s32 %v4134, %v4110
        %v4140 = vadd.s32 %v4134, %v4111
        %v4141 = vadd.s32 %v4134, %v4112
        %v4142 = vadd.s32 %v4134, %v4113
        %v4143 = vadd.s32 %v4134, %v4114
        %v4144 = vadd.s32 %v4134, %v4115
        %v4145 = vadd.s32 %v4134, %v4116
        %v4146 = vadd.s32 %v4134, %v4117
        %v4147 = vadd.s32 %v4134, %v4118
        %v4148 = vadd.s32 %v4134, %v4119
        %v4149 = vadd.s32 %v4134, %v4120
        %v4150 = vadd.s32 %v4134, %v4121
        %v4151 = vadd.s32 %v4134, %v4122
        %v4152 = vadd.s32 %v4134, %v4123
        %v4153 = vadd.s32 %v4134, %v4124
        %v4154 = vadd.s32 %v4134, %v4125
        %v4155 = vadd.s32 %v4134, %v4126
        %v4156 = vadd.s32 %v4134, %v4127
        %v4157 = vadd.s32 %v4134, %v4128
        %v4158 = vadd.s32 %v4134, %v4129
        %v4159 = vadd.s32 %v4134, %v4130
        %v4160 = vadd.s32 %v4134, %v4131
        %v4161 = vadd.s32 %v4134, %v4132
        %v4162 = vadd.s32 %v4134, %v4133
        %vm4163 = vcmp.lt.s32.totalorder %v4135, 224
        %vm4164 = vcmp.lt.s32.totalorder %v4136, 224
        %vm4165 = vcmp.lt.s32.totalorder %v4137, 224
        %vm4166 = vcmp.lt.s32.totalorder %v4138, 224
        %vm4167 = vcmp.lt.s32.totalorder %v4139, 224
        %vm4168 = vcmp.lt.s32.totalorder %v4140, 224
        %vm4169 = vcmp.lt.s32.totalorder %v4141, 224
        %vm4170 = vcmp.lt.s32.totalorder %v4142, 224
        %vm4171 = vcmp.lt.s32.totalorder %v4143, 224
        %vm4172 = vcmp.lt.s32.totalorder %v4144, 224
        %vm4173 = vcmp.lt.s32.totalorder %v4145, 224
        %vm4174 = vcmp.lt.s32.totalorder %v4146, 224
        %vm4175 = vcmp.lt.s32.totalorder %v4147, 224
        %vm4176 = vcmp.lt.s32.totalorder %v4148, 224
        %vm4177 = vcmp.lt.s32.totalorder %v4149, 224
        %vm4178 = vcmp.lt.s32.totalorder %v4150, 224
        %vm4179 = vcmp.lt.s32.totalorder %v4151, 224
        %vm4180 = vcmp.lt.s32.totalorder %v4152, 224
        %vm4181 = vcmp.lt.s32.totalorder %v4153, 224
        %vm4182 = vcmp.lt.s32.totalorder %v4154, 224
        %vm4183 = vcmp.lt.s32.totalorder %v4155, 224
        %vm4184 = vcmp.lt.s32.totalorder %v4156, 224
        %vm4185 = vcmp.lt.s32.totalorder %v4157, 224
        %vm4186 = vcmp.lt.s32.totalorder %v4158, 224
        %vm4187 = vcmp.lt.s32.totalorder %v4159, 224
        %vm4188 = vcmp.lt.s32.totalorder %v4160, 224
        %vm4189 = vcmp.lt.s32.totalorder %v4161, 224
        %vm4190 = vcmp.lt.s32.totalorder %v4162, 224
        %vm4191 = vcmp.lt.s32.totalorder %v4135, 0
        %v4192 = vsub.s32 0, %v4135
        %v4193 = vsel %vm4191, %v4192, %v4135
        %v4194 = vshrl.u32 %v4193, 4
        %v4195 = vand.u32 %v4193, 15
        %v4196 = vsub.s32 0, %v4195
        %v4197 = vsel %vm4191, %v4196, %v4195
        %vm4198 = vcmp.lt.s32.totalorder %v4136, 0
        %v4199 = vsub.s32 0, %v4136
        %v4200 = vsel %vm4198, %v4199, %v4136
        %v4201 = vshrl.u32 %v4200, 4
        %v4202 = vand.u32 %v4200, 15
        %v4203 = vsub.s32 0, %v4202
        %v4204 = vsel %vm4198, %v4203, %v4202
        %vm4205 = vcmp.lt.s32.totalorder %v4137, 0
        %v4206 = vsub.s32 0, %v4137
        %v4207 = vsel %vm4205, %v4206, %v4137
        %v4208 = vshrl.u32 %v4207, 4
        %v4209 = vand.u32 %v4207, 15
        %v4210 = vsub.s32 0, %v4209
        %v4211 = vsel %vm4205, %v4210, %v4209
        %vm4212 = vcmp.lt.s32.totalorder %v4138, 0
        %v4213 = vsub.s32 0, %v4138
        %v4214 = vsel %vm4212, %v4213, %v4138
        %v4215 = vshrl.u32 %v4214, 4
        %v4216 = vand.u32 %v4214, 15
        %v4217 = vsub.s32 0, %v4216
        %v4218 = vsel %vm4212, %v4217, %v4216
        %vm4219 = vcmp.lt.s32.totalorder %v4139, 0
        %v4220 = vsub.s32 0, %v4139
        %v4221 = vsel %vm4219, %v4220, %v4139
        %v4222 = vshrl.u32 %v4221, 4
        %v4223 = vand.u32 %v4221, 15
        %v4224 = vsub.s32 0, %v4223
        %v4225 = vsel %vm4219, %v4224, %v4223
        %vm4226 = vcmp.lt.s32.totalorder %v4140, 0
        %v4227 = vsub.s32 0, %v4140
        %v4228 = vsel %vm4226, %v4227, %v4140
        %v4229 = vshrl.u32 %v4228, 4
        %v4230 = vand.u32 %v4228, 15
        %v4231 = vsub.s32 0, %v4230
        %v4232 = vsel %vm4226, %v4231, %v4230
        %vm4233 = vcmp.lt.s32.totalorder %v4141, 0
        %v4234 = vsub.s32 0, %v4141
        %v4235 = vsel %vm4233, %v4234, %v4141
        %v4236 = vshrl.u32 %v4235, 4
        %v4237 = vand.u32 %v4235, 15
        %v4238 = vsub.s32 0, %v4237
        %v4239 = vsel %vm4233, %v4238, %v4237
        %vm4240 = vcmp.lt.s32.totalorder %v4142, 0
        %v4241 = vsub.s32 0, %v4142
        %v4242 = vsel %vm4240, %v4241, %v4142
        %v4243 = vshrl.u32 %v4242, 4
        %v4244 = vand.u32 %v4242, 15
        %v4245 = vsub.s32 0, %v4244
        %v4246 = vsel %vm4240, %v4245, %v4244
        %vm4247 = vcmp.lt.s32.totalorder %v4143, 0
        %v4248 = vsub.s32 0, %v4143
        %v4249 = vsel %vm4247, %v4248, %v4143
        %v4250 = vshrl.u32 %v4249, 4
        %v4251 = vand.u32 %v4249, 15
        %v4252 = vsub.s32 0, %v4251
        %v4253 = vsel %vm4247, %v4252, %v4251
        %vm4254 = vcmp.lt.s32.totalorder %v4144, 0
        %v4255 = vsub.s32 0, %v4144
        %v4256 = vsel %vm4254, %v4255, %v4144
        %v4257 = vshrl.u32 %v4256, 4
        %v4258 = vand.u32 %v4256, 15
        %v4259 = vsub.s32 0, %v4258
        %v4260 = vsel %vm4254, %v4259, %v4258
        %vm4261 = vcmp.lt.s32.totalorder %v4145, 0
        %v4262 = vsub.s32 0, %v4145
        %v4263 = vsel %vm4261, %v4262, %v4145
        %v4264 = vshrl.u32 %v4263, 4
        %v4265 = vand.u32 %v4263, 15
        %v4266 = vsub.s32 0, %v4265
        %v4267 = vsel %vm4261, %v4266, %v4265
        %vm4268 = vcmp.lt.s32.totalorder %v4146, 0
        %v4269 = vsub.s32 0, %v4146
        %v4270 = vsel %vm4268, %v4269, %v4146
        %v4271 = vshrl.u32 %v4270, 4
        %v4272 = vand.u32 %v4270, 15
        %v4273 = vsub.s32 0, %v4272
        %v4274 = vsel %vm4268, %v4273, %v4272
        %vm4275 = vcmp.lt.s32.totalorder %v4147, 0
        %v4276 = vsub.s32 0, %v4147
        %v4277 = vsel %vm4275, %v4276, %v4147
        %v4278 = vshrl.u32 %v4277, 4
        %v4279 = vand.u32 %v4277, 15
        %v4280 = vsub.s32 0, %v4279
        %v4281 = vsel %vm4275, %v4280, %v4279
        %vm4282 = vcmp.lt.s32.totalorder %v4148, 0
        %v4283 = vsub.s32 0, %v4148
        %v4284 = vsel %vm4282, %v4283, %v4148
        %v4285 = vshrl.u32 %v4284, 4
        %v4286 = vand.u32 %v4284, 15
        %v4287 = vsub.s32 0, %v4286
        %v4288 = vsel %vm4282, %v4287, %v4286
        %vm4289 = vcmp.lt.s32.totalorder %v4149, 0
        %v4290 = vsub.s32 0, %v4149
        %v4291 = vsel %vm4289, %v4290, %v4149
        %v4292 = vshrl.u32 %v4291, 4
        %v4293 = vand.u32 %v4291, 15
        %v4294 = vsub.s32 0, %v4293
        %v4295 = vsel %vm4289, %v4294, %v4293
        %vm4296 = vcmp.lt.s32.totalorder %v4150, 0
        %v4297 = vsub.s32 0, %v4150
        %v4298 = vsel %vm4296, %v4297, %v4150
        %v4299 = vshrl.u32 %v4298, 4
        %v4300 = vand.u32 %v4298, 15
        %v4301 = vsub.s32 0, %v4300
        %v4302 = vsel %vm4296, %v4301, %v4300
        %vm4303 = vcmp.lt.s32.totalorder %v4151, 0
        %v4304 = vsub.s32 0, %v4151
        %v4305 = vsel %vm4303, %v4304, %v4151
        %v4306 = vshrl.u32 %v4305, 4
        %v4307 = vand.u32 %v4305, 15
        %v4308 = vsub.s32 0, %v4307
        %v4309 = vsel %vm4303, %v4308, %v4307
        %vm4310 = vcmp.lt.s32.totalorder %v4152, 0
        %v4311 = vsub.s32 0, %v4152
        %v4312 = vsel %vm4310, %v4311, %v4152
        %v4313 = vshrl.u32 %v4312, 4
        %v4314 = vand.u32 %v4312, 15
        %v4315 = vsub.s32 0, %v4314
        %v4316 = vsel %vm4310, %v4315, %v4314
        %vm4317 = vcmp.lt.s32.totalorder %v4153, 0
        %v4318 = vsub.s32 0, %v4153
        %v4319 = vsel %vm4317, %v4318, %v4153
        %v4320 = vshrl.u32 %v4319, 4
        %v4321 = vand.u32 %v4319, 15
        %v4322 = vsub.s32 0, %v4321
        %v4323 = vsel %vm4317, %v4322, %v4321
        %vm4324 = vcmp.lt.s32.totalorder %v4154, 0
        %v4325 = vsub.s32 0, %v4154
        %v4326 = vsel %vm4324, %v4325, %v4154
        %v4327 = vshrl.u32 %v4326, 4
        %v4328 = vand.u32 %v4326, 15
        %v4329 = vsub.s32 0, %v4328
        %v4330 = vsel %vm4324, %v4329, %v4328
        %vm4331 = vcmp.lt.s32.totalorder %v4155, 0
        %v4332 = vsub.s32 0, %v4155
        %v4333 = vsel %vm4331, %v4332, %v4155
        %v4334 = vshrl.u32 %v4333, 4
        %v4335 = vand.u32 %v4333, 15
        %v4336 = vsub.s32 0, %v4335
        %v4337 = vsel %vm4331, %v4336, %v4335
        %vm4338 = vcmp.lt.s32.totalorder %v4156, 0
        %v4339 = vsub.s32 0, %v4156
        %v4340 = vsel %vm4338, %v4339, %v4156
        %v4341 = vshrl.u32 %v4340, 4
        %v4342 = vand.u32 %v4340, 15
        %v4343 = vsub.s32 0, %v4342
        %v4344 = vsel %vm4338, %v4343, %v4342
        %vm4345 = vcmp.lt.s32.totalorder %v4157, 0
        %v4346 = vsub.s32 0, %v4157
        %v4347 = vsel %vm4345, %v4346, %v4157
        %v4348 = vshrl.u32 %v4347, 4
        %v4349 = vand.u32 %v4347, 15
        %v4350 = vsub.s32 0, %v4349
        %v4351 = vsel %vm4345, %v4350, %v4349
        %vm4352 = vcmp.lt.s32.totalorder %v4158, 0
        %v4353 = vsub.s32 0, %v4158
        %v4354 = vsel %vm4352, %v4353, %v4158
        %v4355 = vshrl.u32 %v4354, 4
        %v4356 = vand.u32 %v4354, 15
        %v4357 = vsub.s32 0, %v4356
        %v4358 = vsel %vm4352, %v4357, %v4356
        %vm4359 = vcmp.lt.s32.totalorder %v4159, 0
        %v4360 = vsub.s32 0, %v4159
        %v4361 = vsel %vm4359, %v4360, %v4159
        %v4362 = vshrl.u32 %v4361, 4
        %v4363 = vand.u32 %v4361, 15
        %v4364 = vsub.s32 0, %v4363
        %v4365 = vsel %vm4359, %v4364, %v4363
        %vm4366 = vcmp.lt.s32.totalorder %v4160, 0
        %v4367 = vsub.s32 0, %v4160
        %v4368 = vsel %vm4366, %v4367, %v4160
        %v4369 = vshrl.u32 %v4368, 4
        %v4370 = vand.u32 %v4368, 15
        %v4371 = vsub.s32 0, %v4370
        %v4372 = vsel %vm4366, %v4371, %v4370
        %vm4373 = vcmp.lt.s32.totalorder %v4161, 0
        %v4374 = vsub.s32 0, %v4161
        %v4375 = vsel %vm4373, %v4374, %v4161
        %v4376 = vshrl.u32 %v4375, 4
        %v4377 = vand.u32 %v4375, 15
        %v4378 = vsub.s32 0, %v4377
        %v4379 = vsel %vm4373, %v4378, %v4377
        %vm4380 = vcmp.lt.s32.totalorder %v4162, 0
        %v4381 = vsub.s32 0, %v4162
        %v4382 = vsel %vm4380, %v4381, %v4162
        %v4383 = vshrl.u32 %v4382, 4
        %v4384 = vand.u32 %v4382, 15
        %v4385 = vsub.s32 0, %v4384
        %v4386 = vsel %vm4380, %v4385, %v4384
        %vm4387 = vcmp.ne.s32.totalorder %v4197, 0
        %vm4388 = vcmp.ne.s32.totalorder %v4204, 0
        %vm4389 = vcmp.ne.s32.totalorder %v4211, 0
        %vm4390 = vcmp.ne.s32.totalorder %v4218, 0
        %vm4391 = vcmp.ne.s32.totalorder %v4225, 0
        %vm4392 = vcmp.ne.s32.totalorder %v4232, 0
        %vm4393 = vcmp.ne.s32.totalorder %v4239, 0
        %vm4394 = vcmp.ne.s32.totalorder %v4246, 0
        %vm4395 = vcmp.ne.s32.totalorder %v4253, 0
        %vm4396 = vcmp.ne.s32.totalorder %v4260, 0
        %vm4397 = vcmp.ne.s32.totalorder %v4267, 0
        %vm4398 = vcmp.ne.s32.totalorder %v4274, 0
        %vm4399 = vcmp.ne.s32.totalorder %v4281, 0
        %vm4400 = vcmp.ne.s32.totalorder %v4288, 0
        %vm4401 = vcmp.ne.s32.totalorder %v4295, 0
        %vm4402 = vcmp.ne.s32.totalorder %v4302, 0
        %vm4403 = vcmp.ne.s32.totalorder %v4309, 0
        %vm4404 = vcmp.ne.s32.totalorder %v4316, 0
        %vm4405 = vcmp.ne.s32.totalorder %v4323, 0
        %vm4406 = vcmp.ne.s32.totalorder %v4330, 0
        %vm4407 = vcmp.ne.s32.totalorder %v4337, 0
        %vm4408 = vcmp.ne.s32.totalorder %v4344, 0
        %vm4409 = vcmp.ne.s32.totalorder %v4351, 0
        %vm4410 = vcmp.ne.s32.totalorder %v4358, 0
        %vm4411 = vcmp.ne.s32.totalorder %v4365, 0
        %vm4412 = vcmp.ne.s32.totalorder %v4372, 0
        %vm4413 = vcmp.ne.s32.totalorder %v4379, 0
        %vm4414 = vcmp.ne.s32.totalorder %v4386, 0
        %vm4415 = vcmp.lt.s32.totalorder %v4197, 0
        %vm4416 = vcmp.lt.s32.totalorder %v4204, 0
        %vm4417 = vcmp.lt.s32.totalorder %v4211, 0
        %vm4418 = vcmp.lt.s32.totalorder %v4218, 0
        %vm4419 = vcmp.lt.s32.totalorder %v4225, 0
        %vm4420 = vcmp.lt.s32.totalorder %v4232, 0
        %vm4421 = vcmp.lt.s32.totalorder %v4239, 0
        %vm4422 = vcmp.lt.s32.totalorder %v4246, 0
        %vm4423 = vcmp.lt.s32.totalorder %v4253, 0
        %vm4424 = vcmp.lt.s32.totalorder %v4260, 0
        %vm4425 = vcmp.lt.s32.totalorder %v4267, 0
        %vm4426 = vcmp.lt.s32.totalorder %v4274, 0
        %vm4427 = vcmp.lt.s32.totalorder %v4281, 0
        %vm4428 = vcmp.lt.s32.totalorder %v4288, 0
        %vm4429 = vcmp.lt.s32.totalorder %v4295, 0
        %vm4430 = vcmp.lt.s32.totalorder %v4302, 0
        %vm4431 = vcmp.lt.s32.totalorder %v4309, 0
        %vm4432 = vcmp.lt.s32.totalorder %v4316, 0
        %vm4433 = vcmp.lt.s32.totalorder %v4323, 0
        %vm4434 = vcmp.lt.s32.totalorder %v4330, 0
        %vm4435 = vcmp.lt.s32.totalorder %v4337, 0
        %vm4436 = vcmp.lt.s32.totalorder %v4344, 0
        %vm4437 = vcmp.lt.s32.totalorder %v4351, 0
        %vm4438 = vcmp.lt.s32.totalorder %v4358, 0
        %vm4439 = vcmp.lt.s32.totalorder %v4365, 0
        %vm4440 = vcmp.lt.s32.totalorder %v4372, 0
        %vm4441 = vcmp.lt.s32.totalorder %v4379, 0
        %vm4442 = vcmp.lt.s32.totalorder %v4386, 0
        %vm4443 = vmand %vm4415, %vm4387
        %vm4444 = vmand %vm4416, %vm4388
        %vm4445 = vmand %vm4417, %vm4389
        %vm4446 = vmand %vm4418, %vm4390
        %vm4447 = vmand %vm4419, %vm4391
        %vm4448 = vmand %vm4420, %vm4392
        %vm4449 = vmand %vm4421, %vm4393
        %vm4450 = vmand %vm4422, %vm4394
        %vm4451 = vmand %vm4423, %vm4395
        %vm4452 = vmand %vm4424, %vm4396
        %vm4453 = vmand %vm4425, %vm4397
        %vm4454 = vmand %vm4426, %vm4398
        %vm4455 = vmand %vm4427, %vm4399
        %vm4456 = vmand %vm4428, %vm4400
        %vm4457 = vmand %vm4429, %vm4401
        %vm4458 = vmand %vm4430, %vm4402
        %vm4459 = vmand %vm4431, %vm4403
        %vm4460 = vmand %vm4432, %vm4404
        %vm4461 = vmand %vm4433, %vm4405
        %vm4462 = vmand %vm4434, %vm4406
        %vm4463 = vmand %vm4435, %vm4407
        %vm4464 = vmand %vm4436, %vm4408
        %vm4465 = vmand %vm4437, %vm4409
        %vm4466 = vmand %vm4438, %vm4410
        %vm4467 = vmand %vm4439, %vm4411
        %vm4468 = vmand %vm4440, %vm4412
        %vm4469 = vmand %vm4441, %vm4413
        %vm4470 = vmand %vm4442, %vm4414
        %v4471 = vadd.s32 %v4197, 16
        %v4472 = vadd.s32 %v4204, 16
        %v4473 = vadd.s32 %v4211, 16
        %v4474 = vadd.s32 %v4218, 16
        %v4475 = vadd.s32 %v4225, 16
        %v4476 = vadd.s32 %v4232, 16
        %v4477 = vadd.s32 %v4239, 16
        %v4478 = vadd.s32 %v4246, 16
        %v4479 = vadd.s32 %v4253, 16
        %v4480 = vadd.s32 %v4260, 16
        %v4481 = vadd.s32 %v4267, 16
        %v4482 = vadd.s32 %v4274, 16
        %v4483 = vadd.s32 %v4281, 16
        %v4484 = vadd.s32 %v4288, 16
        %v4485 = vadd.s32 %v4295, 16
        %v4486 = vadd.s32 %v4302, 16
        %v4487 = vadd.s32 %v4309, 16
        %v4488 = vadd.s32 %v4316, 16
        %v4489 = vadd.s32 %v4323, 16
        %v4490 = vadd.s32 %v4330, 16
        %v4491 = vadd.s32 %v4337, 16
        %v4492 = vadd.s32 %v4344, 16
        %v4493 = vadd.s32 %v4351, 16
        %v4494 = vadd.s32 %v4358, 16
        %v4495 = vadd.s32 %v4365, 16
        %v4496 = vadd.s32 %v4372, 16
        %v4497 = vadd.s32 %v4379, 16
        %v4498 = vadd.s32 %v4386, 16
        %v4499 = vsel %vm4443, %v4471, %v4197
        %v4500 = vsel %vm4444, %v4472, %v4204
        %v4501 = vsel %vm4445, %v4473, %v4211
        %v4502 = vsel %vm4446, %v4474, %v4218
        %v4503 = vsel %vm4447, %v4475, %v4225
        %v4504 = vsel %vm4448, %v4476, %v4232
        %v4505 = vsel %vm4449, %v4477, %v4239
        %v4506 = vsel %vm4450, %v4478, %v4246
        %v4507 = vsel %vm4451, %v4479, %v4253
        %v4508 = vsel %vm4452, %v4480, %v4260
        %v4509 = vsel %vm4453, %v4481, %v4267
        %v4510 = vsel %vm4454, %v4482, %v4274
        %v4511 = vsel %vm4455, %v4483, %v4281
        %v4512 = vsel %vm4456, %v4484, %v4288
        %v4513 = vsel %vm4457, %v4485, %v4295
        %v4514 = vsel %vm4458, %v4486, %v4302
        %v4515 = vsel %vm4459, %v4487, %v4309
        %v4516 = vsel %vm4460, %v4488, %v4316
        %v4517 = vsel %vm4461, %v4489, %v4323
        %v4518 = vsel %vm4462, %v4490, %v4330
        %v4519 = vsel %vm4463, %v4491, %v4337
        %v4520 = vsel %vm4464, %v4492, %v4344
        %v4521 = vsel %vm4465, %v4493, %v4351
        %v4522 = vsel %vm4466, %v4494, %v4358
        %v4523 = vsel %vm4467, %v4495, %v4365
        %v4524 = vsel %vm4468, %v4496, %v4372
        %v4525 = vsel %vm4469, %v4497, %v4379
        %v4526 = vsel %vm4470, %v4498, %v4386
        %vm4527 = vcmp.lt.s32.totalorder %v4499, 14
        %vm4528 = vcmp.lt.s32.totalorder %v4500, 14
        %vm4529 = vcmp.lt.s32.totalorder %v4501, 14
        %vm4530 = vcmp.lt.s32.totalorder %v4502, 14
        %vm4531 = vcmp.lt.s32.totalorder %v4503, 14
        %vm4532 = vcmp.lt.s32.totalorder %v4504, 14
        %vm4533 = vcmp.lt.s32.totalorder %v4505, 14
        %vm4534 = vcmp.lt.s32.totalorder %v4506, 14
        %vm4535 = vcmp.lt.s32.totalorder %v4507, 14
        %vm4536 = vcmp.lt.s32.totalorder %v4508, 14
        %vm4537 = vcmp.lt.s32.totalorder %v4509, 14
        %vm4538 = vcmp.lt.s32.totalorder %v4510, 14
        %vm4539 = vcmp.lt.s32.totalorder %v4511, 14
        %vm4540 = vcmp.lt.s32.totalorder %v4512, 14
        %vm4541 = vcmp.lt.s32.totalorder %v4513, 14
        %vm4542 = vcmp.lt.s32.totalorder %v4514, 14
        %vm4543 = vcmp.lt.s32.totalorder %v4515, 14
        %vm4544 = vcmp.lt.s32.totalorder %v4516, 14
        %vm4545 = vcmp.lt.s32.totalorder %v4517, 14
        %vm4546 = vcmp.lt.s32.totalorder %v4518, 14
        %vm4547 = vcmp.lt.s32.totalorder %v4519, 14
        %vm4548 = vcmp.lt.s32.totalorder %v4520, 14
        %vm4549 = vcmp.lt.s32.totalorder %v4521, 14
        %vm4550 = vcmp.lt.s32.totalorder %v4522, 14
        %vm4551 = vcmp.lt.s32.totalorder %v4523, 14
        %vm4552 = vcmp.lt.s32.totalorder %v4524, 14
        %vm4553 = vcmp.lt.s32.totalorder %v4525, 14
        %vm4554 = vcmp.lt.s32.totalorder %v4526, 14
        %vm4555 = vmand %vm4163, %vm4527
        %vm4556 = vmand %vm4164, %vm4528
        %vm4557 = vmand %vm4165, %vm4529
        %vm4558 = vmand %vm4166, %vm4530
        %vm4559 = vmand %vm4167, %vm4531
        %vm4560 = vmand %vm4168, %vm4532
        %vm4561 = vmand %vm4169, %vm4533
        %vm4562 = vmand %vm4170, %vm4534
        %vm4563 = vmand %vm4171, %vm4535
        %vm4564 = vmand %vm4172, %vm4536
        %vm4565 = vmand %vm4173, %vm4537
        %vm4566 = vmand %vm4174, %vm4538
        %vm4567 = vmand %vm4175, %vm4539
        %vm4568 = vmand %vm4176, %vm4540
        %vm4569 = vmand %vm4177, %vm4541
        %vm4570 = vmand %vm4178, %vm4542
        %vm4571 = vmand %vm4179, %vm4543
        %vm4572 = vmand %vm4180, %vm4544
        %vm4573 = vmand %vm4181, %vm4545
        %vm4574 = vmand %vm4182, %vm4546
        %vm4575 = vmand %vm4183, %vm4547
        %vm4576 = vmand %vm4184, %vm4548
        %vm4577 = vmand %vm4185, %vm4549
        %vm4578 = vmand %vm4186, %vm4550
        %vm4579 = vmand %vm4187, %vm4551
        %vm4580 = vmand %vm4188, %vm4552
        %vm4581 = vmand %vm4189, %vm4553
        %vm4582 = vmand %vm4190, %vm4554
        %v4583 = vsel %vm4555, 1, 0
        %v4584 = vsel %vm4556, 1, 0
        %v4585 = vsel %vm4557, 1, 0
        %v4586 = vsel %vm4558, 1, 0
        %v4587 = vsel %vm4559, 1, 0
        %v4588 = vsel %vm4560, 1, 0
        %v4589 = vsel %vm4561, 1, 0
        %v4590 = vsel %vm4562, 1, 0
        %v4591 = vsel %vm4563, 1, 0
        %v4592 = vsel %vm4564, 1, 0
        %v4593 = vsel %vm4565, 1, 0
        %v4594 = vsel %vm4566, 1, 0
        %v4595 = vsel %vm4567, 1, 0
        %v4596 = vsel %vm4568, 1, 0
        %v4597 = vsel %vm4569, 1, 0
        %v4598 = vsel %vm4570, 1, 0
        %v4599 = vsel %vm4571, 1, 0
        %v4600 = vsel %vm4572, 1, 0
        %v4601 = vsel %vm4573, 1, 0
        %v4602 = vsel %vm4574, 1, 0
        %v4603 = vsel %vm4575, 1, 0
        %v4604 = vsel %vm4576, 1, 0
        %v4605 = vsel %vm4577, 1, 0
        %v4606 = vsel %vm4578, 1, 0
        %v4607 = vsel %vm4579, 1, 0
        %v4608 = vsel %vm4580, 1, 0
        %v4609 = vsel %vm4581, 1, 0
        %v4610 = vsel %vm4582, 1, 0
        %vm4611 = vcmp.eq.s32.totalorder %v4583, 1
        %vm4612 = vcmp.eq.s32.totalorder %v4584, 1
        %vm4613 = vcmp.eq.s32.totalorder %v4585, 1
        %vm4614 = vcmp.eq.s32.totalorder %v4586, 1
        %vm4615 = vcmp.eq.s32.totalorder %v4587, 1
        %vm4616 = vcmp.eq.s32.totalorder %v4588, 1
        %vm4617 = vcmp.eq.s32.totalorder %v4589, 1
        %vm4618 = vcmp.eq.s32.totalorder %v4590, 1
        %vm4619 = vcmp.eq.s32.totalorder %v4591, 1
        %vm4620 = vcmp.eq.s32.totalorder %v4592, 1
        %vm4621 = vcmp.eq.s32.totalorder %v4593, 1
        %vm4622 = vcmp.eq.s32.totalorder %v4594, 1
        %vm4623 = vcmp.eq.s32.totalorder %v4595, 1
        %vm4624 = vcmp.eq.s32.totalorder %v4596, 1
        %vm4625 = vcmp.eq.s32.totalorder %v4597, 1
        %vm4626 = vcmp.eq.s32.totalorder %v4598, 1
        %vm4627 = vcmp.eq.s32.totalorder %v4599, 1
        %vm4628 = vcmp.eq.s32.totalorder %v4600, 1
        %vm4629 = vcmp.eq.s32.totalorder %v4601, 1
        %vm4630 = vcmp.eq.s32.totalorder %v4602, 1
        %vm4631 = vcmp.eq.s32.totalorder %v4603, 1
        %vm4632 = vcmp.eq.s32.totalorder %v4604, 1
        %vm4633 = vcmp.eq.s32.totalorder %v4605, 1
        %vm4634 = vcmp.eq.s32.totalorder %v4606, 1
        %vm4635 = vcmp.eq.s32.totalorder %v4607, 1
        %vm4636 = vcmp.eq.s32.totalorder %v4608, 1
        %vm4637 = vcmp.eq.s32.totalorder %v4609, 1
        %vm4638 = vcmp.eq.s32.totalorder %v4610, 1
        %v4639 = vsel %vm4611, %v3936, 0.0
        %v4640 = vsel %vm4612, %v3937, 0.0
        %v4641 = vsel %vm4613, %v3938, 0.0
        %v4642 = vsel %vm4614, %v3939, 0.0
        %v4643 = vsel %vm4615, %v3940, 0.0
        %v4644 = vsel %vm4616, %v3941, 0.0
        %v4645 = vsel %vm4617, %v3942, 0.0
        %v4646 = vsel %vm4618, %v3943, 0.0
        %v4647 = vsel %vm4619, %v3944, 0.0
        %v4648 = vsel %vm4620, %v3945, 0.0
        %v4649 = vsel %vm4621, %v3946, 0.0
        %v4650 = vsel %vm4622, %v3947, 0.0
        %v4651 = vsel %vm4623, %v3948, 0.0
        %v4652 = vsel %vm4624, %v3949, 0.0
        %v4653 = vsel %vm4625, %v3950, 0.0
        %v4654 = vsel %vm4626, %v3951, 0.0
        %v4655 = vsel %vm4627, %v3952, 0.0
        %v4656 = vsel %vm4628, %v3953, 0.0
        %v4657 = vsel %vm4629, %v3954, 0.0
        %v4658 = vsel %vm4630, %v3955, 0.0
        %v4659 = vsel %vm4631, %v3956, 0.0
        %v4660 = vsel %vm4632, %v3957, 0.0
        %v4661 = vsel %vm4633, %v3958, 0.0
        %v4662 = vsel %vm4634, %v3959, 0.0
        %v4663 = vsel %vm4635, %v3960, 0.0
        %v4664 = vsel %vm4636, %v3961, 0.0
        %v4665 = vsel %vm4637, %v3962, 0.0
        %v4666 = vsel %vm4638, %v3963, 0.0
        %v4667 = vadd.f32 %v4639, %v4640
        %v4668 = vadd.f32 %v4667, %v4641
        %v4669 = vadd.f32 %v4668, %v4642
        %v4670 = vadd.f32 %v4669, %v4643
        %v4671 = vadd.f32 %v4670, %v4644
        %v4672 = vadd.f32 %v4671, %v4645
        %v4673 = vadd.f32 %v4672, %v4646
        %v4674 = vadd.f32 %v4673, %v4647
        %v4675 = vadd.f32 %v4674, %v4648
        %v4676 = vadd.f32 %v4675, %v4649
        %v4677 = vadd.f32 %v4676, %v4650
        %v4678 = vadd.f32 %v4677, %v4651
        %v4679 = vadd.f32 %v4678, %v4652
        %v4680 = vadd.f32 %v4679, %v4653
        %v4681 = vadd.f32 %v4680, %v4654
        %v4682 = vadd.f32 %v4681, %v4655
        %v4683 = vadd.f32 %v4682, %v4656
        %v4684 = vadd.f32 %v4683, %v4657
        %v4685 = vadd.f32 %v4684, %v4658
        %v4686 = vadd.f32 %v4685, %v4659
        %v4687 = vadd.f32 %v4686, %v4660
        %v4688 = vadd.f32 %v4687, %v4661
        %v4689 = vadd.f32 %v4688, %v4662
        %v4690 = vadd.f32 %v4689, %v4663
        %v4691 = vadd.f32 %v4690, %v4664
        %v4692 = vadd.f32 %v4691, %v4665
        %v4693 = vadd.f32 %v4692, %v4666
        %v4694 = vrot.slane %v4693, 4
        %v4695 = vadd.f32 %v4693, %v4694
        %v4696 = vrot.slane %v4695, 2
        %v4697 = vadd.f32 %v4695, %v4696
        %v4698 = vrot.slane %v4697, 1
        %v4699 = vadd.f32 %v4697, %v4698
        %v4700 = vmul.f32 %v4639, %v4639
        %v4701 = vmul.f32 %v4640, %v4640
        %v4702 = vmul.f32 %v4641, %v4641
        %v4703 = vmul.f32 %v4642, %v4642
        %v4704 = vmul.f32 %v4643, %v4643
        %v4705 = vmul.f32 %v4644, %v4644
        %v4706 = vmul.f32 %v4645, %v4645
        %v4707 = vmul.f32 %v4646, %v4646
        %v4708 = vmul.f32 %v4647, %v4647
        %v4709 = vmul.f32 %v4648, %v4648
        %v4710 = vmul.f32 %v4649, %v4649
        %v4711 = vmul.f32 %v4650, %v4650
        %v4712 = vmul.f32 %v4651, %v4651
        %v4713 = vmul.f32 %v4652, %v4652
        %v4714 = vmul.f32 %v4653, %v4653
        %v4715 = vmul.f32 %v4654, %v4654
        %v4716 = vmul.f32 %v4655, %v4655
        %v4717 = vmul.f32 %v4656, %v4656
        %v4718 = vmul.f32 %v4657, %v4657
        %v4719 = vmul.f32 %v4658, %v4658
        %v4720 = vmul.f32 %v4659, %v4659
        %v4721 = vmul.f32 %v4660, %v4660
        %v4722 = vmul.f32 %v4661, %v4661
        %v4723 = vmul.f32 %v4662, %v4662
        %v4724 = vmul.f32 %v4663, %v4663
        %v4725 = vmul.f32 %v4664, %v4664
        %v4726 = vmul.f32 %v4665, %v4665
        %v4727 = vmul.f32 %v4666, %v4666
        %v4728 = vadd.f32 %v4700, %v4701
        %v4729 = vadd.f32 %v4728, %v4702
        %v4730 = vadd.f32 %v4729, %v4703
        %v4731 = vadd.f32 %v4730, %v4704
        %v4732 = vadd.f32 %v4731, %v4705
        %v4733 = vadd.f32 %v4732, %v4706
        %v4734 = vadd.f32 %v4733, %v4707
        %v4735 = vadd.f32 %v4734, %v4708
        %v4736 = vadd.f32 %v4735, %v4709
        %v4737 = vadd.f32 %v4736, %v4710
        %v4738 = vadd.f32 %v4737, %v4711
        %v4739 = vadd.f32 %v4738, %v4712
        %v4740 = vadd.f32 %v4739, %v4713
        %v4741 = vadd.f32 %v4740, %v4714
        %v4742 = vadd.f32 %v4741, %v4715
        %v4743 = vadd.f32 %v4742, %v4716
        %v4744 = vadd.f32 %v4743, %v4717
        %v4745 = vadd.f32 %v4744, %v4718
        %v4746 = vadd.f32 %v4745, %v4719
        %v4747 = vadd.f32 %v4746, %v4720
        %v4748 = vadd.f32 %v4747, %v4721
        %v4749 = vadd.f32 %v4748, %v4722
        %v4750 = vadd.f32 %v4749, %v4723
        %v4751 = vadd.f32 %v4750, %v4724
        %v4752 = vadd.f32 %v4751, %v4725
        %v4753 = vadd.f32 %v4752, %v4726
        %v4754 = vadd.f32 %v4753, %v4727
        %v4755 = vrot.slane %v4754, 4
        %v4756 = vadd.f32 %v4754, %v4755
        %v4757 = vrot.slane %v4756, 2
        %v4758 = vadd.f32 %v4756, %v4757
        %v4759 = vrot.slane %v4758, 1
        %v4760 = vadd.f32 %v4758, %v4759
        %vm4761 = vcmp.eq.s32.totalorder %v4106, 0
        %v4762 = vsel %vm4761, %v4699, 0.0
        %vm4763 = vcmp.eq.s32.totalorder %v4106, 1
        %v4764 = vsel %vm4763, %v4760, 0.0
        %v4765 = vadd.f32 %v4762, %v4764
        %4766 = vst [vmem:[%s307] sm:$0xff] %v4765
        %s4767 = sand.u32 %s129, 1
        %s4768 = scalar_lea.sflag [#allocation6], %s4767
        %s4769 = sand.u32 %s129, 1
        %s4770 = smul.addr %s4769, 112
        %s4771 = scalar_lea.vmem [#allocation10], %s4770
        %s4772 = sand.u32 %s157, 1
        %s4773 = scalar_lea.sflag [#allocation12], %s4772
        %s4774 = sand.u32 %s157, 1
        %s4775 = smul.addr %s4774, 8
        %s4776 = scalar_lea.vmem [#allocation11], %s4775
        // Predicated region
        $region45: #{tpu_custom_call.1} parent=31 // pred_check
          %p4777 = pneg %p139
        $region46: #{tpu_custom_call.1} parent=31 // pred_check_branch
          %4779 = sbr.rel (%p4777) target = $region48
        $region47: #{tpu_custom_call.1} parent=31 // pred_region
          %s4780 = smul.u32 28, %s33
          %s4782 = ssub.s32 1792, 1792
          %4783 = vsyncadd %s4768, %s4782
          %s4784 = smul.addr %s32, 28
          %s4785 = sadd.s32 %s4780, %s4784
          %s4786 = smul.addr %s4785, 64
          %s4787 = scalar_lea.hbm %s3, %s4786
          %s4788 = sshll.u32 %s4771, 4
          %s4789 = int_to_ptr.vmem [resolvable:$true] %s4788
          %4794 = dma.vmem_to_hbm [thread:$0]  %s4789, 1792, %s4787, %s4768, 64, 64, 4
        $region48: #{tpu_custom_call.1} parent=31 // pred_fallthru
          _
        // Predicated region
        $region49: #{tpu_custom_call.1} parent=31 // pred_check
          %p4795 = pneg %p167
        $region50: #{tpu_custom_call.1} parent=31 // pred_check_branch
          %4797 = sbr.rel (%p4795) target = $region52
        $region51: #{tpu_custom_call.1} parent=31 // pred_region
          %s4799 = ssub.s32 128, 128
          %4800 = vsyncadd %s4773, %s4799
          %s4801 = sadd.s32 %s33, %s32
          %s4802 = smul.addr %s4801, 128
          %s4803 = scalar_lea.hbm %s4, %s4802
          %s4805 = sshll.u32 %s4776, 4
          %s4806 = int_to_ptr.vmem [resolvable:$true] %s4805
          %4808 = dma.vmem_to_hbm [thread:$0]  %s4806, 128, %s4803, %s4773
        $region52: #{tpu_custom_call.1} parent=31 // pred_fallthru
          _
      $region32: #{tpu_custom_call.1} parent=5 // pred_fallthru
        _
      %p4809 = scmp.le.s32.totalorder 2, %s23
      // Predicated region
      $region53: #{tpu_custom_call.1} parent=5 // pred_check
        %p4810 = pneg %p4809
      $region54: #{tpu_custom_call.1} parent=5 // pred_check_branch
        %4812 = sbr.rel (%p4810) target = $region56
      $region55: #{tpu_custom_call.1} parent=5 // pred_region
        %s4813 = ssub.s32 %s23, 2
        // Predicated region
        $region57: #{tpu_custom_call.1} parent=55 // pred_check
          %p4814 = pneg %p145
        $region58: #{tpu_custom_call.1} parent=55 // pred_check_branch
          %4816 = sbr.rel (%p4814) target = $region60
        $region59: #{tpu_custom_call.1} parent=55 // pred_region
          %s4817 = sand.u32 %s130, 1
          %s4818 = scalar_lea.sflag [#allocation6], %s4817
          %s4819 = sand.u32 %s130, 1
          %s4820 = smul.addr %s4819, 112
          %s4821 = scalar_lea.vmem [#allocation10], %s4820
          %4822 = dma.done %s4818, 1792
        $region60: #{tpu_custom_call.1} parent=55 // pred_fallthru
          _
        // Predicated region
        $region61: #{tpu_custom_call.1} parent=55 // pred_check
          %p4823 = pneg %p173
        $region62: #{tpu_custom_call.1} parent=55 // pred_check_branch
          %4825 = sbr.rel (%p4823) target = $region64
        $region63: #{tpu_custom_call.1} parent=55 // pred_region
          %s4826 = sand.u32 %s158, 1
          %s4827 = scalar_lea.sflag [#allocation12], %s4826
          %s4828 = sand.u32 %s158, 1
          %s4829 = smul.addr %s4828, 8
          %s4830 = scalar_lea.vmem [#allocation11], %s4829
          %4831 = dma.done %s4827, 128
        $region64: #{tpu_custom_call.1} parent=55 // pred_fallthru
          _
      $region56: #{tpu_custom_call.1} parent=5 // pred_fallthru
        _
    $region6: #{tpu_custom_call.1} parent=1 // loop_footer
      %s27 = sadd.s32 1, %s23
    $region7: #{tpu_custom_call.1} parent=1 // loop_footer_branch
      %22 = sbr.rel target = $region3
    $region8: #{tpu_custom_call.1} parent=1 // loop_exit
      _
    %4832 = vsyncpa [#allocation5], 1
    %s4833 = scalar_lea.sflag [#allocation5], 1
    %4834 = vsyncpa %s4833, 1
    %4835 = vsyncpa [#allocation8], 1
    %s4836 = scalar_lea.sflag [#allocation8], 1
    %4837 = vsyncpa %s4836, 1
    %4838 = vsyncpa [#allocation6], 1
    %s4839 = scalar_lea.sflag [#allocation6], 1
    %4840 = vsyncpa %s4839, 1
    %4841 = vsyncpa [#allocation12], 1
    %s4842 = scalar_lea.sflag [#allocation12], 1
    %4843 = vsyncpa %s4842, 1

</llo_original>
